<compile_context>
chip_gen: v7x
topology: tpu7x:2x2x1
jax: 0.10.0
libtpu: 0.0.40
codegen_flags: <defaults>
</compile_context>

<pallas_src>
import functools

import jax
import jax.numpy as jnp
from jax.experimental import pallas as pl
from jax.experimental.pallas import tpu as pltpu


def _conv_lstm_cell_kernel(comb_ref, w_ref, b_ref, c_ref, h_out_ref, c_out_ref,
                           *, gb, H, W, hid, kh, kw):
    """One batch-group of the ConvLSTMCell step (implicit-GEMM conv).

    comb_ref : (gb, H+kh-1, W+kw-1, Cin) bf16  zero-padded [x ; h_prev]
    w_ref    : (kh*kw, Cin, 4*hid)       bf16  per-tap conv weights
    b_ref    : (1, 4*hid)                f32   conv bias
    c_ref    : (gb, H*W, hid)            f32   current cell state
    h_out_ref: (gb, H*W, hid)            bf16  next hidden state
    c_out_ref: (gb, H*W, hid)            f32   next cell state (aliased with c)
    """
    rows = gb * H * W
    cin = w_ref.shape[1]

    # Implicit GEMM: accumulate the kh*kw conv taps as small MXU matmuls read
    # directly from the (small) combined block -- no HBM im2col patches.
    # K per tap (= Cin) is small, but the kernel is HBM-bound so the MXU has
    # plenty of slack; explicit K padding is not worth it at these sizes.
    acc = jnp.zeros((rows, 4 * hid), jnp.float32)
    taps = [(dy, dx) for dy in range(kh) for dx in range(kw)]
    for t, (dy, dx) in enumerate(taps):
        tap = comb_ref[:, dy:dy + H, dx:dx + W, :].reshape(rows, cin)
        acc = acc + jnp.dot(tap, w_ref[t], preferred_element_type=jnp.float32)
    acc = acc + b_ref[...]                      # (1, 4*hid) broadcasts over rows

    # Gate order matches torch.split(combined_conv, hidden_dim, dim=1): i,f,o,g.
    # One full-width sigmoid pass covers i/f/o (vs. 3 narrow hid-lane passes).
    s = jax.nn.sigmoid(acc)
    i = s[:, 0 * hid:1 * hid]
    f = s[:, 1 * hid:2 * hid]
    o = s[:, 2 * hid:3 * hid]
    g = jnp.tanh(acc[:, 3 * hid:4 * hid])

    c_cur = c_ref[...].reshape(rows, hid)
    c_next = f * c_cur + i * g
    h_next = o * jnp.tanh(c_next)

    h_out_ref[...] = h_next.astype(h_out_ref.dtype).reshape(gb, H * W, hid)
    c_out_ref[...] = c_next.reshape(gb, H * W, hid)


def prepare_conv_lstm_params(weight, bias):
    """Relayout PyTorch Conv2d params once (hoist out of any timestep loop).

    weight : (4*hid, Cin, KH, KW) -> (KH*KW, Cin, 4*hid) bf16 (tap-major)
    bias   : (4*hid,)             -> (1, 4*hid) f32
    """
    out_ch, cin, kh, kw = weight.shape
    w_taps = jnp.transpose(weight, (2, 3, 1, 0)).reshape(kh * kw, cin, out_ch)
    return w_taps.astype(jnp.bfloat16), bias.reshape(1, out_ch).astype(jnp.float32)


def _pick_batch_group(B, rows_per_image, target_rows=2048):
    """How many images per grid step: aim for ~2k GEMM rows per block but keep
    >=2 grid steps (pipelining / v7x two-TensorCore split) when B allows."""
    gb = max(1, min(B, max(1, target_rows // max(1, rows_per_image))))
    while gb > 1 and (B // gb) < 2:
        gb -= 1
    while B % gb:            # whole groups only -> no ragged tail ever
        gb -= 1
    return gb


def _conv_lstm_step_flat(x, h_flat, c_flat, w_taps, b2, kernel_size, *,
                         batch_group=None, interpret=False):
    """One ConvLSTMCell step on flat internal state.

    x       : (B, H, W, Cx) float        (cast to bf16 for the MXU)
    h_flat  : (B, H*W, hid) bf16
    c_flat  : (B, H*W, hid) f32
    returns (h_flat_next bf16, c_flat_next f32)
    """
    kh, kw = kernel_size
    assert kh % 2 == 1 and kw % 2 == 1, "PyTorch-'same' padding assumes odd kernels"
    B, H, W, Cx = x.shape
    hid = c_flat.shape[-1]
    n_taps, cin, out_ch = w_taps.shape
    assert n_taps == kh * kw and cin == Cx + hid and out_ch == 4 * hid
    ph, pw = kh // 2, kw // 2

    # Padded combined input (~1x traffic); built fresh each step, fused by XLA.
    comb = jnp.concatenate(
        [x.astype(jnp.bfloat16),
         h_flat.reshape(B, H, W, hid).astype(jnp.bfloat16)], axis=-1)
    comb_p = jnp.pad(comb, ((0, 0), (ph, ph), (pw, pw), (0, 0)))

    gb = _pick_batch_group(B, H * W) if batch_group is None else batch_group
    assert B % gb == 0, (B, gb)
    grid = (B // gb,)

    kernel = functools.partial(_conv_lstm_cell_kernel, gb=gb, H=H, W=W,
                               hid=hid, kh=kh, kw=kw)
    h_next, c_next = pl.pallas_call(
        kernel,
        grid=grid,
        in_specs=[
            pl.BlockSpec((gb, H + 2 * ph, W + 2 * pw, cin),
                         lambda i: (i, 0, 0, 0)),                 # combined input
            pl.BlockSpec((n_taps, cin, out_ch), lambda i: (0, 0, 0)),  # weight (resident)
            pl.BlockSpec((1, out_ch), lambda i: (0, 0)),               # bias   (resident)
            pl.BlockSpec((gb, H * W, hid), lambda i: (i, 0, 0)),       # c
        ],
        out_specs=(
            pl.BlockSpec((gb, H * W, hid), lambda i: (i, 0, 0)),       # h_next (bf16)
            pl.BlockSpec((gb, H * W, hid), lambda i: (i, 0, 0)),       # c_next (f32)
        ),
        out_shape=(jax.ShapeDtypeStruct((B, H * W, hid), jnp.bfloat16),
                   jax.ShapeDtypeStruct((B, H * W, hid), jnp.float32)),
        input_output_aliases={3: 1},                   # c_in buffer -> c_next
        compiler_params=pltpu.CompilerParams(
            dimension_semantics=("parallel",),
            vmem_limit_bytes=32 * 1024 * 1024),        # safe on v5e/v6e/v7x
        interpret=interpret,
    )(comb_p, w_taps, b2, c_flat)
    return h_next, c_next


def conv_lstm_cell_nhwc(x, h, c, w_taps, b2, kernel_size, *, batch_group=None,
                        interpret=False):
    """ConvLSTMCell step in NHWC layout; returns f32 (B, H, W, hid) states."""
    B, H, W, _ = x.shape
    hid = h.shape[-1]
    h_flat = h.reshape(B, H * W, hid).astype(jnp.bfloat16)
    c_flat = c.reshape(B, H * W, hid).astype(jnp.float32)
    h_next, c_next = _conv_lstm_step_flat(
        x, h_flat, c_flat, w_taps, b2, kernel_size,
        batch_group=batch_group, interpret=interpret)
    return (h_next.reshape(B, H, W, hid).astype(jnp.float32),
            c_next.reshape(B, H, W, hid))


def conv_lstm_cell(input_tensor, cur_state, weight, bias, kernel_size):
    """ConvLSTMCell.forward with PyTorch NCHW tensors.

    input_tensor : (B, Cx, H, W);  cur_state = (h, c) each (B, hid, H, W)
    weight : (4*hid, Cx+hid, KH, KW);  bias : (4*hid,)
    returns (h_next, c_next) in NCHW, f32.
    """
    h_cur, c_cur = cur_state
    w_taps, b2 = prepare_conv_lstm_params(weight, bias)
    x = jnp.transpose(input_tensor, (0, 2, 3, 1))
    h = jnp.transpose(h_cur, (0, 2, 3, 1))
    c = jnp.transpose(c_cur, (0, 2, 3, 1))
    h_next, c_next = conv_lstm_cell_nhwc(x, h, c, w_taps, b2, kernel_size)
    return (jnp.transpose(h_next, (0, 3, 1, 2)),
            jnp.transpose(c_next, (0, 3, 1, 2)))


def conv_lstm_rollout(x_seq, h0, c0, weight, bias, kernel_size):
    """Recurrent rollout: weight relayout hoisted once, timesteps via lax.scan.

    x_seq : (T, B, Cx, H, W);  h0, c0 : (B, hid, H, W)
    returns stacked hidden states (T, B, hid, H, W) f32.
    """
    w_taps, b2 = prepare_conv_lstm_params(weight, bias)     # relayout ONCE
    T, B, _, H, W = x_seq.shape
    hid = h0.shape[1]
    x_nhwc = jnp.transpose(x_seq, (0, 1, 3, 4, 2))
    h_flat = jnp.transpose(h0, (0, 2, 3, 1)).reshape(B, H * W, hid).astype(jnp.bfloat16)
    c_flat = jnp.transpose(c0, (0, 2, 3, 1)).reshape(B, H * W, hid).astype(jnp.float32)

    def step(carry, x_t):
        h, c = carry
        h, c = _conv_lstm_step_flat(x_t, h, c, w_taps, b2, kernel_size)
        return (h, c), h

    _, hs = jax.lax.scan(step, (h_flat, c_flat), x_nhwc)
    hs = hs.reshape(T, B, H, W, hid).astype(jnp.float32)
    return jnp.transpose(hs, (0, 1, 4, 2, 3))


def conv_lstm_cell_reference(input_tensor, cur_state, weight, bias, kernel_size):
    """Pure-JAX f32 reference mirroring the PyTorch module exactly."""
    h_cur, c_cur = cur_state
    KH, KW = kernel_size
    combined = jnp.concatenate([input_tensor, h_cur], axis=1)
    conv = jax.lax.conv_general_dilated(
        combined, weight, window_strides=(1, 1),
        padding=((KH // 2, KH // 2), (KW // 2, KW // 2)),
        dimension_numbers=("NCHW", "OIHW", "NCHW"))
    conv = conv + bias.reshape(1, -1, 1, 1)
    cc_i, cc_f, cc_o, cc_g = jnp.split(conv, 4, axis=1)
    i = jax.nn.sigmoid(cc_i)
    f = jax.nn.sigmoid(cc_f)
    o = jax.nn.sigmoid(cc_o)
    g = jnp.tanh(cc_g)
    c_next = f * c_cur + i * g
    h_next = o * jnp.tanh(c_next)
    return h_next, c_next


if __name__ == "__main__":
    B, C, H, W = 2, 4, 16, 16
    hidden_dim = 32                       # 4*hid = 128 -> lane-dense conv/gates
    kernel_size = (3, 3)

    key = jax.random.PRNGKey(0)
    k_x, k_h, k_c, k_w, k_b, k_s = jax.random.split(key, 6)
    x = jax.random.normal(k_x, (B, C, H, W), jnp.float32)
    h0 = jax.random.normal(k_h, (B, hidden_dim, H, W), jnp.float32)  # mode='random'
    c0 = jax.random.normal(k_c, (B, hidden_dim, H, W), jnp.float32)

    cin = C + hidden_dim
    fan_in = cin * kernel_size[0] * kernel_size[1]
    bound = 1.0 / (fan_in ** 0.5)
    weight = jax.random.uniform(k_w, (4 * hidden_dim, cin, *kernel_size),
                                jnp.float32, -bound, bound)
    bias = jax.random.uniform(k_b, (4 * hidden_dim,), jnp.float32, -bound, bound)

    # --- single ConvLSTMCell step through the Pallas kernel ---
    cell = jax.jit(conv_lstm_cell, static_argnums=(4,))
    h1, c1 = jax.block_until_ready(cell(x, (h0, c0), weight, bias, kernel_size))
    assert h1.shape == (B, hidden_dim, H, W), h1.shape
    assert c1.shape == (B, hidden_dim, H, W), c1.shape

    # pure-JAX f32 reference (bf16 MXU operands + bf16 h output -> loose tol)
    h_ref, c_ref = conv_lstm_cell_reference(x, (h0, c0), weight, bias, kernel_size)
    assert jnp.allclose(h1, h_ref, atol=4e-2, rtol=4e-2), \
        float(jnp.max(jnp.abs(h1 - h_ref)))
    assert jnp.allclose(c1, c_ref, atol=4e-2, rtol=4e-2), \
        float(jnp.max(jnp.abs(c1 - c_ref)))

    # --- exercise the grouped-batch path explicitly (whole batch per block) ---
    w_taps, b2 = prepare_conv_lstm_params(weight, bias)
    h2, c2 = conv_lstm_cell_nhwc(
        jnp.transpose(x, (0, 2, 3, 1)), jnp.transpose(h0, (0, 2, 3, 1)),
        jnp.transpose(c0, (0, 2, 3, 1)), w_taps, b2, kernel_size, batch_group=2)
    h2 = jnp.transpose(h2, (0, 3, 1, 2))
    assert jnp.allclose(h2, h_ref, atol=4e-2, rtol=4e-2)

    # --- short recurrent rollout: hoisted relayout + lax.scan over the cell ---
    T = 8
    xs = jax.random.normal(k_s, (T, B, C, H, W), jnp.float32)
    hs = jax.block_until_ready(
        jax.jit(conv_lstm_rollout, static_argnums=(5,))(
            xs, h0, c0, weight, bias, kernel_size))
    assert hs.shape == (T, B, hidden_dim, H, W), hs.shape
    assert bool(jnp.all(jnp.isfinite(hs)))

    print("KERNEL_OK")
</pallas_src>

<mosaic_0001>
module attributes {stable_mosaic.version = 11 : i64} {
  func.func @_conv_lstm_cell_kernel(%arg0: i32, %arg1: memref<1x18x18x36xbf16, #tpu.memory_space<vmem>>, %arg2: memref<9x36x128xbf16, #tpu.memory_space<vmem>>, %arg3: memref<1x128xf32, #tpu.memory_space<vmem>>, %arg4: memref<1x256x32xf32, #tpu.memory_space<vmem>>, %arg5: memref<1x256x32xbf16, #tpu.memory_space<vmem>>, %arg6: memref<1x256x32xf32, #tpu.memory_space<vmem>>) attributes {dimension_semantics = [#tpu.dimension_semantics<parallel>], iteration_bounds = array<i64: 2>, scalar_prefetch = 0 : i64, scratch_operands = 0 : i64, tpu.core_type = #tpu.core_type<tc>, window_params = [{transform_indices = @transform_0, window_bounds = array<i64: 1, 18, 18, 36>}, {pipeline_mode = #tpu.pipeline_mode<synchronous>, transform_indices = @transform_1, window_bounds = array<i64: 9, 36, 128>}, {pipeline_mode = #tpu.pipeline_mode<synchronous>, transform_indices = @transform_2, window_bounds = array<i64: 1, 128>}, {transform_indices = @transform_3, window_bounds = array<i64: 1, 256, 32>}, {transform_indices = @transform_4, window_bounds = array<i64: 1, 256, 32>}, {transform_indices = @transform_5, window_bounds = array<i64: 1, 256, 32>}]} {
    %cst = arith.constant 0.000000e+00 : f32
    %0 = vector.broadcast %cst : f32 to vector<256x128xf32>
    %c0 = arith.constant 0 : index
    %c0_0 = arith.constant 0 : index
    %c0_1 = arith.constant 0 : index
    %c0_2 = arith.constant 0 : index
    %1 = vector.load %arg1[%c0, %c0_0, %c0_1, %c0_2] : memref<1x18x18x36xbf16, #tpu.memory_space<vmem>>, vector<1x16x16x36xbf16>
    %2 = vector.shape_cast %1 : vector<1x16x16x36xbf16> to vector<256x36xbf16>
    %c0_3 = arith.constant 0 : index
    %c0_4 = arith.constant 0 : index
    %c0_5 = arith.constant 0 : index
    %3 = vector.load %arg2[%c0_3, %c0_4, %c0_5] : memref<9x36x128xbf16, #tpu.memory_space<vmem>>, vector<1x36x128xbf16>
    %4 = vector.shape_cast %3 : vector<1x36x128xbf16> to vector<36x128xbf16>
    %cst_6 = arith.constant dense<0.000000e+00> : vector<256x128xf32>
    %5 = tpu.matmul %2, %4, %cst_6 {dimension_numbers = #tpu.dot_dimension_numbers<[1], [0], [0], [1], [0, 0, 1, 1], [], []>} : vector<256x36xbf16>, vector<36x128xbf16>, vector<256x128xf32> -> vector<256x128xf32>
    %6 = arith.addf %0, %5 : vector<256x128xf32>
    %c0_7 = arith.constant 0 : index
    %c0_8 = arith.constant 0 : index
    %c1 = arith.constant 1 : index
    %c0_9 = arith.constant 0 : index
    %7 = vector.load %arg1[%c0_7, %c0_8, %c1, %c0_9] : memref<1x18x18x36xbf16, #tpu.memory_space<vmem>>, vector<1x16x16x36xbf16>
    %8 = vector.shape_cast %7 : vector<1x16x16x36xbf16> to vector<256x36xbf16>
    %c1_10 = arith.constant 1 : index
    %c0_11 = arith.constant 0 : index
    %c0_12 = arith.constant 0 : index
    %9 = vector.load %arg2[%c1_10, %c0_11, %c0_12] : memref<9x36x128xbf16, #tpu.memory_space<vmem>>, vector<1x36x128xbf16>
    %10 = vector.shape_cast %9 : vector<1x36x128xbf16> to vector<36x128xbf16>
    %cst_13 = arith.constant dense<0.000000e+00> : vector<256x128xf32>
    %11 = tpu.matmul %8, %10, %cst_13 {dimension_numbers = #tpu.dot_dimension_numbers<[1], [0], [0], [1], [0, 0, 1, 1], [], []>} : vector<256x36xbf16>, vector<36x128xbf16>, vector<256x128xf32> -> vector<256x128xf32>
    %12 = arith.addf %6, %11 : vector<256x128xf32>
    %c0_14 = arith.constant 0 : index
    %c0_15 = arith.constant 0 : index
    %c2 = arith.constant 2 : index
    %c0_16 = arith.constant 0 : index
    %13 = vector.load %arg1[%c0_14, %c0_15, %c2, %c0_16] : memref<1x18x18x36xbf16, #tpu.memory_space<vmem>>, vector<1x16x16x36xbf16>
    %14 = vector.shape_cast %13 : vector<1x16x16x36xbf16> to vector<256x36xbf16>
    %c2_17 = arith.constant 2 : index
    %c0_18 = arith.constant 0 : index
    %c0_19 = arith.constant 0 : index
    %15 = vector.load %arg2[%c2_17, %c0_18, %c0_19] : memref<9x36x128xbf16, #tpu.memory_space<vmem>>, vector<1x36x128xbf16>
    %16 = vector.shape_cast %15 : vector<1x36x128xbf16> to vector<36x128xbf16>
    %cst_20 = arith.constant dense<0.000000e+00> : vector<256x128xf32>
    %17 = tpu.matmul %14, %16, %cst_20 {dimension_numbers = #tpu.dot_dimension_numbers<[1], [0], [0], [1], [0, 0, 1, 1], [], []>} : vector<256x36xbf16>, vector<36x128xbf16>, vector<256x128xf32> -> vector<256x128xf32>
    %18 = arith.addf %12, %17 : vector<256x128xf32>
    %c0_21 = arith.constant 0 : index
    %c1_22 = arith.constant 1 : index
    %c0_23 = arith.constant 0 : index
    %c0_24 = arith.constant 0 : index
    %19 = vector.load %arg1[%c0_21, %c1_22, %c0_23, %c0_24] : memref<1x18x18x36xbf16, #tpu.memory_space<vmem>>, vector<1x16x16x36xbf16>
    %20 = vector.shape_cast %19 : vector<1x16x16x36xbf16> to vector<256x36xbf16>
    %c3 = arith.constant 3 : index
    %c0_25 = arith.constant 0 : index
    %c0_26 = arith.constant 0 : index
    %21 = vector.load %arg2[%c3, %c0_25, %c0_26] : memref<9x36x128xbf16, #tpu.memory_space<vmem>>, vector<1x36x128xbf16>
    %22 = vector.shape_cast %21 : vector<1x36x128xbf16> to vector<36x128xbf16>
    %cst_27 = arith.constant dense<0.000000e+00> : vector<256x128xf32>
    %23 = tpu.matmul %20, %22, %cst_27 {dimension_numbers = #tpu.dot_dimension_numbers<[1], [0], [0], [1], [0, 0, 1, 1], [], []>} : vector<256x36xbf16>, vector<36x128xbf16>, vector<256x128xf32> -> vector<256x128xf32>
    %24 = arith.addf %18, %23 : vector<256x128xf32>
    %c0_28 = arith.constant 0 : index
    %c1_29 = arith.constant 1 : index
    %c1_30 = arith.constant 1 : index
    %c0_31 = arith.constant 0 : index
    %25 = vector.load %arg1[%c0_28, %c1_29, %c1_30, %c0_31] : memref<1x18x18x36xbf16, #tpu.memory_space<vmem>>, vector<1x16x16x36xbf16>
    %26 = vector.shape_cast %25 : vector<1x16x16x36xbf16> to vector<256x36xbf16>
    %c4 = arith.constant 4 : index
    %c0_32 = arith.constant 0 : index
    %c0_33 = arith.constant 0 : index
    %27 = vector.load %arg2[%c4, %c0_32, %c0_33] : memref<9x36x128xbf16, #tpu.memory_space<vmem>>, vector<1x36x128xbf16>
    %28 = vector.shape_cast %27 : vector<1x36x128xbf16> to vector<36x128xbf16>
    %cst_34 = arith.constant dense<0.000000e+00> : vector<256x128xf32>
    %29 = tpu.matmul %26, %28, %cst_34 {dimension_numbers = #tpu.dot_dimension_numbers<[1], [0], [0], [1], [0, 0, 1, 1], [], []>} : vector<256x36xbf16>, vector<36x128xbf16>, vector<256x128xf32> -> vector<256x128xf32>
    %30 = arith.addf %24, %29 : vector<256x128xf32>
    %c0_35 = arith.constant 0 : index
    %c1_36 = arith.constant 1 : index
    %c2_37 = arith.constant 2 : index
    %c0_38 = arith.constant 0 : index
    %31 = vector.load %arg1[%c0_35, %c1_36, %c2_37, %c0_38] : memref<1x18x18x36xbf16, #tpu.memory_space<vmem>>, vector<1x16x16x36xbf16>
    %32 = vector.shape_cast %31 : vector<1x16x16x36xbf16> to vector<256x36xbf16>
    %c5 = arith.constant 5 : index
    %c0_39 = arith.constant 0 : index
    %c0_40 = arith.constant 0 : index
    %33 = vector.load %arg2[%c5, %c0_39, %c0_40] : memref<9x36x128xbf16, #tpu.memory_space<vmem>>, vector<1x36x128xbf16>
    %34 = vector.shape_cast %33 : vector<1x36x128xbf16> to vector<36x128xbf16>
    %cst_41 = arith.constant dense<0.000000e+00> : vector<256x128xf32>
    %35 = tpu.matmul %32, %34, %cst_41 {dimension_numbers = #tpu.dot_dimension_numbers<[1], [0], [0], [1], [0, 0, 1, 1], [], []>} : vector<256x36xbf16>, vector<36x128xbf16>, vector<256x128xf32> -> vector<256x128xf32>
    %36 = arith.addf %30, %35 : vector<256x128xf32>
    %c0_42 = arith.constant 0 : index
    %c2_43 = arith.constant 2 : index
    %c0_44 = arith.constant 0 : index
    %c0_45 = arith.constant 0 : index
    %37 = vector.load %arg1[%c0_42, %c2_43, %c0_44, %c0_45] : memref<1x18x18x36xbf16, #tpu.memory_space<vmem>>, vector<1x16x16x36xbf16>
    %38 = vector.shape_cast %37 : vector<1x16x16x36xbf16> to vector<256x36xbf16>
    %c6 = arith.constant 6 : index
    %c0_46 = arith.constant 0 : index
    %c0_47 = arith.constant 0 : index
    %39 = vector.load %arg2[%c6, %c0_46, %c0_47] : memref<9x36x128xbf16, #tpu.memory_space<vmem>>, vector<1x36x128xbf16>
    %40 = vector.shape_cast %39 : vector<1x36x128xbf16> to vector<36x128xbf16>
    %cst_48 = arith.constant dense<0.000000e+00> : vector<256x128xf32>
    %41 = tpu.matmul %38, %40, %cst_48 {dimension_numbers = #tpu.dot_dimension_numbers<[1], [0], [0], [1], [0, 0, 1, 1], [], []>} : vector<256x36xbf16>, vector<36x128xbf16>, vector<256x128xf32> -> vector<256x128xf32>
    %42 = arith.addf %36, %41 : vector<256x128xf32>
    %c0_49 = arith.constant 0 : index
    %c2_50 = arith.constant 2 : index
    %c1_51 = arith.constant 1 : index
    %c0_52 = arith.constant 0 : index
    %43 = vector.load %arg1[%c0_49, %c2_50, %c1_51, %c0_52] : memref<1x18x18x36xbf16, #tpu.memory_space<vmem>>, vector<1x16x16x36xbf16>
    %44 = vector.shape_cast %43 : vector<1x16x16x36xbf16> to vector<256x36xbf16>
    %c7 = arith.constant 7 : index
    %c0_53 = arith.constant 0 : index
    %c0_54 = arith.constant 0 : index
    %45 = vector.load %arg2[%c7, %c0_53, %c0_54] : memref<9x36x128xbf16, #tpu.memory_space<vmem>>, vector<1x36x128xbf16>
    %46 = vector.shape_cast %45 : vector<1x36x128xbf16> to vector<36x128xbf16>
    %cst_55 = arith.constant dense<0.000000e+00> : vector<256x128xf32>
    %47 = tpu.matmul %44, %46, %cst_55 {dimension_numbers = #tpu.dot_dimension_numbers<[1], [0], [0], [1], [0, 0, 1, 1], [], []>} : vector<256x36xbf16>, vector<36x128xbf16>, vector<256x128xf32> -> vector<256x128xf32>
    %48 = arith.addf %42, %47 : vector<256x128xf32>
    %c0_56 = arith.constant 0 : index
    %c2_57 = arith.constant 2 : index
    %c2_58 = arith.constant 2 : index
    %c0_59 = arith.constant 0 : index
    %49 = vector.load %arg1[%c0_56, %c2_57, %c2_58, %c0_59] : memref<1x18x18x36xbf16, #tpu.memory_space<vmem>>, vector<1x16x16x36xbf16>
    %50 = vector.shape_cast %49 : vector<1x16x16x36xbf16> to vector<256x36xbf16>
    %c8 = arith.constant 8 : index
    %c0_60 = arith.constant 0 : index
    %c0_61 = arith.constant 0 : index
    %51 = vector.load %arg2[%c8, %c0_60, %c0_61] : memref<9x36x128xbf16, #tpu.memory_space<vmem>>, vector<1x36x128xbf16>
    %52 = vector.shape_cast %51 : vector<1x36x128xbf16> to vector<36x128xbf16>
    %cst_62 = arith.constant dense<0.000000e+00> : vector<256x128xf32>
    %53 = tpu.matmul %50, %52, %cst_62 {dimension_numbers = #tpu.dot_dimension_numbers<[1], [0], [0], [1], [0, 0, 1, 1], [], []>} : vector<256x36xbf16>, vector<36x128xbf16>, vector<256x128xf32> -> vector<256x128xf32>
    %54 = arith.addf %48, %53 : vector<256x128xf32>
    %c0_63 = arith.constant 0 : index
    %c0_64 = arith.constant 0 : index
    %55 = vector.load %arg3[%c0_63, %c0_64] : memref<1x128xf32, #tpu.memory_space<vmem>>, vector<1x128xf32>
    %56 = vector.broadcast %55 : vector<1x128xf32> to vector<256x128xf32>
    %57 = arith.addf %54, %56 : vector<256x128xf32>
    %58 = arith.negf %57 : vector<256x128xf32>
    %59 = math.exp %58 : vector<256x128xf32>
    %cst_65 = arith.constant 1.000000e+00 : f32
    %60 = vector.broadcast %cst_65 : f32 to vector<256x128xf32>
    %61 = arith.addf %60, %59 : vector<256x128xf32>
    %62 = arith.divf %60, %61 : vector<256x128xf32>
    %63 = vector.extract_strided_slice %62 {offsets = [0, 0], sizes = [256, 32], strides = [1, 1]} : vector<256x128xf32> to vector<256x32xf32>
    %64 = vector.extract_strided_slice %62 {offsets = [0, 32], sizes = [256, 32], strides = [1, 1]} : vector<256x128xf32> to vector<256x32xf32>
    %65 = vector.extract_strided_slice %62 {offsets = [0, 64], sizes = [256, 32], strides = [1, 1]} : vector<256x128xf32> to vector<256x32xf32>
    %66 = vector.extract_strided_slice %57 {offsets = [0, 96], sizes = [256, 32], strides = [1, 1]} : vector<256x128xf32> to vector<256x32xf32>
    %67 = math.tanh %66 : vector<256x32xf32>
    %c0_66 = arith.constant 0 : index
    %c0_67 = arith.constant 0 : index
    %c0_68 = arith.constant 0 : index
    %68 = vector.load %arg4[%c0_66, %c0_67, %c0_68] : memref<1x256x32xf32, #tpu.memory_space<vmem>>, vector<1x256x32xf32>
    %69 = vector.shape_cast %68 : vector<1x256x32xf32> to vector<256x32xf32>
    %70 = arith.mulf %64, %69 : vector<256x32xf32>
    %71 = arith.mulf %63, %67 : vector<256x32xf32>
    %72 = arith.addf %70, %71 : vector<256x32xf32>
    %73 = math.tanh %72 : vector<256x32xf32>
    %74 = arith.mulf %65, %73 : vector<256x32xf32>
    %75 = arith.truncf %74 : vector<256x32xf32> to vector<256x32xbf16>
    %76 = vector.shape_cast %75 : vector<256x32xbf16> to vector<1x256x32xbf16>
    %c0_69 = arith.constant 0 : index
    %c0_70 = arith.constant 0 : index
    %c0_71 = arith.constant 0 : index
    %77 = vector.load %arg5[%c0_69, %c0_70, %c0_71] : memref<1x256x32xbf16, #tpu.memory_space<vmem>>, vector<1x256x32xbf16>
    tpu.vector_store %arg5[%c0_69, %c0_70, %c0_71], %76 {strides = array<i32>} : memref<1x256x32xbf16, #tpu.memory_space<vmem>>, vector<1x256x32xbf16>,
    %78 = vector.shape_cast %72 : vector<256x32xf32> to vector<1x256x32xf32>
    %c0_72 = arith.constant 0 : index
    %c0_73 = arith.constant 0 : index
    %c0_74 = arith.constant 0 : index
    %79 = vector.load %arg6[%c0_72, %c0_73, %c0_74] : memref<1x256x32xf32, #tpu.memory_space<vmem>>, vector<1x256x32xf32>
    tpu.vector_store %arg6[%c0_72, %c0_73, %c0_74], %78 {strides = array<i32>} : memref<1x256x32xf32, #tpu.memory_space<vmem>>, vector<1x256x32xf32>,
    return
  }
  func.func @transform_0(%arg0: i32) -> (i32, i32, i32, i32) {
    %c0_i32 = arith.constant 0 : i32
    %c0_i32_0 = arith.constant 0 : i32
    %c0_i32_1 = arith.constant 0 : i32
    %c0_i32_2 = arith.constant 0 : i32
    return %arg0, %c0_i32, %c0_i32_0, %c0_i32_1 : i32, i32, i32, i32
  }
  func.func @transform_1(%arg0: i32) -> (i32, i32, i32) {
    %c0_i32 = arith.constant 0 : i32
    %c0_i32_0 = arith.constant 0 : i32
    %c0_i32_1 = arith.constant 0 : i32
    %c0_i32_2 = arith.constant 0 : i32
    return %c0_i32, %c0_i32_0, %c0_i32_1 : i32, i32, i32
  }
  func.func @transform_2(%arg0: i32) -> (i32, i32) {
    %c0_i32 = arith.constant 0 : i32
    %c0_i32_0 = arith.constant 0 : i32
    %c0_i32_1 = arith.constant 0 : i32
    return %c0_i32, %c0_i32_0 : i32, i32
  }
  func.func @transform_3(%arg0: i32) -> (i32, i32, i32) {
    %c0_i32 = arith.constant 0 : i32
    %c0_i32_0 = arith.constant 0 : i32
    %c0_i32_1 = arith.constant 0 : i32
    return %arg0, %c0_i32, %c0_i32_0 : i32, i32, i32
  }
  func.func @transform_4(%arg0: i32) -> (i32, i32, i32) {
    %c0_i32 = arith.constant 0 : i32
    %c0_i32_0 = arith.constant 0 : i32
    %c0_i32_1 = arith.constant 0 : i32
    return %arg0, %c0_i32, %c0_i32_0 : i32, i32, i32
  }
  func.func @transform_5(%arg0: i32) -> (i32, i32, i32) {
    %c0_i32 = arith.constant 0 : i32
    %c0_i32_0 = arith.constant 0 : i32
    %c0_i32_1 = arith.constant 0 : i32
    return %arg0, %c0_i32, %c0_i32_0 : i32, i32, i32
  }
}

</mosaic_0001>

<llo_original>
// kernel: conv_lstm_cell.1
$region0: #{conv_lstm_cell.1}
  #allocation0 [shape = 'u32[]', space=smem, size = 0x4, offset = 0x4, fixed_abs, tag = 'smem constant byte address 0x4 - core index']
  #allocation1 [shape = 'u32[144,128]{1,0:T(1,128)}', space=vmem, size = 0x12000, scoped, tag = 'internal scratch']
  %s0 = inlined_call_operand.vmem [shape: bf16[2,18,18,36], index: 0, kind: input, shape index: {}]
  %s1 = inlined_call_operand.vmem [shape: bf16[9,36,128], index: 1, kind: input, shape index: {}]
  %s2 = inlined_call_operand.vmem [shape: f32[1,128], index: 2, kind: input, shape index: {}]
  %s3 = inlined_call_operand.vmem [shape: f32[2,256,32], index: 3, kind: input, shape index: {}, may-alias: {3,5}]
  %s4 = inlined_call_operand.vmem [shape: bf16[2,256,32], index: 4, kind: output, shape index: {0}]
  %s5 = inlined_call_operand.vmem [shape: f32[2,256,32], index: 5, kind: output, shape index: {1}, may-alias: {3,5}]
  %6 = xla_tuple %s4, %s5
  %s7 = sld [smem:[#allocation0]]
  $region57: #{conv_lstm_cell.1} parent=0
    _
  %s9 = ssub.s32 1, %s7
  %s10 = scalar_select 0, %s9, %s7
  loop: start=0, step=1, limit=4
  $region2: #{conv_lstm_cell.1} parent=0 // loop_pre_header
    _
  $region3: #{conv_lstm_cell.1} parent=0 // loop_header
    %s12 = sphi 0, %s16
    %p13 = scmp.ge.s32.totalorder %s12, 4
    %s22 = sphi 0, %s24
    %s25 = sphi 0, %s22
    %s26 = sphi 0, %s25
    %s42 = sphi 0, %s26
    %s46 = sphi 0, %s46
    %s48 = sphi 0, %s46
    %s49 = sphi 0, %s48
    %s63 = sphi 0, %s49
    %s67 = sphi 0, %s67
    %s69 = sphi 0, %s67
    %s70 = sphi 0, %s69
    %s84 = sphi 0, %s70
    %s90 = sphi 0, %s92
    %s93 = sphi 0, %s90
    %s94 = sphi 0, %s93
    %s110 = sphi 0, %s94
    %s116 = sphi 0, %s118
    %s119 = sphi 0, %s116
    %s120 = sphi 0, %s119
    %s136 = sphi 0, %s120
    %s142 = sphi 0, %s144
    %s145 = sphi 0, %s142
    %s146 = sphi 0, %s145
    %s162 = sphi 0, %s146
  $region4: #{conv_lstm_cell.1} parent=0 // loop_header_branch
    %15 = sbr.rel (%p13) target = $region8
  $region5: #{conv_lstm_cell.1} parent=0 // loop_body
    %s17 = ssub.s32 %s12, 1
    %s18 = ssub.s32 %s12, 2
    %s19 = sadd.s32 %s12, 1
    %s20 = ssub.s32 %s12, %s19
    %p21 = scmp.eq.s32.totalorder %s20, 0
    %s23 = sadd.s32 %s22, 1
    %s24 = scalar_select %p21, %s22, %s23
    %p27 = pneg %p21
    %p28 = scmp.eq.s32.totalorder %s12, 1
    %p29 = por %p27, %p28
    %p30 = scmp.ne.s32.totalorder %s22, %s25
    %p31 = scmp.eq.s32.totalorder %s12, 0
    %p32 = por %p30, %p31
    %p33 = scmp.ne.s32.totalorder %s22, %s25
    %p34 = scmp.eq.s32.totalorder %s17, 1
    %p35 = por %p33, %p34
    %p36 = scmp.ne.s32.totalorder %s25, %s26
    %p37 = scmp.eq.s32.totalorder %s17, 0
    %p38 = por %p36, %p37
    %p39 = scmp.ne.s32.totalorder %s25, %s26
    %p40 = scmp.eq.s32.totalorder %s18, 1
    %p41 = por %p39, %p40
    %p43 = scmp.ne.s32.totalorder %s26, %s42
    %p44 = scmp.eq.s32.totalorder %s18, 0
    %p45 = por %p43, %p44
    %s47 = sadd.s32 %s46, 1
    %p50 = scmp.eq.s32.totalorder %s12, 1
    %p51 = scmp.ne.s32.totalorder %s46, %s48
    %p52 = scmp.eq.s32.totalorder %s12, 0
    %p53 = por %p51, %p52
    %p54 = scmp.ne.s32.totalorder %s46, %s48
    %p55 = scmp.eq.s32.totalorder %s17, 1
    %p56 = por %p54, %p55
    %p57 = scmp.ne.s32.totalorder %s48, %s49
    %p58 = scmp.eq.s32.totalorder %s17, 0
    %p59 = por %p57, %p58
    %p60 = scmp.ne.s32.totalorder %s48, %s49
    %p61 = scmp.eq.s32.totalorder %s18, 1
    %p62 = por %p60, %p61
    %p64 = scmp.ne.s32.totalorder %s49, %s63
    %p65 = scmp.eq.s32.totalorder %s18, 0
    %p66 = por %p64, %p65
    %s68 = sadd.s32 %s67, 1
    %p71 = scmp.eq.s32.totalorder %s12, 1
    %p72 = scmp.ne.s32.totalorder %s67, %s69
    %p73 = scmp.eq.s32.totalorder %s12, 0
    %p74 = por %p72, %p73
    %p75 = scmp.ne.s32.totalorder %s67, %s69
    %p76 = scmp.eq.s32.totalorder %s17, 1
    %p77 = por %p75, %p76
    %p78 = scmp.ne.s32.totalorder %s69, %s70
    %p79 = scmp.eq.s32.totalorder %s17, 0
    %p80 = por %p78, %p79
    %p81 = scmp.ne.s32.totalorder %s69, %s70
    %p82 = scmp.eq.s32.totalorder %s18, 1
    %p83 = por %p81, %p82
    %p85 = scmp.ne.s32.totalorder %s70, %s84
    %p86 = scmp.eq.s32.totalorder %s18, 0
    %p87 = por %p85, %p86
    %s88 = ssub.s32 %s12, %s19
    %p89 = scmp.eq.s32.totalorder %s88, 0
    %s91 = sadd.s32 %s90, 1
    %s92 = scalar_select %p89, %s90, %s91
    %p95 = pneg %p89
    %p96 = scmp.eq.s32.totalorder %s12, 1
    %p97 = por %p95, %p96
    %p98 = scmp.ne.s32.totalorder %s90, %s93
    %p99 = scmp.eq.s32.totalorder %s12, 0
    %p100 = por %p98, %p99
    %p101 = scmp.ne.s32.totalorder %s90, %s93
    %p102 = scmp.eq.s32.totalorder %s17, 1
    %p103 = por %p101, %p102
    %p104 = scmp.ne.s32.totalorder %s93, %s94
    %p105 = scmp.eq.s32.totalorder %s17, 0
    %p106 = por %p104, %p105
    %p107 = scmp.ne.s32.totalorder %s93, %s94
    %p108 = scmp.eq.s32.totalorder %s18, 1
    %p109 = por %p107, %p108
    %p111 = scmp.ne.s32.totalorder %s94, %s110
    %p112 = scmp.eq.s32.totalorder %s18, 0
    %p113 = por %p111, %p112
    %s114 = ssub.s32 %s12, %s19
    %p115 = scmp.eq.s32.totalorder %s114, 0
    %s117 = sadd.s32 %s116, 1
    %s118 = scalar_select %p115, %s116, %s117
    %p121 = pneg %p115
    %p122 = scmp.eq.s32.totalorder %s12, 1
    %p123 = por %p121, %p122
    %p124 = scmp.ne.s32.totalorder %s116, %s119
    %p125 = scmp.eq.s32.totalorder %s12, 0
    %p126 = por %p124, %p125
    %p127 = scmp.ne.s32.totalorder %s116, %s119
    %p128 = scmp.eq.s32.totalorder %s17, 1
    %p129 = por %p127, %p128
    %p130 = scmp.ne.s32.totalorder %s119, %s120
    %p131 = scmp.eq.s32.totalorder %s17, 0
    %p132 = por %p130, %p131
    %p133 = scmp.ne.s32.totalorder %s119, %s120
    %p134 = scmp.eq.s32.totalorder %s18, 1
    %p135 = por %p133, %p134
    %p137 = scmp.ne.s32.totalorder %s120, %s136
    %p138 = scmp.eq.s32.totalorder %s18, 0
    %p139 = por %p137, %p138
    %s140 = ssub.s32 %s12, %s19
    %p141 = scmp.eq.s32.totalorder %s140, 0
    %s143 = sadd.s32 %s142, 1
    %s144 = scalar_select %p141, %s142, %s143
    %p147 = pneg %p141
    %p148 = scmp.eq.s32.totalorder %s12, 1
    %p149 = por %p147, %p148
    %p150 = scmp.ne.s32.totalorder %s142, %s145
    %p151 = scmp.eq.s32.totalorder %s12, 0
    %p152 = por %p150, %p151
    %p153 = scmp.ne.s32.totalorder %s142, %s145
    %p154 = scmp.eq.s32.totalorder %s17, 1
    %p155 = por %p153, %p154
    %p156 = scmp.ne.s32.totalorder %s145, %s146
    %p157 = scmp.eq.s32.totalorder %s17, 0
    %p158 = por %p156, %p157
    %p159 = scmp.ne.s32.totalorder %s145, %s146
    %p160 = scmp.eq.s32.totalorder %s18, 1
    %p161 = por %p159, %p160
    %p163 = scmp.ne.s32.totalorder %s146, %s162
    %p164 = scmp.eq.s32.totalorder %s18, 0
    %p165 = por %p163, %p164
    %p166 = scmp.le.s32.totalorder 1, %s12
    %p167 = scmp.lt.s32.totalorder %s12, 3
    %p168 = pnand %p166, %p167
    %p169 = pneg %p168
    // Predicated region
    $region9: #{conv_lstm_cell.1} parent=5 // pred_check
      _
    $region10: #{conv_lstm_cell.1} parent=5 // pred_check_branch
      %171 = sbr.rel (%p168) target = $region12
    $region11: #{conv_lstm_cell.1} parent=5 // pred_region
      %s172 = ssub.s32 %s12, 1
      // Predicated region
      $region13: #{conv_lstm_cell.1} parent=11 // pred_check
        %p173 = pneg %p59
      $region14: #{conv_lstm_cell.1} parent=11 // pred_check_branch
        %175 = sbr.rel (%p173) target = $region16
      $region15: #{conv_lstm_cell.1} parent=11 // pred_region
        _
      $region16: #{conv_lstm_cell.1} parent=11 // pred_fallthru
        _
      // Predicated region
      $region17: #{conv_lstm_cell.1} parent=11 // pred_check
        %p176 = pneg %p80
      $region18: #{conv_lstm_cell.1} parent=11 // pred_check_branch
        %178 = sbr.rel (%p176) target = $region20
      $region19: #{conv_lstm_cell.1} parent=11 // pred_region
        _
      $region20: #{conv_lstm_cell.1} parent=11 // pred_fallthru
        _
    $region12: #{conv_lstm_cell.1} parent=5 // pred_fallthru
      _
    %p179 = scmp.lt.s32.totalorder %s12, 2
    // Predicated region
    $region21: #{conv_lstm_cell.1} parent=5 // pred_check
      %p180 = pneg %p179
    $region22: #{conv_lstm_cell.1} parent=5 // pred_check_branch
      %182 = sbr.rel (%p180) target = $region24
    $region23: #{conv_lstm_cell.1} parent=5 // pred_region
      // Predicated region
      $region25: #{conv_lstm_cell.1} parent=23 // pred_check
        %p183 = pneg %p32
      $region26: #{conv_lstm_cell.1} parent=23 // pred_check_branch
        %185 = sbr.rel (%p183) target = $region28
      $region27: #{conv_lstm_cell.1} parent=23 // pred_region
        %p186 = scmp.lt.s32.totalorder %s12, 1
        %s187 = scalar_select %p186, %s12, 1
        %s188 = smul.addr %s187, 54
        %s189 = smul.addr %s188, 4
        %s190 = scalar_lea.vmem %s0, %s189
      $region28: #{conv_lstm_cell.1} parent=23 // pred_fallthru
        _
      // Predicated region
      $region29: #{conv_lstm_cell.1} parent=23 // pred_check
        %p191 = pneg %p100
      $region30: #{conv_lstm_cell.1} parent=23 // pred_check_branch
        %193 = sbr.rel (%p191) target = $region32
      $region31: #{conv_lstm_cell.1} parent=23 // pred_region
        %p194 = scmp.lt.s32.totalorder %s12, 1
        %s195 = scalar_select %p194, %s12, 1
        %s196 = smul.addr %s195, 32
        %s197 = smul.addr %s196, 8
        %s198 = scalar_lea.vmem %s3, %s197
      $region32: #{conv_lstm_cell.1} parent=23 // pred_fallthru
        _
    $region24: #{conv_lstm_cell.1} parent=5 // pred_fallthru
      _
    %p199 = scmp.le.s32.totalorder 1, %s12
    %p200 = scmp.lt.s32.totalorder %s12, 3
    %p201 = pnand %p199, %p200
    %p202 = pneg %p201
    // Predicated region
    $region33: #{conv_lstm_cell.1} parent=5 // pred_check
      _
    $region34: #{conv_lstm_cell.1} parent=5 // pred_check_branch
      %204 = sbr.rel (%p201) target = $region36
    $region35: #{conv_lstm_cell.1} parent=5 // pred_region
      %s205 = ssub.s32 %s12, 1
      %p206 = scmp.lt.s32.totalorder %s17, 1
      %s207 = scalar_select %p206, %s17, 1
      %s208 = smul.addr %s207, 54
      %s209 = smul.addr %s208, 4
      %s210 = scalar_lea.vmem %s0, %s209
      %p211 = pneg %p38
      %p212 = pneg %p35
      %p213 = pneg %p59
      %p214 = pneg %p56
      %p215 = pneg %p80
      %p216 = pneg %p77
      %p217 = scmp.lt.s32.totalorder %s17, 1
      %s218 = scalar_select %p217, %s17, 1
      %s219 = smul.addr %s218, 32
      %s220 = smul.addr %s219, 8
      %s221 = scalar_lea.vmem %s3, %s220
      %p222 = pneg %p106
      %p223 = pneg %p103
      %p224 = pneg %p132
      %p225 = pneg %p129
      %p226 = scmp.lt.s32.totalorder %s17, 1
      %s227 = scalar_select %p226, %s17, 1
      %s228 = smul.addr %s227, 32
      %s229 = smul.addr %s228, 4
      %s230 = scalar_lea.vmem %s4, %s229
      %p231 = pneg %p158
      %p232 = pneg %p155
      %p233 = scmp.lt.s32.totalorder %s17, 1
      %s234 = scalar_select %p233, %s17, 1
      %s235 = smul.addr %s234, 32
      %s236 = smul.addr %s235, 8
      %s237 = scalar_lea.vmem %s5, %s236
      %p238 = scmp.lt.s32.totalorder %s17, 1
      %s239 = scalar_select %p238, %s17, 1
      %s240 = smul.addr %s239, 54
      %s241 = smul.addr %s240, 4
      %s242 = scalar_lea.vmem %s0, %s241
      %p243 = scmp.lt.s32.totalorder %s17, 1
      %s244 = scalar_select %p243, %s17, 1
      %s245 = smul.addr %s244, 32
      %s246 = smul.addr %s245, 8
      %s247 = scalar_lea.vmem %s3, %s246
      %p248 = scmp.lt.s32.totalorder %s17, 1
      %s249 = scalar_select %p248, %s17, 1
      %s250 = smul.addr %s249, 32
      %s251 = smul.addr %s250, 4
      %s252 = scalar_lea.vmem %s4, %s251
      %p253 = scmp.lt.s32.totalorder %s17, 1
      %s254 = scalar_select %p253, %s17, 1
      %s255 = smul.addr %s254, 32
      %s256 = smul.addr %s255, 8
      %s257 = scalar_lea.vmem %s5, %s256
      %v259 = vld [vmem:[%s242] sm:$0xf]
      %v260 = vld [vmem:[%s242 + $0x4] sm:$0xf]
      %v261 = vld [vmem:[%s242 + $0xc] sm:$0xf]
      %v262 = vld [vmem:[%s242 + $0x10] sm:$0xf]
      %v263 = vld [vmem:[%s242 + $0x18] sm:$0xf]
      %v264 = vld [vmem:[%s242 + $0x1c] sm:$0xf]
      %v265 = vld [vmem:[%s242 + $0x24] sm:$0xf]
      %v266 = vld [vmem:[%s242 + $0x28] sm:$0xf]
      %v267 = vld [vmem:[%s242 + $0x30] sm:$0xf]
      %v268 = vld [vmem:[%s242 + $0x34] sm:$0xf]
      %v269 = vld [vmem:[%s242 + $0x3c] sm:$0xf]
      %v270 = vld [vmem:[%s242 + $0x40] sm:$0xf]
      %v271 = vld [vmem:[%s242 + $0x48] sm:$0xf]
      %v272 = vld [vmem:[%s242 + $0x4c] sm:$0xf]
      %v273 = vld [vmem:[%s242 + $0x54] sm:$0xf]
      %v274 = vld [vmem:[%s242 + $0x58] sm:$0xf]
      %v275 = vld [vmem:[%s242 + $0x60] sm:$0xf]
      %v276 = vld [vmem:[%s242 + $0x64] sm:$0xf]
      %v277 = vld [vmem:[%s242 + $0x6c] sm:$0xf]
      %v278 = vld [vmem:[%s242 + $0x70] sm:$0xf]
      %v279 = vld [vmem:[%s242 + $0x78] sm:$0xf]
      %v280 = vld [vmem:[%s242 + $0x7c] sm:$0xf]
      %v281 = vld [vmem:[%s242 + $0x84] sm:$0xf]
      %v282 = vld [vmem:[%s242 + $0x88] sm:$0xf]
      %v283 = vld [vmem:[%s242 + $0x90] sm:$0xf]
      %v284 = vld [vmem:[%s242 + $0x94] sm:$0xf]
      %v285 = vld [vmem:[%s242 + $0x9c] sm:$0xf]
      %v286 = vld [vmem:[%s242 + $0xa0] sm:$0xf]
      %v287 = vld [vmem:[%s242 + $0xa8] sm:$0xf]
      %v288 = vld [vmem:[%s242 + $0xac] sm:$0xf]
      %v289 = vld [vmem:[%s242 + $0xb4] sm:$0xf]
      %v290 = vld [vmem:[%s242 + $0xb8] sm:$0xf]
      %v291 = vld [vmem:[%s1] sm:$0xf]
      %v292 = vld [vmem:[%s1 + $0x4] sm:$0xf]
      %v293 = vld [vmem:[%s1 + $0x8] sm:$0xf]
      %v294 = vld [vmem:[%s1 + $0xc] sm:$0xf]
      %v295 = vld [vmem:[%s1 + $0x10] sm:$0x3]
      %v296 = vld [vmem:[%s242 + $0x8] sm:$0x1]
      %v297 = vld [vmem:[%s242 + $0x14] sm:$0x1]
      %v298 = vld [vmem:[%s242 + $0x20] sm:$0x1]
      %v299 = vld [vmem:[%s242 + $0x2c] sm:$0x1]
      %v300 = vld [vmem:[%s242 + $0x38] sm:$0x1]
      %v301 = vld [vmem:[%s242 + $0x44] sm:$0x1]
      %v302 = vld [vmem:[%s242 + $0x50] sm:$0x1]
      %v303 = vld [vmem:[%s242 + $0x5c] sm:$0x1]
      %v304 = vld [vmem:[%s242 + $0x68] sm:$0x1]
      %v305 = vld [vmem:[%s242 + $0x74] sm:$0x1]
      %v306 = vld [vmem:[%s242 + $0x80] sm:$0x1]
      %v307 = vld [vmem:[%s242 + $0x8c] sm:$0x1]
      %v308 = vld [vmem:[%s242 + $0x98] sm:$0x1]
      %v309 = vld [vmem:[%s242 + $0xa4] sm:$0x1]
      %v310 = vld [vmem:[%s242 + $0xb0] sm:$0x1]
      %v311 = vld [vmem:[%s242 + $0xbc] sm:$0x1]
      %vm312 = vsmask.f32 3328
      %vm313 = vsmask.f32 7440
      %vm314 = vmor %vm312, %vm313
      %v316 = vshrl.u32 %v259, 16
      %v318 = vrot.slane %v316, 4
      %v319 = vshll.u32 %v259, 16
      %v321 = vrot.slane %v319, 5
      %v322 = vor.u32 %v318, %v321
      %v323 = vrot.slane %v322, 4
      %v325 = vshll.u32 %v260, 16
      %v327 = vrot.slane %v325, 5
      %v328 = vsel %vm314, %v323, %v327
      %v329 = vshrl.u32 %v260, 16
      %v331 = vrot.slane %v329, 4
      %v332 = vor.u32 %v331, %v327
      %v333 = vrot.slane %v332, 4
      %v335 = vshll.u32 %v296, 16
      %v337 = vrot.slane %v335, 5
      %v338 = vsel %vm314, %v333, %v337
      %v340 = vshrl.u32 %v261, 16
      %v342 = vrot.slane %v340, 4
      %v343 = vshll.u32 %v261, 16
      %v345 = vrot.slane %v343, 5
      %v346 = vor.u32 %v342, %v345
      %v347 = vrot.slane %v346, 4
      %v349 = vshll.u32 %v262, 16
      %v351 = vrot.slane %v349, 5
      %v352 = vsel %vm314, %v347, %v351
      %v353 = vshrl.u32 %v262, 16
      %v355 = vrot.slane %v353, 4
      %v356 = vor.u32 %v355, %v351
      %v357 = vrot.slane %v356, 4
      %v359 = vshll.u32 %v297, 16
      %v361 = vrot.slane %v359, 5
      %v362 = vsel %vm314, %v357, %v361
      %v364 = vshrl.u32 %v263, 16
      %v366 = vrot.slane %v364, 4
      %v367 = vshll.u32 %v263, 16
      %v369 = vrot.slane %v367, 5
      %v370 = vor.u32 %v366, %v369
      %v371 = vrot.slane %v370, 4
      %v373 = vshll.u32 %v264, 16
      %v375 = vrot.slane %v373, 5
      %v376 = vsel %vm314, %v371, %v375
      %v377 = vshrl.u32 %v264, 16
      %v379 = vrot.slane %v377, 4
      %v380 = vor.u32 %v379, %v375
      %v381 = vrot.slane %v380, 4
      %v383 = vshll.u32 %v298, 16
      %v385 = vrot.slane %v383, 5
      %v386 = vsel %vm314, %v381, %v385
      %v388 = vshrl.u32 %v265, 16
      %v390 = vrot.slane %v388, 4
      %v391 = vshll.u32 %v265, 16
      %v393 = vrot.slane %v391, 5
      %v394 = vor.u32 %v390, %v393
      %v395 = vrot.slane %v394, 4
      %v397 = vshll.u32 %v266, 16
      %v399 = vrot.slane %v397, 5
      %v400 = vsel %vm314, %v395, %v399
      %v401 = vshrl.u32 %v266, 16
      %v403 = vrot.slane %v401, 4
      %v404 = vor.u32 %v403, %v399
      %v405 = vrot.slane %v404, 4
      %v407 = vshll.u32 %v299, 16
      %v409 = vrot.slane %v407, 5
      %v410 = vsel %vm314, %v405, %v409
      %v412 = vshrl.u32 %v267, 16
      %v414 = vrot.slane %v412, 4
      %v415 = vshll.u32 %v267, 16
      %v417 = vrot.slane %v415, 5
      %v418 = vor.u32 %v414, %v417
      %v419 = vrot.slane %v418, 4
      %v421 = vshll.u32 %v268, 16
      %v423 = vrot.slane %v421, 5
      %v424 = vsel %vm314, %v419, %v423
      %v425 = vshrl.u32 %v268, 16
      %v427 = vrot.slane %v425, 4
      %v428 = vor.u32 %v427, %v423
      %v429 = vrot.slane %v428, 4
      %v431 = vshll.u32 %v300, 16
      %v433 = vrot.slane %v431, 5
      %v434 = vsel %vm314, %v429, %v433
      %v436 = vshrl.u32 %v269, 16
      %v438 = vrot.slane %v436, 4
      %v439 = vshll.u32 %v269, 16
      %v441 = vrot.slane %v439, 5
      %v442 = vor.u32 %v438, %v441
      %v443 = vrot.slane %v442, 4
      %v445 = vshll.u32 %v270, 16
      %v447 = vrot.slane %v445, 5
      %v448 = vsel %vm314, %v443, %v447
      %v449 = vshrl.u32 %v270, 16
      %v451 = vrot.slane %v449, 4
      %v452 = vor.u32 %v451, %v447
      %v453 = vrot.slane %v452, 4
      %v455 = vshll.u32 %v301, 16
      %v457 = vrot.slane %v455, 5
      %v458 = vsel %vm314, %v453, %v457
      %v460 = vshrl.u32 %v271, 16
      %v462 = vrot.slane %v460, 4
      %v463 = vshll.u32 %v271, 16
      %v465 = vrot.slane %v463, 5
      %v466 = vor.u32 %v462, %v465
      %v467 = vrot.slane %v466, 4
      %v469 = vshll.u32 %v272, 16
      %v471 = vrot.slane %v469, 5
      %v472 = vsel %vm314, %v467, %v471
      %v473 = vshrl.u32 %v272, 16
      %v475 = vrot.slane %v473, 4
      %v476 = vor.u32 %v475, %v471
      %v477 = vrot.slane %v476, 4
      %v479 = vshll.u32 %v302, 16
      %v481 = vrot.slane %v479, 5
      %v482 = vsel %vm314, %v477, %v481
      %v484 = vshrl.u32 %v273, 16
      %v486 = vrot.slane %v484, 4
      %v487 = vshll.u32 %v273, 16
      %v489 = vrot.slane %v487, 5
      %v490 = vor.u32 %v486, %v489
      %v491 = vrot.slane %v490, 4
      %v493 = vshll.u32 %v274, 16
      %v495 = vrot.slane %v493, 5
      %v496 = vsel %vm314, %v491, %v495
      %v497 = vshrl.u32 %v274, 16
      %v499 = vrot.slane %v497, 4
      %v500 = vor.u32 %v499, %v495
      %v501 = vrot.slane %v500, 4
      %v503 = vshll.u32 %v303, 16
      %v505 = vrot.slane %v503, 5
      %v506 = vsel %vm314, %v501, %v505
      %v508 = vshrl.u32 %v275, 16
      %v510 = vrot.slane %v508, 4
      %v511 = vshll.u32 %v275, 16
      %v513 = vrot.slane %v511, 5
      %v514 = vor.u32 %v510, %v513
      %v515 = vrot.slane %v514, 4
      %v517 = vshll.u32 %v276, 16
      %v519 = vrot.slane %v517, 5
      %v520 = vsel %vm314, %v515, %v519
      %v521 = vshrl.u32 %v276, 16
      %v523 = vrot.slane %v521, 4
      %v524 = vor.u32 %v523, %v519
      %v525 = vrot.slane %v524, 4
      %v527 = vshll.u32 %v304, 16
      %v529 = vrot.slane %v527, 5
      %v530 = vsel %vm314, %v525, %v529
      %v532 = vshrl.u32 %v277, 16
      %v534 = vrot.slane %v532, 4
      %v535 = vshll.u32 %v277, 16
      %v537 = vrot.slane %v535, 5
      %v538 = vor.u32 %v534, %v537
      %v539 = vrot.slane %v538, 4
      %v541 = vshll.u32 %v278, 16
      %v543 = vrot.slane %v541, 5
      %v544 = vsel %vm314, %v539, %v543
      %v545 = vshrl.u32 %v278, 16
      %v547 = vrot.slane %v545, 4
      %v548 = vor.u32 %v547, %v543
      %v549 = vrot.slane %v548, 4
      %v551 = vshll.u32 %v305, 16
      %v553 = vrot.slane %v551, 5
      %v554 = vsel %vm314, %v549, %v553
      %v556 = vshrl.u32 %v279, 16
      %v558 = vrot.slane %v556, 4
      %v559 = vshll.u32 %v279, 16
      %v561 = vrot.slane %v559, 5
      %v562 = vor.u32 %v558, %v561
      %v563 = vrot.slane %v562, 4
      %v565 = vshll.u32 %v280, 16
      %v567 = vrot.slane %v565, 5
      %v568 = vsel %vm314, %v563, %v567
      %v569 = vshrl.u32 %v280, 16
      %v571 = vrot.slane %v569, 4
      %v572 = vor.u32 %v571, %v567
      %v573 = vrot.slane %v572, 4
      %v575 = vshll.u32 %v306, 16
      %v577 = vrot.slane %v575, 5
      %v578 = vsel %vm314, %v573, %v577
      %v580 = vshrl.u32 %v281, 16
      %v582 = vrot.slane %v580, 4
      %v583 = vshll.u32 %v281, 16
      %v585 = vrot.slane %v583, 5
      %v586 = vor.u32 %v582, %v585
      %v587 = vrot.slane %v586, 4
      %v589 = vshll.u32 %v282, 16
      %v591 = vrot.slane %v589, 5
      %v592 = vsel %vm314, %v587, %v591
      %v593 = vshrl.u32 %v282, 16
      %v595 = vrot.slane %v593, 4
      %v596 = vor.u32 %v595, %v591
      %v597 = vrot.slane %v596, 4
      %v599 = vshll.u32 %v307, 16
      %v601 = vrot.slane %v599, 5
      %v602 = vsel %vm314, %v597, %v601
      %v604 = vshrl.u32 %v283, 16
      %v606 = vrot.slane %v604, 4
      %v607 = vshll.u32 %v283, 16
      %v609 = vrot.slane %v607, 5
      %v610 = vor.u32 %v606, %v609
      %v611 = vrot.slane %v610, 4
      %v613 = vshll.u32 %v284, 16
      %v615 = vrot.slane %v613, 5
      %v616 = vsel %vm314, %v611, %v615
      %v617 = vshrl.u32 %v284, 16
      %v619 = vrot.slane %v617, 4
      %v620 = vor.u32 %v619, %v615
      %v621 = vrot.slane %v620, 4
      %v623 = vshll.u32 %v308, 16
      %v625 = vrot.slane %v623, 5
      %v626 = vsel %vm314, %v621, %v625
      %v628 = vshrl.u32 %v285, 16
      %v630 = vrot.slane %v628, 4
      %v631 = vshll.u32 %v285, 16
      %v633 = vrot.slane %v631, 5
      %v634 = vor.u32 %v630, %v633
      %v635 = vrot.slane %v634, 4
      %v637 = vshll.u32 %v286, 16
      %v639 = vrot.slane %v637, 5
      %v640 = vsel %vm314, %v635, %v639
      %v641 = vshrl.u32 %v286, 16
      %v643 = vrot.slane %v641, 4
      %v644 = vor.u32 %v643, %v639
      %v645 = vrot.slane %v644, 4
      %v647 = vshll.u32 %v309, 16
      %v649 = vrot.slane %v647, 5
      %v650 = vsel %vm314, %v645, %v649
      %v652 = vshrl.u32 %v287, 16
      %v654 = vrot.slane %v652, 4
      %v655 = vshll.u32 %v287, 16
      %v657 = vrot.slane %v655, 5
      %v658 = vor.u32 %v654, %v657
      %v659 = vrot.slane %v658, 4
      %v661 = vshll.u32 %v288, 16
      %v663 = vrot.slane %v661, 5
      %v664 = vsel %vm314, %v659, %v663
      %v665 = vshrl.u32 %v288, 16
      %v667 = vrot.slane %v665, 4
      %v668 = vor.u32 %v667, %v663
      %v669 = vrot.slane %v668, 4
      %v671 = vshll.u32 %v310, 16
      %v673 = vrot.slane %v671, 5
      %v674 = vsel %vm314, %v669, %v673
      %v676 = vshrl.u32 %v289, 16
      %v678 = vrot.slane %v676, 4
      %v679 = vshll.u32 %v289, 16
      %v681 = vrot.slane %v679, 5
      %v682 = vor.u32 %v678, %v681
      %v683 = vrot.slane %v682, 4
      %v685 = vshll.u32 %v290, 16
      %v687 = vrot.slane %v685, 5
      %v688 = vsel %vm314, %v683, %v687
      %v689 = vshrl.u32 %v290, 16
      %v691 = vrot.slane %v689, 4
      %v692 = vor.u32 %v691, %v687
      %v693 = vrot.slane %v692, 4
      %v695 = vshll.u32 %v311, 16
      %v697 = vrot.slane %v695, 5
      %v698 = vsel %vm314, %v693, %v697
      %s699 = scalar_lea.vmem %s1, 20
      %v700 = vld [vmem:[%s699] sm:$0xf]
      %v701 = vld [vmem:[%s699 + $0x4] sm:$0xf]
      %v702 = vld [vmem:[%s699 + $0x8] sm:$0xf]
      %v703 = vld [vmem:[%s699 + $0xc] sm:$0xf]
      %v704 = vld [vmem:[%s699 + $0x10] sm:$0x3]
      %v705 = vunpack.c.l.b16 %v328
      %v706 = vunpack.c.l.b16 %v338
      %v707 = vunpack.c.l.b16 %v352
      %v708 = vunpack.c.l.b16 %v362
      %v709 = vunpack.c.l.b16 %v376
      %v710 = vunpack.c.l.b16 %v386
      %v711 = vunpack.c.l.b16 %v400
      %v712 = vunpack.c.l.b16 %v410
      %v713 = vunpack.c.l.b16 %v424
      %v714 = vunpack.c.l.b16 %v434
      %v715 = vunpack.c.l.b16 %v448
      %v716 = vunpack.c.l.b16 %v458
      %v717 = vunpack.c.l.b16 %v472
      %v718 = vunpack.c.l.b16 %v482
      %v719 = vunpack.c.l.b16 %v496
      %v720 = vunpack.c.l.b16 %v506
      %v721 = vunpack.c.l.b16 %v520
      %v722 = vunpack.c.l.b16 %v530
      %v723 = vunpack.c.l.b16 %v544
      %v724 = vunpack.c.l.b16 %v554
      %v725 = vunpack.c.l.b16 %v568
      %v726 = vunpack.c.l.b16 %v578
      %v727 = vunpack.c.l.b16 %v592
      %v728 = vunpack.c.l.b16 %v602
      %v729 = vunpack.c.l.b16 %v616
      %v730 = vunpack.c.l.b16 %v626
      %v731 = vunpack.c.l.b16 %v640
      %v732 = vunpack.c.l.b16 %v650
      %v733 = vunpack.c.l.b16 %v664
      %v734 = vunpack.c.l.b16 %v674
      %v735 = vunpack.c.l.b16 %v688
      %v736 = vunpack.c.l.b16 %v698
      %v737 = vpack.c.b16 %v706, %v705
      %v738 = vpack.c.b16 %v708, %v707
      %v739 = vpack.c.b16 %v710, %v709
      %v740 = vpack.c.b16 %v712, %v711
      %v741 = vpack.c.b16 %v714, %v713
      %v742 = vpack.c.b16 %v716, %v715
      %v743 = vpack.c.b16 %v718, %v717
      %v744 = vpack.c.b16 %v720, %v719
      %v745 = vpack.c.b16 %v722, %v721
      %v746 = vpack.c.b16 %v724, %v723
      %v747 = vpack.c.b16 %v726, %v725
      %v748 = vpack.c.b16 %v728, %v727
      %v749 = vpack.c.b16 %v730, %v729
      %v750 = vpack.c.b16 %v732, %v731
      %v751 = vpack.c.b16 %v734, %v733
      %v752 = vpack.c.b16 %v736, %v735
      %v758 = vunpack.c.l.b16 %v700
      %v759 = vunpack.c.l.b16 %v701
      %v760 = vunpack.c.l.b16 %v702
      %v761 = vunpack.c.l.b16 %v703
      %v762 = vunpack.c.l.b16 %v704
      %v763 = vpack.c.b16 %v759, %v758
      %v764 = vpack.c.b16 %v761, %v760
      %v765 = vpack.c.b16 %v762, %v762
      %vm768 = vcmask 293888
      %v770 = vsel %vm768, %v737, 0
      %v773 = vsel %vm768, %v738, 0
      %v776 = vsel %vm768, %v739, 0
      %v779 = vsel %vm768, %v740, 0
      %v782 = vsel %vm768, %v741, 0
      %v785 = vsel %vm768, %v742, 0
      %v788 = vsel %vm768, %v743, 0
      %v791 = vsel %vm768, %v744, 0
      %v794 = vsel %vm768, %v745, 0
      %v797 = vsel %vm768, %v746, 0
      %v800 = vsel %vm768, %v747, 0
      %v803 = vsel %vm768, %v748, 0
      %v806 = vsel %vm768, %v749, 0
      %v809 = vsel %vm768, %v750, 0
      %v812 = vsel %vm768, %v751, 0
      %v815 = vsel %vm768, %v752, 0
      %vm817 = vcmask 1041408
      %v819 = vsel %vm817, %v765, 0
      %821 = vmatprep.subr.bf16.mxu0 0
      %822 = vmatpush1.bf16.msra.mxu0 %v763
      %823 = vmatprep.subr.bf16.mxu0 0
      %824 = vmatpush1.bf16.msra.mxu0 %v764
      %825 = vmatprep.subr.bf16.mxu0 0
      %826 = vmatpush1.bf16.msra.mxu0 %v819
      %827 = vmatprep.subr.bf16.mxu0 0
      %828 = vmatpush1.bf16.msra.mxu0 0
      %829 = vmatprep.subr.bf16.mxu0 0
      %830 = vmatpush1.bf16.msra.mxu0 0
      %831 = vmatprep.subr.bf16.mxu0 0
      %832 = vmatpush1.bf16.msra.mxu0 0
      %833 = vmatprep.subr.bf16.mxu0 0
      %834 = vmatpush1.bf16.msra.mxu0 0
      %835 = vmatprep.subr.bf16.mxu0 0
      %836 = vmatpush1.bf16.msra.mxu0 0
      %837 = vmatprep.subr.bf16.mxu0 0
      %838 = vmatpush1.bf16.msra.mxu0 0
      %839 = vmatprep.subr.bf16.mxu0 0
      %840 = vmatpush1.bf16.msra.mxu0 0
      %841 = vmatprep.subr.bf16.mxu0 0
      %842 = vmatpush1.bf16.msra.mxu0 0
      %843 = vmatprep.subr.bf16.mxu0 0
      %844 = vmatpush1.bf16.msra.mxu0 0
      %845 = vmatprep.subr.bf16.mxu0 0
      %846 = vmatpush1.bf16.msra.mxu0 0
      %847 = vmatprep.subr.bf16.mxu0 0
      %848 = vmatpush1.bf16.msra.mxu0 0
      %849 = vmatprep.subr.bf16.mxu0 0
      %850 = vmatpush1.bf16.msra.mxu0 0
      %851 = vmatprep.subr.bf16.mxu0 0
      %852 = vmatpush1.bf16.msra.mxu0 0
      %853 = vmatprep.mubr.bf16.mxu0 0
      %854 = vmatmul.mubr.bf16.gmra.mrb[0].mxu0 %v770
      %v855 = vpop.f32.mrb[0].mxu0
      %v856 = vadd.f32 0.0, %v855
      %v857 = vpop.f32.mrb[0].mxu0
      %v858 = vpop.f32.mrb[0].mxu0
      %v859 = vadd.f32 0.0, %v858
      %v860 = vpop.f32.mrb[0].mxu0
      %861 = vmatprep.mubr.bf16.mxu0 0
      %862 = vmatmul.mubr.bf16.gmra.mrb[0].mxu0 %v773
      %v863 = vpop.f32.mrb[0].mxu0
      %v864 = vadd.f32 0.0, %v863
      %v865 = vpop.f32.mrb[0].mxu0
      %v866 = vpop.f32.mrb[0].mxu0
      %v867 = vadd.f32 0.0, %v866
      %v868 = vpop.f32.mrb[0].mxu0
      %869 = vmatprep.mubr.bf16.mxu0 0
      %870 = vmatmul.mubr.bf16.gmra.mrb[0].mxu0 %v776
      %v871 = vpop.f32.mrb[0].mxu0
      %v872 = vadd.f32 0.0, %v871
      %v873 = vpop.f32.mrb[0].mxu0
      %v874 = vpop.f32.mrb[0].mxu0
      %v875 = vadd.f32 0.0, %v874
      %v876 = vpop.f32.mrb[0].mxu0
      %877 = vmatprep.mubr.bf16.mxu0 0
      %878 = vmatmul.mubr.bf16.gmra.mrb[0].mxu0 %v779
      %v879 = vpop.f32.mrb[0].mxu0
      %v880 = vadd.f32 0.0, %v879
      %v881 = vpop.f32.mrb[0].mxu0
      %v882 = vpop.f32.mrb[0].mxu0
      %v883 = vadd.f32 0.0, %v882
      %v884 = vpop.f32.mrb[0].mxu0
      %885 = vmatprep.mubr.bf16.mxu0 0
      %886 = vmatmul.mubr.bf16.gmra.mrb[0].mxu0 %v782
      %v887 = vpop.f32.mrb[0].mxu0
      %v888 = vadd.f32 0.0, %v887
      %v889 = vpop.f32.mrb[0].mxu0
      %v890 = vpop.f32.mrb[0].mxu0
      %v891 = vadd.f32 0.0, %v890
      %v892 = vpop.f32.mrb[0].mxu0
      %893 = vmatprep.mubr.bf16.mxu0 0
      %894 = vmatmul.mubr.bf16.gmra.mrb[0].mxu0 %v785
      %v895 = vpop.f32.mrb[0].mxu0
      %v896 = vadd.f32 0.0, %v895
      %v897 = vpop.f32.mrb[0].mxu0
      %v898 = vpop.f32.mrb[0].mxu0
      %v899 = vadd.f32 0.0, %v898
      %v900 = vpop.f32.mrb[0].mxu0
      %901 = vmatprep.mubr.bf16.mxu0 0
      %902 = vmatmul.mubr.bf16.gmra.mrb[0].mxu0 %v788
      %v903 = vpop.f32.mrb[0].mxu0
      %v904 = vadd.f32 0.0, %v903
      %v905 = vpop.f32.mrb[0].mxu0
      %v906 = vpop.f32.mrb[0].mxu0
      %v907 = vadd.f32 0.0, %v906
      %v908 = vpop.f32.mrb[0].mxu0
      %909 = vmatprep.mubr.bf16.mxu0 0
      %910 = vmatmul.mubr.bf16.gmra.mrb[0].mxu0 %v791
      %v911 = vpop.f32.mrb[0].mxu0
      %v912 = vadd.f32 0.0, %v911
      %v913 = vpop.f32.mrb[0].mxu0
      %v914 = vpop.f32.mrb[0].mxu0
      %v915 = vadd.f32 0.0, %v914
      %v916 = vpop.f32.mrb[0].mxu0
      %917 = vmatprep.mubr.bf16.mxu0 0
      %918 = vmatmul.mubr.bf16.gmra.mrb[0].mxu0 %v794
      %v919 = vpop.f32.mrb[0].mxu0
      %v920 = vadd.f32 0.0, %v919
      %v921 = vpop.f32.mrb[0].mxu0
      %v922 = vpop.f32.mrb[0].mxu0
      %v923 = vadd.f32 0.0, %v922
      %v924 = vpop.f32.mrb[0].mxu0
      %925 = vmatprep.mubr.bf16.mxu0 0
      %926 = vmatmul.mubr.bf16.gmra.mrb[0].mxu0 %v797
      %v927 = vpop.f32.mrb[0].mxu0
      %v928 = vadd.f32 0.0, %v927
      %v929 = vpop.f32.mrb[0].mxu0
      %v930 = vpop.f32.mrb[0].mxu0
      %v931 = vadd.f32 0.0, %v930
      %v932 = vpop.f32.mrb[0].mxu0
      %933 = vmatprep.mubr.bf16.mxu0 0
      %934 = vmatmul.mubr.bf16.gmra.mrb[0].mxu0 %v800
      %v935 = vpop.f32.mrb[0].mxu0
      %v936 = vadd.f32 0.0, %v935
      %v937 = vpop.f32.mrb[0].mxu0
      %v938 = vpop.f32.mrb[0].mxu0
      %v939 = vadd.f32 0.0, %v938
      %v940 = vpop.f32.mrb[0].mxu0
      %941 = vmatprep.mubr.bf16.mxu0 0
      %942 = vmatmul.mubr.bf16.gmra.mrb[0].mxu0 %v803
      %v943 = vpop.f32.mrb[0].mxu0
      %v944 = vadd.f32 0.0, %v943
      %v945 = vpop.f32.mrb[0].mxu0
      %v946 = vpop.f32.mrb[0].mxu0
      %v947 = vadd.f32 0.0, %v946
      %v948 = vpop.f32.mrb[0].mxu0
      %949 = vmatprep.mubr.bf16.mxu0 0
      %950 = vmatmul.mubr.bf16.gmra.mrb[0].mxu0 %v806
      %v951 = vpop.f32.mrb[0].mxu0
      %v952 = vadd.f32 0.0, %v951
      %v953 = vpop.f32.mrb[0].mxu0
      %v954 = vpop.f32.mrb[0].mxu0
      %v955 = vadd.f32 0.0, %v954
      %v956 = vpop.f32.mrb[0].mxu0
      %957 = vmatprep.mubr.bf16.mxu0 0
      %958 = vmatmul.mubr.bf16.gmra.mrb[0].mxu0 %v809
      %v959 = vpop.f32.mrb[0].mxu0
      %v960 = vadd.f32 0.0, %v959
      %v961 = vpop.f32.mrb[0].mxu0
      %v962 = vpop.f32.mrb[0].mxu0
      %v963 = vadd.f32 0.0, %v962
      %v964 = vpop.f32.mrb[0].mxu0
      %965 = vmatprep.mubr.bf16.mxu0 0
      %966 = vmatmul.mubr.bf16.gmra.mrb[0].mxu0 %v812
      %v967 = vpop.f32.mrb[0].mxu0
      %v968 = vadd.f32 0.0, %v967
      %v969 = vpop.f32.mrb[0].mxu0
      %v970 = vpop.f32.mrb[0].mxu0
      %v971 = vadd.f32 0.0, %v970
      %v972 = vpop.f32.mrb[0].mxu0
      %973 = vmatprep.mubr.bf16.mxu0 0
      %974 = vmatmul.mubr.bf16.gmra.mrb[0].mxu0 %v815
      %v975 = vpop.f32.mrb[0].mxu0
      %v976 = vadd.f32 0.0, %v975
      %v977 = vpop.f32.mrb[0].mxu0
      %v978 = vpop.f32.mrb[0].mxu0
      %v979 = vadd.f32 0.0, %v978
      %v980 = vpop.f32.mrb[0].mxu0
      %981 = vdwg.mxu0
      %v1014 = vunpack.c.l.b16 %v259
      %v1015 = vunpack.c.l.b16 %v260
      %v1016 = vunpack.c.l.b16 %v261
      %v1017 = vunpack.c.l.b16 %v262
      %v1018 = vunpack.c.l.b16 %v263
      %v1019 = vunpack.c.l.b16 %v264
      %v1020 = vunpack.c.l.b16 %v265
      %v1021 = vunpack.c.l.b16 %v266
      %v1022 = vunpack.c.l.b16 %v267
      %v1023 = vunpack.c.l.b16 %v268
      %v1024 = vunpack.c.l.b16 %v269
      %v1025 = vunpack.c.l.b16 %v270
      %v1026 = vunpack.c.l.b16 %v271
      %v1027 = vunpack.c.l.b16 %v272
      %v1028 = vunpack.c.l.b16 %v273
      %v1029 = vunpack.c.l.b16 %v274
      %v1030 = vunpack.c.l.b16 %v275
      %v1031 = vunpack.c.l.b16 %v276
      %v1032 = vunpack.c.l.b16 %v277
      %v1033 = vunpack.c.l.b16 %v278
      %v1034 = vunpack.c.l.b16 %v279
      %v1035 = vunpack.c.l.b16 %v280
      %v1036 = vunpack.c.l.b16 %v281
      %v1037 = vunpack.c.l.b16 %v282
      %v1038 = vunpack.c.l.b16 %v283
      %v1039 = vunpack.c.l.b16 %v284
      %v1040 = vunpack.c.l.b16 %v285
      %v1041 = vunpack.c.l.b16 %v286
      %v1042 = vunpack.c.l.b16 %v287
      %v1043 = vunpack.c.l.b16 %v288
      %v1044 = vunpack.c.l.b16 %v289
      %v1045 = vunpack.c.l.b16 %v290
      %v1046 = vpack.c.b16 %v1015, %v1014
      %v1047 = vpack.c.b16 %v1017, %v1016
      %v1048 = vpack.c.b16 %v1019, %v1018
      %v1049 = vpack.c.b16 %v1021, %v1020
      %v1050 = vpack.c.b16 %v1023, %v1022
      %v1051 = vpack.c.b16 %v1025, %v1024
      %v1052 = vpack.c.b16 %v1027, %v1026
      %v1053 = vpack.c.b16 %v1029, %v1028
      %v1054 = vpack.c.b16 %v1031, %v1030
      %v1055 = vpack.c.b16 %v1033, %v1032
      %v1056 = vpack.c.b16 %v1035, %v1034
      %v1057 = vpack.c.b16 %v1037, %v1036
      %v1058 = vpack.c.b16 %v1039, %v1038
      %v1059 = vpack.c.b16 %v1041, %v1040
      %v1060 = vpack.c.b16 %v1043, %v1042
      %v1061 = vpack.c.b16 %v1045, %v1044
      %v1067 = vunpack.c.l.b16 %v291
      %v1068 = vunpack.c.l.b16 %v292
      %v1069 = vunpack.c.l.b16 %v293
      %v1070 = vunpack.c.l.b16 %v294
      %v1071 = vunpack.c.l.b16 %v295
      %v1072 = vpack.c.b16 %v1068, %v1067
      %v1073 = vpack.c.b16 %v1070, %v1069
      %v1074 = vpack.c.b16 %v1071, %v1071
      %v1078 = vsel %vm768, %v1046, 0
      %v1081 = vsel %vm768, %v1047, 0
      %v1084 = vsel %vm768, %v1048, 0
      %v1087 = vsel %vm768, %v1049, 0
      %v1090 = vsel %vm768, %v1050, 0
      %v1093 = vsel %vm768, %v1051, 0
      %v1096 = vsel %vm768, %v1052, 0
      %v1099 = vsel %vm768, %v1053, 0
      %v1102 = vsel %vm768, %v1054, 0
      %v1105 = vsel %vm768, %v1055, 0
      %v1108 = vsel %vm768, %v1056, 0
      %v1111 = vsel %vm768, %v1057, 0
      %v1114 = vsel %vm768, %v1058, 0
      %v1117 = vsel %vm768, %v1059, 0
      %v1120 = vsel %vm768, %v1060, 0
      %v1123 = vsel %vm768, %v1061, 0
      %v1126 = vsel %vm817, %v1074, 0
      %1128 = vmatprep.subr.bf16.mxu0 0
      %1129 = vmatpush1.bf16.msra.mxu0 %v1072
      %1130 = vmatprep.subr.bf16.mxu0 0
      %1131 = vmatpush1.bf16.msra.mxu0 %v1073
      %1132 = vmatprep.subr.bf16.mxu0 0
      %1133 = vmatpush1.bf16.msra.mxu0 %v1126
      %1134 = vmatprep.subr.bf16.mxu0 0
      %1135 = vmatpush1.bf16.msra.mxu0 0
      %1136 = vmatprep.subr.bf16.mxu0 0
      %1137 = vmatpush1.bf16.msra.mxu0 0
      %1138 = vmatprep.subr.bf16.mxu0 0
      %1139 = vmatpush1.bf16.msra.mxu0 0
      %1140 = vmatprep.subr.bf16.mxu0 0
      %1141 = vmatpush1.bf16.msra.mxu0 0
      %1142 = vmatprep.subr.bf16.mxu0 0
      %1143 = vmatpush1.bf16.msra.mxu0 0
      %1144 = vmatprep.subr.bf16.mxu0 0
      %1145 = vmatpush1.bf16.msra.mxu0 0
      %1146 = vmatprep.subr.bf16.mxu0 0
      %1147 = vmatpush1.bf16.msra.mxu0 0
      %1148 = vmatprep.subr.bf16.mxu0 0
      %1149 = vmatpush1.bf16.msra.mxu0 0
      %1150 = vmatprep.subr.bf16.mxu0 0
      %1151 = vmatpush1.bf16.msra.mxu0 0
      %1152 = vmatprep.subr.bf16.mxu0 0
      %1153 = vmatpush1.bf16.msra.mxu0 0
      %1154 = vmatprep.subr.bf16.mxu0 0
      %1155 = vmatpush1.bf16.msra.mxu0 0
      %1156 = vmatprep.subr.bf16.mxu0 0
      %1157 = vmatpush1.bf16.msra.mxu0 0
      %1158 = vmatprep.subr.bf16.mxu0 0
      %1159 = vmatpush1.bf16.msra.mxu0 0
      %1160 = vmatprep.mubr.bf16.mxu0 0
      %1161 = vmatmul.mubr.bf16.gmra.mrb[0].mxu0 %v1078
      %v1162 = vpop.f32.mrb[0].mxu0
      %v1163 = vadd.f32 %v856, %v1162
      %v1164 = vpop.f32.mrb[0].mxu0
      %v1165 = vpop.f32.mrb[0].mxu0
      %v1166 = vadd.f32 %v859, %v1165
      %v1167 = vpop.f32.mrb[0].mxu0
      %1168 = vmatprep.mubr.bf16.mxu0 0
      %1169 = vmatmul.mubr.bf16.gmra.mrb[0].mxu0 %v1081
      %v1170 = vpop.f32.mrb[0].mxu0
      %v1171 = vadd.f32 %v864, %v1170
      %v1172 = vpop.f32.mrb[0].mxu0
      %v1173 = vpop.f32.mrb[0].mxu0
      %v1174 = vadd.f32 %v867, %v1173
      %v1175 = vpop.f32.mrb[0].mxu0
      %1176 = vmatprep.mubr.bf16.mxu0 0
      %1177 = vmatmul.mubr.bf16.gmra.mrb[0].mxu0 %v1084
      %v1178 = vpop.f32.mrb[0].mxu0
      %v1179 = vadd.f32 %v872, %v1178
      %v1180 = vpop.f32.mrb[0].mxu0
      %v1181 = vpop.f32.mrb[0].mxu0
      %v1182 = vadd.f32 %v875, %v1181
      %v1183 = vpop.f32.mrb[0].mxu0
      %1184 = vmatprep.mubr.bf16.mxu0 0
      %1185 = vmatmul.mubr.bf16.gmra.mrb[0].mxu0 %v1087
      %v1186 = vpop.f32.mrb[0].mxu0
      %v1187 = vadd.f32 %v880, %v1186
      %v1188 = vpop.f32.mrb[0].mxu0
      %v1189 = vpop.f32.mrb[0].mxu0
      %v1190 = vadd.f32 %v883, %v1189
      %v1191 = vpop.f32.mrb[0].mxu0
      %1192 = vmatprep.mubr.bf16.mxu0 0
      %1193 = vmatmul.mubr.bf16.gmra.mrb[0].mxu0 %v1090
      %v1194 = vpop.f32.mrb[0].mxu0
      %v1195 = vadd.f32 %v888, %v1194
      %v1196 = vpop.f32.mrb[0].mxu0
      %v1197 = vpop.f32.mrb[0].mxu0
      %v1198 = vadd.f32 %v891, %v1197
      %v1199 = vpop.f32.mrb[0].mxu0
      %1200 = vmatprep.mubr.bf16.mxu0 0
      %1201 = vmatmul.mubr.bf16.gmra.mrb[0].mxu0 %v1093
      %v1202 = vpop.f32.mrb[0].mxu0
      %v1203 = vadd.f32 %v896, %v1202
      %v1204 = vpop.f32.mrb[0].mxu0
      %v1205 = vpop.f32.mrb[0].mxu0
      %v1206 = vadd.f32 %v899, %v1205
      %v1207 = vpop.f32.mrb[0].mxu0
      %1208 = vmatprep.mubr.bf16.mxu0 0
      %1209 = vmatmul.mubr.bf16.gmra.mrb[0].mxu0 %v1096
      %v1210 = vpop.f32.mrb[0].mxu0
      %v1211 = vadd.f32 %v904, %v1210
      %v1212 = vpop.f32.mrb[0].mxu0
      %v1213 = vpop.f32.mrb[0].mxu0
      %v1214 = vadd.f32 %v907, %v1213
      %v1215 = vpop.f32.mrb[0].mxu0
      %1216 = vmatprep.mubr.bf16.mxu0 0
      %1217 = vmatmul.mubr.bf16.gmra.mrb[0].mxu0 %v1099
      %v1218 = vpop.f32.mrb[0].mxu0
      %v1219 = vadd.f32 %v912, %v1218
      %v1220 = vpop.f32.mrb[0].mxu0
      %v1221 = vpop.f32.mrb[0].mxu0
      %v1222 = vadd.f32 %v915, %v1221
      %v1223 = vpop.f32.mrb[0].mxu0
      %1224 = vmatprep.mubr.bf16.mxu0 0
      %1225 = vmatmul.mubr.bf16.gmra.mrb[0].mxu0 %v1102
      %v1226 = vpop.f32.mrb[0].mxu0
      %v1227 = vadd.f32 %v920, %v1226
      %v1228 = vpop.f32.mrb[0].mxu0
      %v1229 = vpop.f32.mrb[0].mxu0
      %v1230 = vadd.f32 %v923, %v1229
      %v1231 = vpop.f32.mrb[0].mxu0
      %1232 = vmatprep.mubr.bf16.mxu0 0
      %1233 = vmatmul.mubr.bf16.gmra.mrb[0].mxu0 %v1105
      %v1234 = vpop.f32.mrb[0].mxu0
      %v1235 = vadd.f32 %v928, %v1234
      %v1236 = vpop.f32.mrb[0].mxu0
      %v1237 = vpop.f32.mrb[0].mxu0
      %v1238 = vadd.f32 %v931, %v1237
      %v1239 = vpop.f32.mrb[0].mxu0
      %1240 = vmatprep.mubr.bf16.mxu0 0
      %1241 = vmatmul.mubr.bf16.gmra.mrb[0].mxu0 %v1108
      %v1242 = vpop.f32.mrb[0].mxu0
      %v1243 = vadd.f32 %v936, %v1242
      %v1244 = vpop.f32.mrb[0].mxu0
      %v1245 = vpop.f32.mrb[0].mxu0
      %v1246 = vadd.f32 %v939, %v1245
      %v1247 = vpop.f32.mrb[0].mxu0
      %1248 = vmatprep.mubr.bf16.mxu0 0
      %1249 = vmatmul.mubr.bf16.gmra.mrb[0].mxu0 %v1111
      %v1250 = vpop.f32.mrb[0].mxu0
      %v1251 = vadd.f32 %v944, %v1250
      %v1252 = vpop.f32.mrb[0].mxu0
      %v1253 = vpop.f32.mrb[0].mxu0
      %v1254 = vadd.f32 %v947, %v1253
      %v1255 = vpop.f32.mrb[0].mxu0
      %1256 = vmatprep.mubr.bf16.mxu0 0
      %1257 = vmatmul.mubr.bf16.gmra.mrb[0].mxu0 %v1114
      %v1258 = vpop.f32.mrb[0].mxu0
      %v1259 = vadd.f32 %v952, %v1258
      %v1260 = vpop.f32.mrb[0].mxu0
      %v1261 = vpop.f32.mrb[0].mxu0
      %v1262 = vadd.f32 %v955, %v1261
      %v1263 = vpop.f32.mrb[0].mxu0
      %1264 = vmatprep.mubr.bf16.mxu0 0
      %1265 = vmatmul.mubr.bf16.gmra.mrb[0].mxu0 %v1117
      %v1266 = vpop.f32.mrb[0].mxu0
      %v1267 = vadd.f32 %v960, %v1266
      %v1268 = vpop.f32.mrb[0].mxu0
      %v1269 = vpop.f32.mrb[0].mxu0
      %v1270 = vadd.f32 %v963, %v1269
      %v1271 = vpop.f32.mrb[0].mxu0
      %1272 = vmatprep.mubr.bf16.mxu0 0
      %1273 = vmatmul.mubr.bf16.gmra.mrb[0].mxu0 %v1120
      %v1274 = vpop.f32.mrb[0].mxu0
      %v1275 = vadd.f32 %v968, %v1274
      %v1276 = vpop.f32.mrb[0].mxu0
      %v1277 = vpop.f32.mrb[0].mxu0
      %v1278 = vadd.f32 %v971, %v1277
      %v1279 = vpop.f32.mrb[0].mxu0
      %1280 = vmatprep.mubr.bf16.mxu0 0
      %1281 = vmatmul.mubr.bf16.gmra.mrb[0].mxu0 %v1123
      %v1282 = vpop.f32.mrb[0].mxu0
      %v1283 = vadd.f32 %v976, %v1282
      %v1284 = vpop.f32.mrb[0].mxu0
      %v1285 = vpop.f32.mrb[0].mxu0
      %v1286 = vadd.f32 %v979, %v1285
      %v1287 = vpop.f32.mrb[0].mxu0
      %1288 = vdwg.mxu0
      %v1289 = vld [vmem:[%s242] sm:$0xe]
      %v1290 = vld [vmem:[%s242 + $0xc] sm:$0xe]
      %v1291 = vld [vmem:[%s242 + $0x18] sm:$0xe]
      %v1292 = vld [vmem:[%s242 + $0x24] sm:$0xe]
      %v1293 = vld [vmem:[%s242 + $0x30] sm:$0xe]
      %v1294 = vld [vmem:[%s242 + $0x3c] sm:$0xe]
      %v1295 = vld [vmem:[%s242 + $0x48] sm:$0xe]
      %v1296 = vld [vmem:[%s242 + $0x54] sm:$0xe]
      %v1297 = vld [vmem:[%s242 + $0x60] sm:$0xe]
      %v1298 = vld [vmem:[%s242 + $0x6c] sm:$0xe]
      %v1299 = vld [vmem:[%s242 + $0x78] sm:$0xe]
      %v1300 = vld [vmem:[%s242 + $0x84] sm:$0xe]
      %v1301 = vld [vmem:[%s242 + $0x90] sm:$0xe]
      %v1302 = vld [vmem:[%s242 + $0x9c] sm:$0xe]
      %v1303 = vld [vmem:[%s242 + $0xa8] sm:$0xe]
      %v1304 = vld [vmem:[%s242 + $0xb4] sm:$0xe]
      %vm1337 = vcmask 1042432
      %vm1338 = vcmask 1046532
      %vm1339 = vmor %vm1337, %vm1338
      %v1340 = vrot.slane %v1289, 5
      %v1341 = vrot.slane %v1340, 4
      %v1342 = vrot.slane %v260, 5
      %v1343 = vsel %vm1339, %v1341, %v1342
      %v1344 = vrot.slane %v1342, 4
      %v1345 = vrot.slane %v296, 5
      %v1346 = vsel %vm1339, %v1344, %v1345
      %v1347 = vrot.slane %v1290, 5
      %v1348 = vrot.slane %v1347, 4
      %v1349 = vrot.slane %v262, 5
      %v1350 = vsel %vm1339, %v1348, %v1349
      %v1351 = vrot.slane %v1349, 4
      %v1352 = vrot.slane %v297, 5
      %v1353 = vsel %vm1339, %v1351, %v1352
      %v1354 = vrot.slane %v1291, 5
      %v1355 = vrot.slane %v1354, 4
      %v1356 = vrot.slane %v264, 5
      %v1357 = vsel %vm1339, %v1355, %v1356
      %v1358 = vrot.slane %v1356, 4
      %v1359 = vrot.slane %v298, 5
      %v1360 = vsel %vm1339, %v1358, %v1359
      %v1361 = vrot.slane %v1292, 5
      %v1362 = vrot.slane %v1361, 4
      %v1363 = vrot.slane %v266, 5
      %v1364 = vsel %vm1339, %v1362, %v1363
      %v1365 = vrot.slane %v1363, 4
      %v1366 = vrot.slane %v299, 5
      %v1367 = vsel %vm1339, %v1365, %v1366
      %v1368 = vrot.slane %v1293, 5
      %v1369 = vrot.slane %v1368, 4
      %v1370 = vrot.slane %v268, 5
      %v1371 = vsel %vm1339, %v1369, %v1370
      %v1372 = vrot.slane %v1370, 4
      %v1373 = vrot.slane %v300, 5
      %v1374 = vsel %vm1339, %v1372, %v1373
      %v1375 = vrot.slane %v1294, 5
      %v1376 = vrot.slane %v1375, 4
      %v1377 = vrot.slane %v270, 5
      %v1378 = vsel %vm1339, %v1376, %v1377
      %v1379 = vrot.slane %v1377, 4
      %v1380 = vrot.slane %v301, 5
      %v1381 = vsel %vm1339, %v1379, %v1380
      %v1382 = vrot.slane %v1295, 5
      %v1383 = vrot.slane %v1382, 4
      %v1384 = vrot.slane %v272, 5
      %v1385 = vsel %vm1339, %v1383, %v1384
      %v1386 = vrot.slane %v1384, 4
      %v1387 = vrot.slane %v302, 5
      %v1388 = vsel %vm1339, %v1386, %v1387
      %v1389 = vrot.slane %v1296, 5
      %v1390 = vrot.slane %v1389, 4
      %v1391 = vrot.slane %v274, 5
      %v1392 = vsel %vm1339, %v1390, %v1391
      %v1393 = vrot.slane %v1391, 4
      %v1394 = vrot.slane %v303, 5
      %v1395 = vsel %vm1339, %v1393, %v1394
      %v1396 = vrot.slane %v1297, 5
      %v1397 = vrot.slane %v1396, 4
      %v1398 = vrot.slane %v276, 5
      %v1399 = vsel %vm1339, %v1397, %v1398
      %v1400 = vrot.slane %v1398, 4
      %v1401 = vrot.slane %v304, 5
      %v1402 = vsel %vm1339, %v1400, %v1401
      %v1403 = vrot.slane %v1298, 5
      %v1404 = vrot.slane %v1403, 4
      %v1405 = vrot.slane %v278, 5
      %v1406 = vsel %vm1339, %v1404, %v1405
      %v1407 = vrot.slane %v1405, 4
      %v1408 = vrot.slane %v305, 5
      %v1409 = vsel %vm1339, %v1407, %v1408
      %v1410 = vrot.slane %v1299, 5
      %v1411 = vrot.slane %v1410, 4
      %v1412 = vrot.slane %v280, 5
      %v1413 = vsel %vm1339, %v1411, %v1412
      %v1414 = vrot.slane %v1412, 4
      %v1415 = vrot.slane %v306, 5
      %v1416 = vsel %vm1339, %v1414, %v1415
      %v1417 = vrot.slane %v1300, 5
      %v1418 = vrot.slane %v1417, 4
      %v1419 = vrot.slane %v282, 5
      %v1420 = vsel %vm1339, %v1418, %v1419
      %v1421 = vrot.slane %v1419, 4
      %v1422 = vrot.slane %v307, 5
      %v1423 = vsel %vm1339, %v1421, %v1422
      %v1424 = vrot.slane %v1301, 5
      %v1425 = vrot.slane %v1424, 4
      %v1426 = vrot.slane %v284, 5
      %v1427 = vsel %vm1339, %v1425, %v1426
      %v1428 = vrot.slane %v1426, 4
      %v1429 = vrot.slane %v308, 5
      %v1430 = vsel %vm1339, %v1428, %v1429
      %v1431 = vrot.slane %v1302, 5
      %v1432 = vrot.slane %v1431, 4
      %v1433 = vrot.slane %v286, 5
      %v1434 = vsel %vm1339, %v1432, %v1433
      %v1435 = vrot.slane %v1433, 4
      %v1436 = vrot.slane %v309, 5
      %v1437 = vsel %vm1339, %v1435, %v1436
      %v1438 = vrot.slane %v1303, 5
      %v1439 = vrot.slane %v1438, 4
      %v1440 = vrot.slane %v288, 5
      %v1441 = vsel %vm1339, %v1439, %v1440
      %v1442 = vrot.slane %v1440, 4
      %v1443 = vrot.slane %v310, 5
      %v1444 = vsel %vm1339, %v1442, %v1443
      %v1445 = vrot.slane %v1304, 5
      %v1446 = vrot.slane %v1445, 4
      %v1447 = vrot.slane %v290, 5
      %v1448 = vsel %vm1339, %v1446, %v1447
      %v1449 = vrot.slane %v1447, 4
      %v1450 = vrot.slane %v311, 5
      %v1451 = vsel %vm1339, %v1449, %v1450
      %s1452 = scalar_lea.vmem %s1, 40
      %v1453 = vld [vmem:[%s1452] sm:$0xf]
      %v1454 = vld [vmem:[%s1452 + $0x4] sm:$0xf]
      %v1455 = vld [vmem:[%s1452 + $0x8] sm:$0xf]
      %v1456 = vld [vmem:[%s1452 + $0xc] sm:$0xf]
      %v1457 = vld [vmem:[%s1452 + $0x10] sm:$0x3]
      %v1458 = vunpack.c.l.b16 %v1343
      %v1459 = vunpack.c.l.b16 %v1346
      %v1460 = vunpack.c.l.b16 %v1350
      %v1461 = vunpack.c.l.b16 %v1353
      %v1462 = vunpack.c.l.b16 %v1357
      %v1463 = vunpack.c.l.b16 %v1360
      %v1464 = vunpack.c.l.b16 %v1364
      %v1465 = vunpack.c.l.b16 %v1367
      %v1466 = vunpack.c.l.b16 %v1371
      %v1467 = vunpack.c.l.b16 %v1374
      %v1468 = vunpack.c.l.b16 %v1378
      %v1469 = vunpack.c.l.b16 %v1381
      %v1470 = vunpack.c.l.b16 %v1385
      %v1471 = vunpack.c.l.b16 %v1388
      %v1472 = vunpack.c.l.b16 %v1392
      %v1473 = vunpack.c.l.b16 %v1395
      %v1474 = vunpack.c.l.b16 %v1399
      %v1475 = vunpack.c.l.b16 %v1402
      %v1476 = vunpack.c.l.b16 %v1406
      %v1477 = vunpack.c.l.b16 %v1409
      %v1478 = vunpack.c.l.b16 %v1413
      %v1479 = vunpack.c.l.b16 %v1416
      %v1480 = vunpack.c.l.b16 %v1420
      %v1481 = vunpack.c.l.b16 %v1423
      %v1482 = vunpack.c.l.b16 %v1427
      %v1483 = vunpack.c.l.b16 %v1430
      %v1484 = vunpack.c.l.b16 %v1434
      %v1485 = vunpack.c.l.b16 %v1437
      %v1486 = vunpack.c.l.b16 %v1441
      %v1487 = vunpack.c.l.b16 %v1444
      %v1488 = vunpack.c.l.b16 %v1448
      %v1489 = vunpack.c.l.b16 %v1451
      %v1490 = vpack.c.b16 %v1459, %v1458
      %v1491 = vpack.c.b16 %v1461, %v1460
      %v1492 = vpack.c.b16 %v1463, %v1462
      %v1493 = vpack.c.b16 %v1465, %v1464
      %v1494 = vpack.c.b16 %v1467, %v1466
      %v1495 = vpack.c.b16 %v1469, %v1468
      %v1496 = vpack.c.b16 %v1471, %v1470
      %v1497 = vpack.c.b16 %v1473, %v1472
      %v1498 = vpack.c.b16 %v1475, %v1474
      %v1499 = vpack.c.b16 %v1477, %v1476
      %v1500 = vpack.c.b16 %v1479, %v1478
      %v1501 = vpack.c.b16 %v1481, %v1480
      %v1502 = vpack.c.b16 %v1483, %v1482
      %v1503 = vpack.c.b16 %v1485, %v1484
      %v1504 = vpack.c.b16 %v1487, %v1486
      %v1505 = vpack.c.b16 %v1489, %v1488
      %v1511 = vunpack.c.l.b16 %v1453
      %v1512 = vunpack.c.l.b16 %v1454
      %v1513 = vunpack.c.l.b16 %v1455
      %v1514 = vunpack.c.l.b16 %v1456
      %v1515 = vunpack.c.l.b16 %v1457
      %v1516 = vpack.c.b16 %v1512, %v1511
      %v1517 = vpack.c.b16 %v1514, %v1513
      %v1518 = vpack.c.b16 %v1515, %v1515
      %v1522 = vsel %vm768, %v1490, 0
      %v1525 = vsel %vm768, %v1491, 0
      %v1528 = vsel %vm768, %v1492, 0
      %v1531 = vsel %vm768, %v1493, 0
      %v1534 = vsel %vm768, %v1494, 0
      %v1537 = vsel %vm768, %v1495, 0
      %v1540 = vsel %vm768, %v1496, 0
      %v1543 = vsel %vm768, %v1497, 0
      %v1546 = vsel %vm768, %v1498, 0
      %v1549 = vsel %vm768, %v1499, 0
      %v1552 = vsel %vm768, %v1500, 0
      %v1555 = vsel %vm768, %v1501, 0
      %v1558 = vsel %vm768, %v1502, 0
      %v1561 = vsel %vm768, %v1503, 0
      %v1564 = vsel %vm768, %v1504, 0
      %v1567 = vsel %vm768, %v1505, 0
      %v1570 = vsel %vm817, %v1518, 0
      %1572 = vmatprep.subr.bf16.mxu0 0
      %1573 = vmatpush1.bf16.msra.mxu0 %v1516
      %1574 = vmatprep.subr.bf16.mxu0 0
      %1575 = vmatpush1.bf16.msra.mxu0 %v1517
      %1576 = vmatprep.subr.bf16.mxu0 0
      %1577 = vmatpush1.bf16.msra.mxu0 %v1570
      %1578 = vmatprep.subr.bf16.mxu0 0
      %1579 = vmatpush1.bf16.msra.mxu0 0
      %1580 = vmatprep.subr.bf16.mxu0 0
      %1581 = vmatpush1.bf16.msra.mxu0 0
      %1582 = vmatprep.subr.bf16.mxu0 0
      %1583 = vmatpush1.bf16.msra.mxu0 0
      %1584 = vmatprep.subr.bf16.mxu0 0
      %1585 = vmatpush1.bf16.msra.mxu0 0
      %1586 = vmatprep.subr.bf16.mxu0 0
      %1587 = vmatpush1.bf16.msra.mxu0 0
      %1588 = vmatprep.subr.bf16.mxu0 0
      %1589 = vmatpush1.bf16.msra.mxu0 0
      %1590 = vmatprep.subr.bf16.mxu0 0
      %1591 = vmatpush1.bf16.msra.mxu0 0
      %1592 = vmatprep.subr.bf16.mxu0 0
      %1593 = vmatpush1.bf16.msra.mxu0 0
      %1594 = vmatprep.subr.bf16.mxu0 0
      %1595 = vmatpush1.bf16.msra.mxu0 0
      %1596 = vmatprep.subr.bf16.mxu0 0
      %1597 = vmatpush1.bf16.msra.mxu0 0
      %1598 = vmatprep.subr.bf16.mxu0 0
      %1599 = vmatpush1.bf16.msra.mxu0 0
      %1600 = vmatprep.subr.bf16.mxu0 0
      %1601 = vmatpush1.bf16.msra.mxu0 0
      %1602 = vmatprep.subr.bf16.mxu0 0
      %1603 = vmatpush1.bf16.msra.mxu0 0
      %1604 = vmatprep.mubr.bf16.mxu0 0
      %1605 = vmatmul.mubr.bf16.gmra.mrb[0].mxu0 %v1522
      %v1606 = vpop.f32.mrb[0].mxu0
      %v1607 = vadd.f32 0.0, %v1606
      %v1608 = vpop.f32.mrb[0].mxu0
      %v1609 = vpop.f32.mrb[0].mxu0
      %v1610 = vadd.f32 0.0, %v1609
      %v1611 = vpop.f32.mrb[0].mxu0
      %1612 = vmatprep.mubr.bf16.mxu0 0
      %1613 = vmatmul.mubr.bf16.gmra.mrb[0].mxu0 %v1525
      %v1614 = vpop.f32.mrb[0].mxu0
      %v1615 = vadd.f32 0.0, %v1614
      %v1616 = vpop.f32.mrb[0].mxu0
      %v1617 = vpop.f32.mrb[0].mxu0
      %v1618 = vadd.f32 0.0, %v1617
      %v1619 = vpop.f32.mrb[0].mxu0
      %1620 = vmatprep.mubr.bf16.mxu0 0
      %1621 = vmatmul.mubr.bf16.gmra.mrb[0].mxu0 %v1528
      %v1622 = vpop.f32.mrb[0].mxu0
      %v1623 = vadd.f32 0.0, %v1622
      %v1624 = vpop.f32.mrb[0].mxu0
      %v1625 = vpop.f32.mrb[0].mxu0
      %v1626 = vadd.f32 0.0, %v1625
      %v1627 = vpop.f32.mrb[0].mxu0
      %1628 = vmatprep.mubr.bf16.mxu0 0
      %1629 = vmatmul.mubr.bf16.gmra.mrb[0].mxu0 %v1531
      %v1630 = vpop.f32.mrb[0].mxu0
      %v1631 = vadd.f32 0.0, %v1630
      %v1632 = vpop.f32.mrb[0].mxu0
      %v1633 = vpop.f32.mrb[0].mxu0
      %v1634 = vadd.f32 0.0, %v1633
      %v1635 = vpop.f32.mrb[0].mxu0
      %1636 = vmatprep.mubr.bf16.mxu0 0
      %1637 = vmatmul.mubr.bf16.gmra.mrb[0].mxu0 %v1534
      %v1638 = vpop.f32.mrb[0].mxu0
      %v1639 = vadd.f32 0.0, %v1638
      %v1640 = vpop.f32.mrb[0].mxu0
      %v1641 = vpop.f32.mrb[0].mxu0
      %v1642 = vadd.f32 0.0, %v1641
      %v1643 = vpop.f32.mrb[0].mxu0
      %1644 = vmatprep.mubr.bf16.mxu0 0
      %1645 = vmatmul.mubr.bf16.gmra.mrb[0].mxu0 %v1537
      %v1646 = vpop.f32.mrb[0].mxu0
      %v1647 = vadd.f32 0.0, %v1646
      %v1648 = vpop.f32.mrb[0].mxu0
      %v1649 = vpop.f32.mrb[0].mxu0
      %v1650 = vadd.f32 0.0, %v1649
      %v1651 = vpop.f32.mrb[0].mxu0
      %1652 = vmatprep.mubr.bf16.mxu0 0
      %1653 = vmatmul.mubr.bf16.gmra.mrb[0].mxu0 %v1540
      %v1654 = vpop.f32.mrb[0].mxu0
      %v1655 = vadd.f32 0.0, %v1654
      %v1656 = vpop.f32.mrb[0].mxu0
      %v1657 = vpop.f32.mrb[0].mxu0
      %v1658 = vadd.f32 0.0, %v1657
      %v1659 = vpop.f32.mrb[0].mxu0
      %1660 = vmatprep.mubr.bf16.mxu0 0
      %1661 = vmatmul.mubr.bf16.gmra.mrb[0].mxu0 %v1543
      %v1662 = vpop.f32.mrb[0].mxu0
      %v1663 = vadd.f32 0.0, %v1662
      %v1664 = vpop.f32.mrb[0].mxu0
      %v1665 = vpop.f32.mrb[0].mxu0
      %v1666 = vadd.f32 0.0, %v1665
      %v1667 = vpop.f32.mrb[0].mxu0
      %1668 = vmatprep.mubr.bf16.mxu0 0
      %1669 = vmatmul.mubr.bf16.gmra.mrb[0].mxu0 %v1546
      %v1670 = vpop.f32.mrb[0].mxu0
      %v1671 = vadd.f32 0.0, %v1670
      %v1672 = vpop.f32.mrb[0].mxu0
      %v1673 = vpop.f32.mrb[0].mxu0
      %v1674 = vadd.f32 0.0, %v1673
      %v1675 = vpop.f32.mrb[0].mxu0
      %1676 = vmatprep.mubr.bf16.mxu0 0
      %1677 = vmatmul.mubr.bf16.gmra.mrb[0].mxu0 %v1549
      %v1678 = vpop.f32.mrb[0].mxu0
      %v1679 = vadd.f32 0.0, %v1678
      %v1680 = vpop.f32.mrb[0].mxu0
      %v1681 = vpop.f32.mrb[0].mxu0
      %v1682 = vadd.f32 0.0, %v1681
      %v1683 = vpop.f32.mrb[0].mxu0
      %1684 = vmatprep.mubr.bf16.mxu0 0
      %1685 = vmatmul.mubr.bf16.gmra.mrb[0].mxu0 %v1552
      %v1686 = vpop.f32.mrb[0].mxu0
      %v1687 = vadd.f32 0.0, %v1686
      %v1688 = vpop.f32.mrb[0].mxu0
      %v1689 = vpop.f32.mrb[0].mxu0
      %v1690 = vadd.f32 0.0, %v1689
      %v1691 = vpop.f32.mrb[0].mxu0
      %1692 = vmatprep.mubr.bf16.mxu0 0
      %1693 = vmatmul.mubr.bf16.gmra.mrb[0].mxu0 %v1555
      %v1694 = vpop.f32.mrb[0].mxu0
      %v1695 = vadd.f32 0.0, %v1694
      %v1696 = vpop.f32.mrb[0].mxu0
      %v1697 = vpop.f32.mrb[0].mxu0
      %v1698 = vadd.f32 0.0, %v1697
      %v1699 = vpop.f32.mrb[0].mxu0
      %1700 = vmatprep.mubr.bf16.mxu0 0
      %1701 = vmatmul.mubr.bf16.gmra.mrb[0].mxu0 %v1558
      %v1702 = vpop.f32.mrb[0].mxu0
      %v1703 = vadd.f32 0.0, %v1702
      %v1704 = vpop.f32.mrb[0].mxu0
      %v1705 = vpop.f32.mrb[0].mxu0
      %v1706 = vadd.f32 0.0, %v1705
      %v1707 = vpop.f32.mrb[0].mxu0
      %1708 = vmatprep.mubr.bf16.mxu0 0
      %1709 = vmatmul.mubr.bf16.gmra.mrb[0].mxu0 %v1561
      %v1710 = vpop.f32.mrb[0].mxu0
      %v1711 = vadd.f32 0.0, %v1710
      %v1712 = vpop.f32.mrb[0].mxu0
      %v1713 = vpop.f32.mrb[0].mxu0
      %v1714 = vadd.f32 0.0, %v1713
      %v1715 = vpop.f32.mrb[0].mxu0
      %1716 = vmatprep.mubr.bf16.mxu0 0
      %1717 = vmatmul.mubr.bf16.gmra.mrb[0].mxu0 %v1564
      %v1718 = vpop.f32.mrb[0].mxu0
      %v1719 = vadd.f32 0.0, %v1718
      %v1720 = vpop.f32.mrb[0].mxu0
      %v1721 = vpop.f32.mrb[0].mxu0
      %v1722 = vadd.f32 0.0, %v1721
      %v1723 = vpop.f32.mrb[0].mxu0
      %1724 = vmatprep.mubr.bf16.mxu0 0
      %1725 = vmatmul.mubr.bf16.gmra.mrb[0].mxu0 %v1567
      %v1726 = vpop.f32.mrb[0].mxu0
      %v1727 = vadd.f32 0.0, %v1726
      %v1728 = vpop.f32.mrb[0].mxu0
      %v1729 = vpop.f32.mrb[0].mxu0
      %v1730 = vadd.f32 0.0, %v1729
      %v1731 = vpop.f32.mrb[0].mxu0
      %1732 = vdwg.mxu0
      %v1733 = vadd.f32 %v1163, %v1607
      %v1734 = vadd.f32 %v1166, %v1610
      %v1735 = vadd.f32 %v1171, %v1615
      %v1736 = vadd.f32 %v1174, %v1618
      %v1737 = vadd.f32 %v1179, %v1623
      %v1738 = vadd.f32 %v1182, %v1626
      %v1739 = vadd.f32 %v1187, %v1631
      %v1740 = vadd.f32 %v1190, %v1634
      %v1741 = vadd.f32 %v1195, %v1639
      %v1742 = vadd.f32 %v1198, %v1642
      %v1743 = vadd.f32 %v1203, %v1647
      %v1744 = vadd.f32 %v1206, %v1650
      %v1745 = vadd.f32 %v1211, %v1655
      %v1746 = vadd.f32 %v1214, %v1658
      %v1747 = vadd.f32 %v1219, %v1663
      %v1748 = vadd.f32 %v1222, %v1666
      %v1749 = vadd.f32 %v1227, %v1671
      %v1750 = vadd.f32 %v1230, %v1674
      %v1751 = vadd.f32 %v1235, %v1679
      %v1752 = vadd.f32 %v1238, %v1682
      %v1753 = vadd.f32 %v1243, %v1687
      %v1754 = vadd.f32 %v1246, %v1690
      %v1755 = vadd.f32 %v1251, %v1695
      %v1756 = vadd.f32 %v1254, %v1698
      %v1757 = vadd.f32 %v1259, %v1703
      %v1758 = vadd.f32 %v1262, %v1706
      %v1759 = vadd.f32 %v1267, %v1711
      %v1760 = vadd.f32 %v1270, %v1714
      %v1761 = vadd.f32 %v1275, %v1719
      %v1762 = vadd.f32 %v1278, %v1722
      %v1763 = vadd.f32 %v1283, %v1727
      %v1764 = vadd.f32 %v1286, %v1730
      %s1765 = scalar_lea.vmem %s242, 12
      %v1766 = vld [vmem:[%s1765] sm:$0xf]
      %v1767 = vld [vmem:[%s1765 + $0x4] sm:$0xf]
      %v1768 = vld [vmem:[%s1765 + $0xc] sm:$0xf]
      %v1769 = vld [vmem:[%s1765 + $0x10] sm:$0xf]
      %v1770 = vld [vmem:[%s1765 + $0x18] sm:$0xf]
      %v1771 = vld [vmem:[%s1765 + $0x1c] sm:$0xf]
      %v1772 = vld [vmem:[%s1765 + $0x24] sm:$0xf]
      %v1773 = vld [vmem:[%s1765 + $0x28] sm:$0xf]
      %v1774 = vld [vmem:[%s1765 + $0x30] sm:$0xf]
      %v1775 = vld [vmem:[%s1765 + $0x34] sm:$0xf]
      %v1776 = vld [vmem:[%s1765 + $0x3c] sm:$0xf]
      %v1777 = vld [vmem:[%s1765 + $0x40] sm:$0xf]
      %v1778 = vld [vmem:[%s1765 + $0x48] sm:$0xf]
      %v1779 = vld [vmem:[%s1765 + $0x4c] sm:$0xf]
      %v1780 = vld [vmem:[%s1765 + $0x54] sm:$0xf]
      %v1781 = vld [vmem:[%s1765 + $0x58] sm:$0xf]
      %v1782 = vld [vmem:[%s1765 + $0x60] sm:$0xf]
      %v1783 = vld [vmem:[%s1765 + $0x64] sm:$0xf]
      %v1784 = vld [vmem:[%s1765 + $0x6c] sm:$0xf]
      %v1785 = vld [vmem:[%s1765 + $0x70] sm:$0xf]
      %v1786 = vld [vmem:[%s1765 + $0x78] sm:$0xf]
      %v1787 = vld [vmem:[%s1765 + $0x7c] sm:$0xf]
      %v1788 = vld [vmem:[%s1765 + $0x84] sm:$0xf]
      %v1789 = vld [vmem:[%s1765 + $0x88] sm:$0xf]
      %v1790 = vld [vmem:[%s1765 + $0x90] sm:$0xf]
      %v1791 = vld [vmem:[%s1765 + $0x94] sm:$0xf]
      %v1792 = vld [vmem:[%s1765 + $0x9c] sm:$0xf]
      %v1793 = vld [vmem:[%s1765 + $0xa0] sm:$0xf]
      %v1794 = vld [vmem:[%s1765 + $0xa8] sm:$0xf]
      %v1795 = vld [vmem:[%s1765 + $0xac] sm:$0xf]
      %v1796 = vld [vmem:[%s1765 + $0xb4] sm:$0xf]
      %v1797 = vld [vmem:[%s1765 + $0xb8] sm:$0xf]
      %s1798 = scalar_lea.vmem %s1, 60
      %v1799 = vld [vmem:[%s1798] sm:$0xf]
      %v1800 = vld [vmem:[%s1798 + $0x4] sm:$0xf]
      %v1801 = vld [vmem:[%s1798 + $0x8] sm:$0xf]
      %v1802 = vld [vmem:[%s1798 + $0xc] sm:$0xf]
      %v1803 = vld [vmem:[%s1798 + $0x10] sm:$0x3]
      %v1836 = vunpack.c.l.b16 %v1766
      %v1837 = vunpack.c.l.b16 %v1767
      %v1838 = vunpack.c.l.b16 %v1768
      %v1839 = vunpack.c.l.b16 %v1769
      %v1840 = vunpack.c.l.b16 %v1770
      %v1841 = vunpack.c.l.b16 %v1771
      %v1842 = vunpack.c.l.b16 %v1772
      %v1843 = vunpack.c.l.b16 %v1773
      %v1844 = vunpack.c.l.b16 %v1774
      %v1845 = vunpack.c.l.b16 %v1775
      %v1846 = vunpack.c.l.b16 %v1776
      %v1847 = vunpack.c.l.b16 %v1777
      %v1848 = vunpack.c.l.b16 %v1778
      %v1849 = vunpack.c.l.b16 %v1779
      %v1850 = vunpack.c.l.b16 %v1780
      %v1851 = vunpack.c.l.b16 %v1781
      %v1852 = vunpack.c.l.b16 %v1782
      %v1853 = vunpack.c.l.b16 %v1783
      %v1854 = vunpack.c.l.b16 %v1784
      %v1855 = vunpack.c.l.b16 %v1785
      %v1856 = vunpack.c.l.b16 %v1786
      %v1857 = vunpack.c.l.b16 %v1787
      %v1858 = vunpack.c.l.b16 %v1788
      %v1859 = vunpack.c.l.b16 %v1789
      %v1860 = vunpack.c.l.b16 %v1790
      %v1861 = vunpack.c.l.b16 %v1791
      %v1862 = vunpack.c.l.b16 %v1792
      %v1863 = vunpack.c.l.b16 %v1793
      %v1864 = vunpack.c.l.b16 %v1794
      %v1865 = vunpack.c.l.b16 %v1795
      %v1866 = vunpack.c.l.b16 %v1796
      %v1867 = vunpack.c.l.b16 %v1797
      %v1868 = vpack.c.b16 %v1837, %v1836
      %v1869 = vpack.c.b16 %v1839, %v1838
      %v1870 = vpack.c.b16 %v1841, %v1840
      %v1871 = vpack.c.b16 %v1843, %v1842
      %v1872 = vpack.c.b16 %v1845, %v1844
      %v1873 = vpack.c.b16 %v1847, %v1846
      %v1874 = vpack.c.b16 %v1849, %v1848
      %v1875 = vpack.c.b16 %v1851, %v1850
      %v1876 = vpack.c.b16 %v1853, %v1852
      %v1877 = vpack.c.b16 %v1855, %v1854
      %v1878 = vpack.c.b16 %v1857, %v1856
      %v1879 = vpack.c.b16 %v1859, %v1858
      %v1880 = vpack.c.b16 %v1861, %v1860
      %v1881 = vpack.c.b16 %v1863, %v1862
      %v1882 = vpack.c.b16 %v1865, %v1864
      %v1883 = vpack.c.b16 %v1867, %v1866
      %v1889 = vunpack.c.l.b16 %v1799
      %v1890 = vunpack.c.l.b16 %v1800
      %v1891 = vunpack.c.l.b16 %v1801
      %v1892 = vunpack.c.l.b16 %v1802
      %v1893 = vunpack.c.l.b16 %v1803
      %v1894 = vpack.c.b16 %v1890, %v1889
      %v1895 = vpack.c.b16 %v1892, %v1891
      %v1896 = vpack.c.b16 %v1893, %v1893
      %v1900 = vsel %vm768, %v1868, 0
      %v1903 = vsel %vm768, %v1869, 0
      %v1906 = vsel %vm768, %v1870, 0
      %v1909 = vsel %vm768, %v1871, 0
      %v1912 = vsel %vm768, %v1872, 0
      %v1915 = vsel %vm768, %v1873, 0
      %v1918 = vsel %vm768, %v1874, 0
      %v1921 = vsel %vm768, %v1875, 0
      %v1924 = vsel %vm768, %v1876, 0
      %v1927 = vsel %vm768, %v1877, 0
      %v1930 = vsel %vm768, %v1878, 0
      %v1933 = vsel %vm768, %v1879, 0
      %v1936 = vsel %vm768, %v1880, 0
      %v1939 = vsel %vm768, %v1881, 0
      %v1942 = vsel %vm768, %v1882, 0
      %v1945 = vsel %vm768, %v1883, 0
      %v1948 = vsel %vm817, %v1896, 0
      %1950 = vmatprep.subr.bf16.mxu0 0
      %1951 = vmatpush1.bf16.msra.mxu0 %v1894
      %1952 = vmatprep.subr.bf16.mxu0 0
      %1953 = vmatpush1.bf16.msra.mxu0 %v1895
      %1954 = vmatprep.subr.bf16.mxu0 0
      %1955 = vmatpush1.bf16.msra.mxu0 %v1948
      %1956 = vmatprep.subr.bf16.mxu0 0
      %1957 = vmatpush1.bf16.msra.mxu0 0
      %1958 = vmatprep.subr.bf16.mxu0 0
      %1959 = vmatpush1.bf16.msra.mxu0 0
      %1960 = vmatprep.subr.bf16.mxu0 0
      %1961 = vmatpush1.bf16.msra.mxu0 0
      %1962 = vmatprep.subr.bf16.mxu0 0
      %1963 = vmatpush1.bf16.msra.mxu0 0
      %1964 = vmatprep.subr.bf16.mxu0 0
      %1965 = vmatpush1.bf16.msra.mxu0 0
      %1966 = vmatprep.subr.bf16.mxu0 0
      %1967 = vmatpush1.bf16.msra.mxu0 0
      %1968 = vmatprep.subr.bf16.mxu0 0
      %1969 = vmatpush1.bf16.msra.mxu0 0
      %1970 = vmatprep.subr.bf16.mxu0 0
      %1971 = vmatpush1.bf16.msra.mxu0 0
      %1972 = vmatprep.subr.bf16.mxu0 0
      %1973 = vmatpush1.bf16.msra.mxu0 0
      %1974 = vmatprep.subr.bf16.mxu0 0
      %1975 = vmatpush1.bf16.msra.mxu0 0
      %1976 = vmatprep.subr.bf16.mxu0 0
      %1977 = vmatpush1.bf16.msra.mxu0 0
      %1978 = vmatprep.subr.bf16.mxu0 0
      %1979 = vmatpush1.bf16.msra.mxu0 0
      %1980 = vmatprep.subr.bf16.mxu0 0
      %1981 = vmatpush1.bf16.msra.mxu0 0
      %1982 = vmatprep.mubr.bf16.mxu0 0
      %1983 = vmatmul.mubr.bf16.gmra.mrb[0].mxu0 %v1900
      %v1984 = vpop.f32.mrb[0].mxu0
      %v1985 = vadd.f32 0.0, %v1984
      %v1986 = vpop.f32.mrb[0].mxu0
      %v1987 = vpop.f32.mrb[0].mxu0
      %v1988 = vadd.f32 0.0, %v1987
      %v1989 = vpop.f32.mrb[0].mxu0
      %1990 = vmatprep.mubr.bf16.mxu0 0
      %1991 = vmatmul.mubr.bf16.gmra.mrb[0].mxu0 %v1903
      %v1992 = vpop.f32.mrb[0].mxu0
      %v1993 = vadd.f32 0.0, %v1992
      %v1994 = vpop.f32.mrb[0].mxu0
      %v1995 = vpop.f32.mrb[0].mxu0
      %v1996 = vadd.f32 0.0, %v1995
      %v1997 = vpop.f32.mrb[0].mxu0
      %1998 = vmatprep.mubr.bf16.mxu0 0
      %1999 = vmatmul.mubr.bf16.gmra.mrb[0].mxu0 %v1906
      %v2000 = vpop.f32.mrb[0].mxu0
      %v2001 = vadd.f32 0.0, %v2000
      %v2002 = vpop.f32.mrb[0].mxu0
      %v2003 = vpop.f32.mrb[0].mxu0
      %v2004 = vadd.f32 0.0, %v2003
      %v2005 = vpop.f32.mrb[0].mxu0
      %2006 = vmatprep.mubr.bf16.mxu0 0
      %2007 = vmatmul.mubr.bf16.gmra.mrb[0].mxu0 %v1909
      %v2008 = vpop.f32.mrb[0].mxu0
      %v2009 = vadd.f32 0.0, %v2008
      %v2010 = vpop.f32.mrb[0].mxu0
      %v2011 = vpop.f32.mrb[0].mxu0
      %v2012 = vadd.f32 0.0, %v2011
      %v2013 = vpop.f32.mrb[0].mxu0
      %2014 = vmatprep.mubr.bf16.mxu0 0
      %2015 = vmatmul.mubr.bf16.gmra.mrb[0].mxu0 %v1912
      %v2016 = vpop.f32.mrb[0].mxu0
      %v2017 = vadd.f32 0.0, %v2016
      %v2018 = vpop.f32.mrb[0].mxu0
      %v2019 = vpop.f32.mrb[0].mxu0
      %v2020 = vadd.f32 0.0, %v2019
      %v2021 = vpop.f32.mrb[0].mxu0
      %2022 = vmatprep.mubr.bf16.mxu0 0
      %2023 = vmatmul.mubr.bf16.gmra.mrb[0].mxu0 %v1915
      %v2024 = vpop.f32.mrb[0].mxu0
      %v2025 = vadd.f32 0.0, %v2024
      %v2026 = vpop.f32.mrb[0].mxu0
      %v2027 = vpop.f32.mrb[0].mxu0
      %v2028 = vadd.f32 0.0, %v2027
      %v2029 = vpop.f32.mrb[0].mxu0
      %2030 = vmatprep.mubr.bf16.mxu0 0
      %2031 = vmatmul.mubr.bf16.gmra.mrb[0].mxu0 %v1918
      %v2032 = vpop.f32.mrb[0].mxu0
      %v2033 = vadd.f32 0.0, %v2032
      %v2034 = vpop.f32.mrb[0].mxu0
      %v2035 = vpop.f32.mrb[0].mxu0
      %v2036 = vadd.f32 0.0, %v2035
      %v2037 = vpop.f32.mrb[0].mxu0
      %2038 = vmatprep.mubr.bf16.mxu0 0
      %2039 = vmatmul.mubr.bf16.gmra.mrb[0].mxu0 %v1921
      %v2040 = vpop.f32.mrb[0].mxu0
      %v2041 = vadd.f32 0.0, %v2040
      %v2042 = vpop.f32.mrb[0].mxu0
      %v2043 = vpop.f32.mrb[0].mxu0
      %v2044 = vadd.f32 0.0, %v2043
      %v2045 = vpop.f32.mrb[0].mxu0
      %2046 = vmatprep.mubr.bf16.mxu0 0
      %2047 = vmatmul.mubr.bf16.gmra.mrb[0].mxu0 %v1924
      %v2048 = vpop.f32.mrb[0].mxu0
      %v2049 = vadd.f32 0.0, %v2048
      %v2050 = vpop.f32.mrb[0].mxu0
      %v2051 = vpop.f32.mrb[0].mxu0
      %v2052 = vadd.f32 0.0, %v2051
      %v2053 = vpop.f32.mrb[0].mxu0
      %2054 = vmatprep.mubr.bf16.mxu0 0
      %2055 = vmatmul.mubr.bf16.gmra.mrb[0].mxu0 %v1927
      %v2056 = vpop.f32.mrb[0].mxu0
      %v2057 = vadd.f32 0.0, %v2056
      %v2058 = vpop.f32.mrb[0].mxu0
      %v2059 = vpop.f32.mrb[0].mxu0
      %v2060 = vadd.f32 0.0, %v2059
      %v2061 = vpop.f32.mrb[0].mxu0
      %2062 = vmatprep.mubr.bf16.mxu0 0
      %2063 = vmatmul.mubr.bf16.gmra.mrb[0].mxu0 %v1930
      %v2064 = vpop.f32.mrb[0].mxu0
      %v2065 = vadd.f32 0.0, %v2064
      %v2066 = vpop.f32.mrb[0].mxu0
      %v2067 = vpop.f32.mrb[0].mxu0
      %v2068 = vadd.f32 0.0, %v2067
      %v2069 = vpop.f32.mrb[0].mxu0
      %2070 = vmatprep.mubr.bf16.mxu0 0
      %2071 = vmatmul.mubr.bf16.gmra.mrb[0].mxu0 %v1933
      %v2072 = vpop.f32.mrb[0].mxu0
      %v2073 = vadd.f32 0.0, %v2072
      %v2074 = vpop.f32.mrb[0].mxu0
      %v2075 = vpop.f32.mrb[0].mxu0
      %v2076 = vadd.f32 0.0, %v2075
      %v2077 = vpop.f32.mrb[0].mxu0
      %2078 = vmatprep.mubr.bf16.mxu0 0
      %2079 = vmatmul.mubr.bf16.gmra.mrb[0].mxu0 %v1936
      %v2080 = vpop.f32.mrb[0].mxu0
      %v2081 = vadd.f32 0.0, %v2080
      %v2082 = vpop.f32.mrb[0].mxu0
      %v2083 = vpop.f32.mrb[0].mxu0
      %v2084 = vadd.f32 0.0, %v2083
      %v2085 = vpop.f32.mrb[0].mxu0
      %2086 = vmatprep.mubr.bf16.mxu0 0
      %2087 = vmatmul.mubr.bf16.gmra.mrb[0].mxu0 %v1939
      %v2088 = vpop.f32.mrb[0].mxu0
      %v2089 = vadd.f32 0.0, %v2088
      %v2090 = vpop.f32.mrb[0].mxu0
      %v2091 = vpop.f32.mrb[0].mxu0
      %v2092 = vadd.f32 0.0, %v2091
      %v2093 = vpop.f32.mrb[0].mxu0
      %2094 = vmatprep.mubr.bf16.mxu0 0
      %2095 = vmatmul.mubr.bf16.gmra.mrb[0].mxu0 %v1942
      %v2096 = vpop.f32.mrb[0].mxu0
      %v2097 = vadd.f32 0.0, %v2096
      %v2098 = vpop.f32.mrb[0].mxu0
      %v2099 = vpop.f32.mrb[0].mxu0
      %v2100 = vadd.f32 0.0, %v2099
      %v2101 = vpop.f32.mrb[0].mxu0
      %2102 = vmatprep.mubr.bf16.mxu0 0
      %2103 = vmatmul.mubr.bf16.gmra.mrb[0].mxu0 %v1945
      %v2104 = vpop.f32.mrb[0].mxu0
      %v2105 = vadd.f32 0.0, %v2104
      %v2106 = vpop.f32.mrb[0].mxu0
      %v2107 = vpop.f32.mrb[0].mxu0
      %v2108 = vadd.f32 0.0, %v2107
      %v2109 = vpop.f32.mrb[0].mxu0
      %2110 = vdwg.mxu0
      %v2111 = vadd.f32 %v1733, %v1985
      %v2112 = vadd.f32 %v1734, %v1988
      %v2113 = vadd.f32 %v1735, %v1993
      %v2114 = vadd.f32 %v1736, %v1996
      %v2115 = vadd.f32 %v1737, %v2001
      %v2116 = vadd.f32 %v1738, %v2004
      %v2117 = vadd.f32 %v1739, %v2009
      %v2118 = vadd.f32 %v1740, %v2012
      %v2119 = vadd.f32 %v1741, %v2017
      %v2120 = vadd.f32 %v1742, %v2020
      %v2121 = vadd.f32 %v1743, %v2025
      %v2122 = vadd.f32 %v1744, %v2028
      %v2123 = vadd.f32 %v1745, %v2033
      %v2124 = vadd.f32 %v1746, %v2036
      %v2125 = vadd.f32 %v1747, %v2041
      %v2126 = vadd.f32 %v1748, %v2044
      %v2127 = vadd.f32 %v1749, %v2049
      %v2128 = vadd.f32 %v1750, %v2052
      %v2129 = vadd.f32 %v1751, %v2057
      %v2130 = vadd.f32 %v1752, %v2060
      %v2131 = vadd.f32 %v1753, %v2065
      %v2132 = vadd.f32 %v1754, %v2068
      %v2133 = vadd.f32 %v1755, %v2073
      %v2134 = vadd.f32 %v1756, %v2076
      %v2135 = vadd.f32 %v1757, %v2081
      %v2136 = vadd.f32 %v1758, %v2084
      %v2137 = vadd.f32 %v1759, %v2089
      %v2138 = vadd.f32 %v1760, %v2092
      %v2139 = vadd.f32 %v1761, %v2097
      %v2140 = vadd.f32 %v1762, %v2100
      %v2141 = vadd.f32 %v1763, %v2105
      %v2142 = vadd.f32 %v1764, %v2108
      %v2143 = vld [vmem:[%s1765] sm:$0xf]
      %v2144 = vld [vmem:[%s1765 + $0x4] sm:$0xf]
      %v2145 = vld [vmem:[%s1765 + $0x8] sm:$0x1]
      %v2146 = vld [vmem:[%s1765 + $0xc] sm:$0xf]
      %v2147 = vld [vmem:[%s1765 + $0x10] sm:$0xf]
      %v2148 = vld [vmem:[%s1765 + $0x14] sm:$0x1]
      %v2149 = vld [vmem:[%s1765 + $0x18] sm:$0xf]
      %v2150 = vld [vmem:[%s1765 + $0x1c] sm:$0xf]
      %v2151 = vld [vmem:[%s1765 + $0x20] sm:$0x1]
      %v2152 = vld [vmem:[%s1765 + $0x24] sm:$0xf]
      %v2153 = vld [vmem:[%s1765 + $0x28] sm:$0xf]
      %v2154 = vld [vmem:[%s1765 + $0x2c] sm:$0x1]
      %v2155 = vld [vmem:[%s1765 + $0x30] sm:$0xf]
      %v2156 = vld [vmem:[%s1765 + $0x34] sm:$0xf]
      %v2157 = vld [vmem:[%s1765 + $0x38] sm:$0x1]
      %v2158 = vld [vmem:[%s1765 + $0x3c] sm:$0xf]
      %v2159 = vld [vmem:[%s1765 + $0x40] sm:$0xf]
      %v2160 = vld [vmem:[%s1765 + $0x44] sm:$0x1]
      %v2161 = vld [vmem:[%s1765 + $0x48] sm:$0xf]
      %v2162 = vld [vmem:[%s1765 + $0x4c] sm:$0xf]
      %v2163 = vld [vmem:[%s1765 + $0x50] sm:$0x1]
      %v2164 = vld [vmem:[%s1765 + $0x54] sm:$0xf]
      %v2165 = vld [vmem:[%s1765 + $0x58] sm:$0xf]
      %v2166 = vld [vmem:[%s1765 + $0x5c] sm:$0x1]
      %v2167 = vld [vmem:[%s1765 + $0x60] sm:$0xf]
      %v2168 = vld [vmem:[%s1765 + $0x64] sm:$0xf]
      %v2169 = vld [vmem:[%s1765 + $0x68] sm:$0x1]
      %v2170 = vld [vmem:[%s1765 + $0x6c] sm:$0xf]
      %v2171 = vld [vmem:[%s1765 + $0x70] sm:$0xf]
      %v2172 = vld [vmem:[%s1765 + $0x74] sm:$0x1]
      %v2173 = vld [vmem:[%s1765 + $0x78] sm:$0xf]
      %v2174 = vld [vmem:[%s1765 + $0x7c] sm:$0xf]
      %v2175 = vld [vmem:[%s1765 + $0x80] sm:$0x1]
      %v2176 = vld [vmem:[%s1765 + $0x84] sm:$0xf]
      %v2177 = vld [vmem:[%s1765 + $0x88] sm:$0xf]
      %v2178 = vld [vmem:[%s1765 + $0x8c] sm:$0x1]
      %v2179 = vld [vmem:[%s1765 + $0x90] sm:$0xf]
      %v2180 = vld [vmem:[%s1765 + $0x94] sm:$0xf]
      %v2181 = vld [vmem:[%s1765 + $0x98] sm:$0x1]
      %v2182 = vld [vmem:[%s1765 + $0x9c] sm:$0xf]
      %v2183 = vld [vmem:[%s1765 + $0xa0] sm:$0xf]
      %v2184 = vld [vmem:[%s1765 + $0xa4] sm:$0x1]
      %v2185 = vld [vmem:[%s1765 + $0xa8] sm:$0xf]
      %v2186 = vld [vmem:[%s1765 + $0xac] sm:$0xf]
      %v2187 = vld [vmem:[%s1765 + $0xb0] sm:$0x1]
      %v2188 = vld [vmem:[%s1765 + $0xb4] sm:$0xf]
      %v2189 = vld [vmem:[%s1765 + $0xb8] sm:$0xf]
      %v2190 = vld [vmem:[%s1765 + $0xbc] sm:$0x1]
      %v2192 = vshrl.u32 %v2143, 16
      %v2194 = vrot.slane %v2192, 4
      %v2195 = vshll.u32 %v2143, 16
      %v2197 = vrot.slane %v2195, 5
      %v2198 = vor.u32 %v2194, %v2197
      %v2199 = vrot.slane %v2198, 4
      %v2201 = vshll.u32 %v2144, 16
      %v2203 = vrot.slane %v2201, 5
      %v2204 = vsel %vm314, %v2199, %v2203
      %v2205 = vshrl.u32 %v2144, 16
      %v2207 = vrot.slane %v2205, 4
      %v2208 = vor.u32 %v2207, %v2203
      %v2209 = vrot.slane %v2208, 4
      %v2211 = vshll.u32 %v2145, 16
      %v2213 = vrot.slane %v2211, 5
      %v2214 = vsel %vm314, %v2209, %v2213
      %v2216 = vshrl.u32 %v2146, 16
      %v2218 = vrot.slane %v2216, 4
      %v2219 = vshll.u32 %v2146, 16
      %v2221 = vrot.slane %v2219, 5
      %v2222 = vor.u32 %v2218, %v2221
      %v2223 = vrot.slane %v2222, 4
      %v2225 = vshll.u32 %v2147, 16
      %v2227 = vrot.slane %v2225, 5
      %v2228 = vsel %vm314, %v2223, %v2227
      %v2229 = vshrl.u32 %v2147, 16
      %v2231 = vrot.slane %v2229, 4
      %v2232 = vor.u32 %v2231, %v2227
      %v2233 = vrot.slane %v2232, 4
      %v2235 = vshll.u32 %v2148, 16
      %v2237 = vrot.slane %v2235, 5
      %v2238 = vsel %vm314, %v2233, %v2237
      %v2240 = vshrl.u32 %v2149, 16
      %v2242 = vrot.slane %v2240, 4
      %v2243 = vshll.u32 %v2149, 16
      %v2245 = vrot.slane %v2243, 5
      %v2246 = vor.u32 %v2242, %v2245
      %v2247 = vrot.slane %v2246, 4
      %v2249 = vshll.u32 %v2150, 16
      %v2251 = vrot.slane %v2249, 5
      %v2252 = vsel %vm314, %v2247, %v2251
      %v2253 = vshrl.u32 %v2150, 16
      %v2255 = vrot.slane %v2253, 4
      %v2256 = vor.u32 %v2255, %v2251
      %v2257 = vrot.slane %v2256, 4
      %v2259 = vshll.u32 %v2151, 16
      %v2261 = vrot.slane %v2259, 5
      %v2262 = vsel %vm314, %v2257, %v2261
      %v2264 = vshrl.u32 %v2152, 16
      %v2266 = vrot.slane %v2264, 4
      %v2267 = vshll.u32 %v2152, 16
      %v2269 = vrot.slane %v2267, 5
      %v2270 = vor.u32 %v2266, %v2269
      %v2271 = vrot.slane %v2270, 4
      %v2273 = vshll.u32 %v2153, 16
      %v2275 = vrot.slane %v2273, 5
      %v2276 = vsel %vm314, %v2271, %v2275
      %v2277 = vshrl.u32 %v2153, 16
      %v2279 = vrot.slane %v2277, 4
      %v2280 = vor.u32 %v2279, %v2275
      %v2281 = vrot.slane %v2280, 4
      %v2283 = vshll.u32 %v2154, 16
      %v2285 = vrot.slane %v2283, 5
      %v2286 = vsel %vm314, %v2281, %v2285
      %v2288 = vshrl.u32 %v2155, 16
      %v2290 = vrot.slane %v2288, 4
      %v2291 = vshll.u32 %v2155, 16
      %v2293 = vrot.slane %v2291, 5
      %v2294 = vor.u32 %v2290, %v2293
      %v2295 = vrot.slane %v2294, 4
      %v2297 = vshll.u32 %v2156, 16
      %v2299 = vrot.slane %v2297, 5
      %v2300 = vsel %vm314, %v2295, %v2299
      %v2301 = vshrl.u32 %v2156, 16
      %v2303 = vrot.slane %v2301, 4
      %v2304 = vor.u32 %v2303, %v2299
      %v2305 = vrot.slane %v2304, 4
      %v2307 = vshll.u32 %v2157, 16
      %v2309 = vrot.slane %v2307, 5
      %v2310 = vsel %vm314, %v2305, %v2309
      %v2312 = vshrl.u32 %v2158, 16
      %v2314 = vrot.slane %v2312, 4
      %v2315 = vshll.u32 %v2158, 16
      %v2317 = vrot.slane %v2315, 5
      %v2318 = vor.u32 %v2314, %v2317
      %v2319 = vrot.slane %v2318, 4
      %v2321 = vshll.u32 %v2159, 16
      %v2323 = vrot.slane %v2321, 5
      %v2324 = vsel %vm314, %v2319, %v2323
      %v2325 = vshrl.u32 %v2159, 16
      %v2327 = vrot.slane %v2325, 4
      %v2328 = vor.u32 %v2327, %v2323
      %v2329 = vrot.slane %v2328, 4
      %v2331 = vshll.u32 %v2160, 16
      %v2333 = vrot.slane %v2331, 5
      %v2334 = vsel %vm314, %v2329, %v2333
      %v2336 = vshrl.u32 %v2161, 16
      %v2338 = vrot.slane %v2336, 4
      %v2339 = vshll.u32 %v2161, 16
      %v2341 = vrot.slane %v2339, 5
      %v2342 = vor.u32 %v2338, %v2341
      %v2343 = vrot.slane %v2342, 4
      %v2345 = vshll.u32 %v2162, 16
      %v2347 = vrot.slane %v2345, 5
      %v2348 = vsel %vm314, %v2343, %v2347
      %v2349 = vshrl.u32 %v2162, 16
      %v2351 = vrot.slane %v2349, 4
      %v2352 = vor.u32 %v2351, %v2347
      %v2353 = vrot.slane %v2352, 4
      %v2355 = vshll.u32 %v2163, 16
      %v2357 = vrot.slane %v2355, 5
      %v2358 = vsel %vm314, %v2353, %v2357
      %v2360 = vshrl.u32 %v2164, 16
      %v2362 = vrot.slane %v2360, 4
      %v2363 = vshll.u32 %v2164, 16
      %v2365 = vrot.slane %v2363, 5
      %v2366 = vor.u32 %v2362, %v2365
      %v2367 = vrot.slane %v2366, 4
      %v2369 = vshll.u32 %v2165, 16
      %v2371 = vrot.slane %v2369, 5
      %v2372 = vsel %vm314, %v2367, %v2371
      %v2373 = vshrl.u32 %v2165, 16
      %v2375 = vrot.slane %v2373, 4
      %v2376 = vor.u32 %v2375, %v2371
      %v2377 = vrot.slane %v2376, 4
      %v2379 = vshll.u32 %v2166, 16
      %v2381 = vrot.slane %v2379, 5
      %v2382 = vsel %vm314, %v2377, %v2381
      %v2384 = vshrl.u32 %v2167, 16
      %v2386 = vrot.slane %v2384, 4
      %v2387 = vshll.u32 %v2167, 16
      %v2389 = vrot.slane %v2387, 5
      %v2390 = vor.u32 %v2386, %v2389
      %v2391 = vrot.slane %v2390, 4
      %v2393 = vshll.u32 %v2168, 16
      %v2395 = vrot.slane %v2393, 5
      %v2396 = vsel %vm314, %v2391, %v2395
      %v2397 = vshrl.u32 %v2168, 16
      %v2399 = vrot.slane %v2397, 4
      %v2400 = vor.u32 %v2399, %v2395
      %v2401 = vrot.slane %v2400, 4
      %v2403 = vshll.u32 %v2169, 16
      %v2405 = vrot.slane %v2403, 5
      %v2406 = vsel %vm314, %v2401, %v2405
      %v2408 = vshrl.u32 %v2170, 16
      %v2410 = vrot.slane %v2408, 4
      %v2411 = vshll.u32 %v2170, 16
      %v2413 = vrot.slane %v2411, 5
      %v2414 = vor.u32 %v2410, %v2413
      %v2415 = vrot.slane %v2414, 4
      %v2417 = vshll.u32 %v2171, 16
      %v2419 = vrot.slane %v2417, 5
      %v2420 = vsel %vm314, %v2415, %v2419
      %v2421 = vshrl.u32 %v2171, 16
      %v2423 = vrot.slane %v2421, 4
      %v2424 = vor.u32 %v2423, %v2419
      %v2425 = vrot.slane %v2424, 4
      %v2427 = vshll.u32 %v2172, 16
      %v2429 = vrot.slane %v2427, 5
      %v2430 = vsel %vm314, %v2425, %v2429
      %v2432 = vshrl.u32 %v2173, 16
      %v2434 = vrot.slane %v2432, 4
      %v2435 = vshll.u32 %v2173, 16
      %v2437 = vrot.slane %v2435, 5
      %v2438 = vor.u32 %v2434, %v2437
      %v2439 = vrot.slane %v2438, 4
      %v2441 = vshll.u32 %v2174, 16
      %v2443 = vrot.slane %v2441, 5
      %v2444 = vsel %vm314, %v2439, %v2443
      %v2445 = vshrl.u32 %v2174, 16
      %v2447 = vrot.slane %v2445, 4
      %v2448 = vor.u32 %v2447, %v2443
      %v2449 = vrot.slane %v2448, 4
      %v2451 = vshll.u32 %v2175, 16
      %v2453 = vrot.slane %v2451, 5
      %v2454 = vsel %vm314, %v2449, %v2453
      %v2456 = vshrl.u32 %v2176, 16
      %v2458 = vrot.slane %v2456, 4
      %v2459 = vshll.u32 %v2176, 16
      %v2461 = vrot.slane %v2459, 5
      %v2462 = vor.u32 %v2458, %v2461
      %v2463 = vrot.slane %v2462, 4
      %v2465 = vshll.u32 %v2177, 16
      %v2467 = vrot.slane %v2465, 5
      %v2468 = vsel %vm314, %v2463, %v2467
      %v2469 = vshrl.u32 %v2177, 16
      %v2471 = vrot.slane %v2469, 4
      %v2472 = vor.u32 %v2471, %v2467
      %v2473 = vrot.slane %v2472, 4
      %v2475 = vshll.u32 %v2178, 16
      %v2477 = vrot.slane %v2475, 5
      %v2478 = vsel %vm314, %v2473, %v2477
      %v2480 = vshrl.u32 %v2179, 16
      %v2482 = vrot.slane %v2480, 4
      %v2483 = vshll.u32 %v2179, 16
      %v2485 = vrot.slane %v2483, 5
      %v2486 = vor.u32 %v2482, %v2485
      %v2487 = vrot.slane %v2486, 4
      %v2489 = vshll.u32 %v2180, 16
      %v2491 = vrot.slane %v2489, 5
      %v2492 = vsel %vm314, %v2487, %v2491
      %v2493 = vshrl.u32 %v2180, 16
      %v2495 = vrot.slane %v2493, 4
      %v2496 = vor.u32 %v2495, %v2491
      %v2497 = vrot.slane %v2496, 4
      %v2499 = vshll.u32 %v2181, 16
      %v2501 = vrot.slane %v2499, 5
      %v2502 = vsel %vm314, %v2497, %v2501
      %v2504 = vshrl.u32 %v2182, 16
      %v2506 = vrot.slane %v2504, 4
      %v2507 = vshll.u32 %v2182, 16
      %v2509 = vrot.slane %v2507, 5
      %v2510 = vor.u32 %v2506, %v2509
      %v2511 = vrot.slane %v2510, 4
      %v2513 = vshll.u32 %v2183, 16
      %v2515 = vrot.slane %v2513, 5
      %v2516 = vsel %vm314, %v2511, %v2515
      %v2517 = vshrl.u32 %v2183, 16
      %v2519 = vrot.slane %v2517, 4
      %v2520 = vor.u32 %v2519, %v2515
      %v2521 = vrot.slane %v2520, 4
      %v2523 = vshll.u32 %v2184, 16
      %v2525 = vrot.slane %v2523, 5
      %v2526 = vsel %vm314, %v2521, %v2525
      %v2528 = vshrl.u32 %v2185, 16
      %v2530 = vrot.slane %v2528, 4
      %v2531 = vshll.u32 %v2185, 16
      %v2533 = vrot.slane %v2531, 5
      %v2534 = vor.u32 %v2530, %v2533
      %v2535 = vrot.slane %v2534, 4
      %v2537 = vshll.u32 %v2186, 16
      %v2539 = vrot.slane %v2537, 5
      %v2540 = vsel %vm314, %v2535, %v2539
      %v2541 = vshrl.u32 %v2186, 16
      %v2543 = vrot.slane %v2541, 4
      %v2544 = vor.u32 %v2543, %v2539
      %v2545 = vrot.slane %v2544, 4
      %v2547 = vshll.u32 %v2187, 16
      %v2549 = vrot.slane %v2547, 5
      %v2550 = vsel %vm314, %v2545, %v2549
      %v2552 = vshrl.u32 %v2188, 16
      %v2554 = vrot.slane %v2552, 4
      %v2555 = vshll.u32 %v2188, 16
      %v2557 = vrot.slane %v2555, 5
      %v2558 = vor.u32 %v2554, %v2557
      %v2559 = vrot.slane %v2558, 4
      %v2561 = vshll.u32 %v2189, 16
      %v2563 = vrot.slane %v2561, 5
      %v2564 = vsel %vm314, %v2559, %v2563
      %v2565 = vshrl.u32 %v2189, 16
      %v2567 = vrot.slane %v2565, 4
      %v2568 = vor.u32 %v2567, %v2563
      %v2569 = vrot.slane %v2568, 4
      %v2571 = vshll.u32 %v2190, 16
      %v2573 = vrot.slane %v2571, 5
      %v2574 = vsel %vm314, %v2569, %v2573
      %s2575 = scalar_lea.vmem %s1, 80
      %v2576 = vld [vmem:[%s2575] sm:$0xf]
      %v2577 = vld [vmem:[%s2575 + $0x4] sm:$0xf]
      %v2578 = vld [vmem:[%s2575 + $0x8] sm:$0xf]
      %v2579 = vld [vmem:[%s2575 + $0xc] sm:$0xf]
      %v2580 = vld [vmem:[%s2575 + $0x10] sm:$0x3]
      %v2581 = vunpack.c.l.b16 %v2204
      %v2582 = vunpack.c.l.b16 %v2214
      %v2583 = vunpack.c.l.b16 %v2228
      %v2584 = vunpack.c.l.b16 %v2238
      %v2585 = vunpack.c.l.b16 %v2252
      %v2586 = vunpack.c.l.b16 %v2262
      %v2587 = vunpack.c.l.b16 %v2276
      %v2588 = vunpack.c.l.b16 %v2286
      %v2589 = vunpack.c.l.b16 %v2300
      %v2590 = vunpack.c.l.b16 %v2310
      %v2591 = vunpack.c.l.b16 %v2324
      %v2592 = vunpack.c.l.b16 %v2334
      %v2593 = vunpack.c.l.b16 %v2348
      %v2594 = vunpack.c.l.b16 %v2358
      %v2595 = vunpack.c.l.b16 %v2372
      %v2596 = vunpack.c.l.b16 %v2382
      %v2597 = vunpack.c.l.b16 %v2396
      %v2598 = vunpack.c.l.b16 %v2406
      %v2599 = vunpack.c.l.b16 %v2420
      %v2600 = vunpack.c.l.b16 %v2430
      %v2601 = vunpack.c.l.b16 %v2444
      %v2602 = vunpack.c.l.b16 %v2454
      %v2603 = vunpack.c.l.b16 %v2468
      %v2604 = vunpack.c.l.b16 %v2478
      %v2605 = vunpack.c.l.b16 %v2492
      %v2606 = vunpack.c.l.b16 %v2502
      %v2607 = vunpack.c.l.b16 %v2516
      %v2608 = vunpack.c.l.b16 %v2526
      %v2609 = vunpack.c.l.b16 %v2540
      %v2610 = vunpack.c.l.b16 %v2550
      %v2611 = vunpack.c.l.b16 %v2564
      %v2612 = vunpack.c.l.b16 %v2574
      %v2613 = vpack.c.b16 %v2582, %v2581
      %v2614 = vpack.c.b16 %v2584, %v2583
      %v2615 = vpack.c.b16 %v2586, %v2585
      %v2616 = vpack.c.b16 %v2588, %v2587
      %v2617 = vpack.c.b16 %v2590, %v2589
      %v2618 = vpack.c.b16 %v2592, %v2591
      %v2619 = vpack.c.b16 %v2594, %v2593
      %v2620 = vpack.c.b16 %v2596, %v2595
      %v2621 = vpack.c.b16 %v2598, %v2597
      %v2622 = vpack.c.b16 %v2600, %v2599
      %v2623 = vpack.c.b16 %v2602, %v2601
      %v2624 = vpack.c.b16 %v2604, %v2603
      %v2625 = vpack.c.b16 %v2606, %v2605
      %v2626 = vpack.c.b16 %v2608, %v2607
      %v2627 = vpack.c.b16 %v2610, %v2609
      %v2628 = vpack.c.b16 %v2612, %v2611
      %v2634 = vunpack.c.l.b16 %v2576
      %v2635 = vunpack.c.l.b16 %v2577
      %v2636 = vunpack.c.l.b16 %v2578
      %v2637 = vunpack.c.l.b16 %v2579
      %v2638 = vunpack.c.l.b16 %v2580
      %v2639 = vpack.c.b16 %v2635, %v2634
      %v2640 = vpack.c.b16 %v2637, %v2636
      %v2641 = vpack.c.b16 %v2638, %v2638
      %v2645 = vsel %vm768, %v2613, 0
      %v2648 = vsel %vm768, %v2614, 0
      %v2651 = vsel %vm768, %v2615, 0
      %v2654 = vsel %vm768, %v2616, 0
      %v2657 = vsel %vm768, %v2617, 0
      %v2660 = vsel %vm768, %v2618, 0
      %v2663 = vsel %vm768, %v2619, 0
      %v2666 = vsel %vm768, %v2620, 0
      %v2669 = vsel %vm768, %v2621, 0
      %v2672 = vsel %vm768, %v2622, 0
      %v2675 = vsel %vm768, %v2623, 0
      %v2678 = vsel %vm768, %v2624, 0
      %v2681 = vsel %vm768, %v2625, 0
      %v2684 = vsel %vm768, %v2626, 0
      %v2687 = vsel %vm768, %v2627, 0
      %v2690 = vsel %vm768, %v2628, 0
      %v2693 = vsel %vm817, %v2641, 0
      %2695 = vmatprep.subr.bf16.mxu0 0
      %2696 = vmatpush1.bf16.msra.mxu0 %v2639
      %2697 = vmatprep.subr.bf16.mxu0 0
      %2698 = vmatpush1.bf16.msra.mxu0 %v2640
      %2699 = vmatprep.subr.bf16.mxu0 0
      %2700 = vmatpush1.bf16.msra.mxu0 %v2693
      %2701 = vmatprep.subr.bf16.mxu0 0
      %2702 = vmatpush1.bf16.msra.mxu0 0
      %2703 = vmatprep.subr.bf16.mxu0 0
      %2704 = vmatpush1.bf16.msra.mxu0 0
      %2705 = vmatprep.subr.bf16.mxu0 0
      %2706 = vmatpush1.bf16.msra.mxu0 0
      %2707 = vmatprep.subr.bf16.mxu0 0
      %2708 = vmatpush1.bf16.msra.mxu0 0
      %2709 = vmatprep.subr.bf16.mxu0 0
      %2710 = vmatpush1.bf16.msra.mxu0 0
      %2711 = vmatprep.subr.bf16.mxu0 0
      %2712 = vmatpush1.bf16.msra.mxu0 0
      %2713 = vmatprep.subr.bf16.mxu0 0
      %2714 = vmatpush1.bf16.msra.mxu0 0
      %2715 = vmatprep.subr.bf16.mxu0 0
      %2716 = vmatpush1.bf16.msra.mxu0 0
      %2717 = vmatprep.subr.bf16.mxu0 0
      %2718 = vmatpush1.bf16.msra.mxu0 0
      %2719 = vmatprep.subr.bf16.mxu0 0
      %2720 = vmatpush1.bf16.msra.mxu0 0
      %2721 = vmatprep.subr.bf16.mxu0 0
      %2722 = vmatpush1.bf16.msra.mxu0 0
      %2723 = vmatprep.subr.bf16.mxu0 0
      %2724 = vmatpush1.bf16.msra.mxu0 0
      %2725 = vmatprep.subr.bf16.mxu0 0
      %2726 = vmatpush1.bf16.msra.mxu0 0
      %2727 = vmatprep.mubr.bf16.mxu0 0
      %2728 = vmatmul.mubr.bf16.gmra.mrb[0].mxu0 %v2645
      %v2729 = vpop.f32.mrb[0].mxu0
      %v2730 = vadd.f32 0.0, %v2729
      %v2731 = vpop.f32.mrb[0].mxu0
      %v2732 = vpop.f32.mrb[0].mxu0
      %v2733 = vadd.f32 0.0, %v2732
      %v2734 = vpop.f32.mrb[0].mxu0
      %2735 = vmatprep.mubr.bf16.mxu0 0
      %2736 = vmatmul.mubr.bf16.gmra.mrb[0].mxu0 %v2648
      %v2737 = vpop.f32.mrb[0].mxu0
      %v2738 = vadd.f32 0.0, %v2737
      %v2739 = vpop.f32.mrb[0].mxu0
      %v2740 = vpop.f32.mrb[0].mxu0
      %v2741 = vadd.f32 0.0, %v2740
      %v2742 = vpop.f32.mrb[0].mxu0
      %2743 = vmatprep.mubr.bf16.mxu0 0
      %2744 = vmatmul.mubr.bf16.gmra.mrb[0].mxu0 %v2651
      %v2745 = vpop.f32.mrb[0].mxu0
      %v2746 = vadd.f32 0.0, %v2745
      %v2747 = vpop.f32.mrb[0].mxu0
      %v2748 = vpop.f32.mrb[0].mxu0
      %v2749 = vadd.f32 0.0, %v2748
      %v2750 = vpop.f32.mrb[0].mxu0
      %2751 = vmatprep.mubr.bf16.mxu0 0
      %2752 = vmatmul.mubr.bf16.gmra.mrb[0].mxu0 %v2654
      %v2753 = vpop.f32.mrb[0].mxu0
      %v2754 = vadd.f32 0.0, %v2753
      %v2755 = vpop.f32.mrb[0].mxu0
      %v2756 = vpop.f32.mrb[0].mxu0
      %v2757 = vadd.f32 0.0, %v2756
      %v2758 = vpop.f32.mrb[0].mxu0
      %2759 = vmatprep.mubr.bf16.mxu0 0
      %2760 = vmatmul.mubr.bf16.gmra.mrb[0].mxu0 %v2657
      %v2761 = vpop.f32.mrb[0].mxu0
      %v2762 = vadd.f32 0.0, %v2761
      %v2763 = vpop.f32.mrb[0].mxu0
      %v2764 = vpop.f32.mrb[0].mxu0
      %v2765 = vadd.f32 0.0, %v2764
      %v2766 = vpop.f32.mrb[0].mxu0
      %2767 = vmatprep.mubr.bf16.mxu0 0
      %2768 = vmatmul.mubr.bf16.gmra.mrb[0].mxu0 %v2660
      %v2769 = vpop.f32.mrb[0].mxu0
      %v2770 = vadd.f32 0.0, %v2769
      %v2771 = vpop.f32.mrb[0].mxu0
      %v2772 = vpop.f32.mrb[0].mxu0
      %v2773 = vadd.f32 0.0, %v2772
      %v2774 = vpop.f32.mrb[0].mxu0
      %2775 = vmatprep.mubr.bf16.mxu0 0
      %2776 = vmatmul.mubr.bf16.gmra.mrb[0].mxu0 %v2663
      %v2777 = vpop.f32.mrb[0].mxu0
      %v2778 = vadd.f32 0.0, %v2777
      %v2779 = vpop.f32.mrb[0].mxu0
      %v2780 = vpop.f32.mrb[0].mxu0
      %v2781 = vadd.f32 0.0, %v2780
      %v2782 = vpop.f32.mrb[0].mxu0
      %2783 = vmatprep.mubr.bf16.mxu0 0
      %2784 = vmatmul.mubr.bf16.gmra.mrb[0].mxu0 %v2666
      %v2785 = vpop.f32.mrb[0].mxu0
      %v2786 = vadd.f32 0.0, %v2785
      %v2787 = vpop.f32.mrb[0].mxu0
      %v2788 = vpop.f32.mrb[0].mxu0
      %v2789 = vadd.f32 0.0, %v2788
      %v2790 = vpop.f32.mrb[0].mxu0
      %2791 = vmatprep.mubr.bf16.mxu0 0
      %2792 = vmatmul.mubr.bf16.gmra.mrb[0].mxu0 %v2669
      %v2793 = vpop.f32.mrb[0].mxu0
      %v2794 = vadd.f32 0.0, %v2793
      %v2795 = vpop.f32.mrb[0].mxu0
      %v2796 = vpop.f32.mrb[0].mxu0
      %v2797 = vadd.f32 0.0, %v2796
      %v2798 = vpop.f32.mrb[0].mxu0
      %2799 = vmatprep.mubr.bf16.mxu0 0
      %2800 = vmatmul.mubr.bf16.gmra.mrb[0].mxu0 %v2672
      %v2801 = vpop.f32.mrb[0].mxu0
      %v2802 = vadd.f32 0.0, %v2801
      %v2803 = vpop.f32.mrb[0].mxu0
      %v2804 = vpop.f32.mrb[0].mxu0
      %v2805 = vadd.f32 0.0, %v2804
      %v2806 = vpop.f32.mrb[0].mxu0
      %2807 = vmatprep.mubr.bf16.mxu0 0
      %2808 = vmatmul.mubr.bf16.gmra.mrb[0].mxu0 %v2675
      %v2809 = vpop.f32.mrb[0].mxu0
      %v2810 = vadd.f32 0.0, %v2809
      %v2811 = vpop.f32.mrb[0].mxu0
      %v2812 = vpop.f32.mrb[0].mxu0
      %v2813 = vadd.f32 0.0, %v2812
      %v2814 = vpop.f32.mrb[0].mxu0
      %2815 = vmatprep.mubr.bf16.mxu0 0
      %2816 = vmatmul.mubr.bf16.gmra.mrb[0].mxu0 %v2678
      %v2817 = vpop.f32.mrb[0].mxu0
      %v2818 = vadd.f32 0.0, %v2817
      %v2819 = vpop.f32.mrb[0].mxu0
      %v2820 = vpop.f32.mrb[0].mxu0
      %v2821 = vadd.f32 0.0, %v2820
      %v2822 = vpop.f32.mrb[0].mxu0
      %2823 = vmatprep.mubr.bf16.mxu0 0
      %2824 = vmatmul.mubr.bf16.gmra.mrb[0].mxu0 %v2681
      %v2825 = vpop.f32.mrb[0].mxu0
      %v2826 = vadd.f32 0.0, %v2825
      %v2827 = vpop.f32.mrb[0].mxu0
      %v2828 = vpop.f32.mrb[0].mxu0
      %v2829 = vadd.f32 0.0, %v2828
      %v2830 = vpop.f32.mrb[0].mxu0
      %2831 = vmatprep.mubr.bf16.mxu0 0
      %2832 = vmatmul.mubr.bf16.gmra.mrb[0].mxu0 %v2684
      %v2833 = vpop.f32.mrb[0].mxu0
      %v2834 = vadd.f32 0.0, %v2833
      %v2835 = vpop.f32.mrb[0].mxu0
      %v2836 = vpop.f32.mrb[0].mxu0
      %v2837 = vadd.f32 0.0, %v2836
      %v2838 = vpop.f32.mrb[0].mxu0
      %2839 = vmatprep.mubr.bf16.mxu0 0
      %2840 = vmatmul.mubr.bf16.gmra.mrb[0].mxu0 %v2687
      %v2841 = vpop.f32.mrb[0].mxu0
      %v2842 = vadd.f32 0.0, %v2841
      %v2843 = vpop.f32.mrb[0].mxu0
      %v2844 = vpop.f32.mrb[0].mxu0
      %v2845 = vadd.f32 0.0, %v2844
      %v2846 = vpop.f32.mrb[0].mxu0
      %2847 = vmatprep.mubr.bf16.mxu0 0
      %2848 = vmatmul.mubr.bf16.gmra.mrb[0].mxu0 %v2690
      %v2849 = vpop.f32.mrb[0].mxu0
      %v2850 = vadd.f32 0.0, %v2849
      %v2851 = vpop.f32.mrb[0].mxu0
      %v2852 = vpop.f32.mrb[0].mxu0
      %v2853 = vadd.f32 0.0, %v2852
      %v2854 = vpop.f32.mrb[0].mxu0
      %2855 = vdwg.mxu0
      %v2856 = vadd.f32 %v2111, %v2730
      %v2857 = vadd.f32 %v2112, %v2733
      %v2858 = vadd.f32 %v2113, %v2738
      %v2859 = vadd.f32 %v2114, %v2741
      %v2860 = vadd.f32 %v2115, %v2746
      %v2861 = vadd.f32 %v2116, %v2749
      %v2862 = vadd.f32 %v2117, %v2754
      %v2863 = vadd.f32 %v2118, %v2757
      %v2864 = vadd.f32 %v2119, %v2762
      %v2865 = vadd.f32 %v2120, %v2765
      %v2866 = vadd.f32 %v2121, %v2770
      %v2867 = vadd.f32 %v2122, %v2773
      %v2868 = vadd.f32 %v2123, %v2778
      %v2869 = vadd.f32 %v2124, %v2781
      %v2870 = vadd.f32 %v2125, %v2786
      %v2871 = vadd.f32 %v2126, %v2789
      %v2872 = vadd.f32 %v2127, %v2794
      %v2873 = vadd.f32 %v2128, %v2797
      %v2874 = vadd.f32 %v2129, %v2802
      %v2875 = vadd.f32 %v2130, %v2805
      %v2876 = vadd.f32 %v2131, %v2810
      %v2877 = vadd.f32 %v2132, %v2813
      %v2878 = vadd.f32 %v2133, %v2818
      %v2879 = vadd.f32 %v2134, %v2821
      %v2880 = vadd.f32 %v2135, %v2826
      %v2881 = vadd.f32 %v2136, %v2829
      %v2882 = vadd.f32 %v2137, %v2834
      %v2883 = vadd.f32 %v2138, %v2837
      %v2884 = vadd.f32 %v2139, %v2842
      %v2885 = vadd.f32 %v2140, %v2845
      %v2886 = vadd.f32 %v2141, %v2850
      %v2887 = vadd.f32 %v2142, %v2853
      %v2888 = vld [vmem:[%s1765] sm:$0xe]
      %v2889 = vld [vmem:[%s1765 + $0xc] sm:$0xe]
      %v2890 = vld [vmem:[%s1765 + $0x18] sm:$0xe]
      %v2891 = vld [vmem:[%s1765 + $0x24] sm:$0xe]
      %v2892 = vld [vmem:[%s1765 + $0x30] sm:$0xe]
      %v2893 = vld [vmem:[%s1765 + $0x3c] sm:$0xe]
      %v2894 = vld [vmem:[%s1765 + $0x48] sm:$0xe]
      %v2895 = vld [vmem:[%s1765 + $0x54] sm:$0xe]
      %v2896 = vld [vmem:[%s1765 + $0x60] sm:$0xe]
      %v2897 = vld [vmem:[%s1765 + $0x6c] sm:$0xe]
      %v2898 = vld [vmem:[%s1765 + $0x78] sm:$0xe]
      %v2899 = vld [vmem:[%s1765 + $0x84] sm:$0xe]
      %v2900 = vld [vmem:[%s1765 + $0x90] sm:$0xe]
      %v2901 = vld [vmem:[%s1765 + $0x9c] sm:$0xe]
      %v2902 = vld [vmem:[%s1765 + $0xa8] sm:$0xe]
      %v2903 = vld [vmem:[%s1765 + $0xb4] sm:$0xe]
      %v2952 = vrot.slane %v2888, 5
      %v2953 = vrot.slane %v2952, 4
      %v2954 = vrot.slane %v2144, 5
      %v2955 = vsel %vm1339, %v2953, %v2954
      %v2956 = vrot.slane %v2954, 4
      %v2957 = vrot.slane %v2145, 5
      %v2958 = vsel %vm1339, %v2956, %v2957
      %v2959 = vrot.slane %v2889, 5
      %v2960 = vrot.slane %v2959, 4
      %v2961 = vrot.slane %v2147, 5
      %v2962 = vsel %vm1339, %v2960, %v2961
      %v2963 = vrot.slane %v2961, 4
      %v2964 = vrot.slane %v2148, 5
      %v2965 = vsel %vm1339, %v2963, %v2964
      %v2966 = vrot.slane %v2890, 5
      %v2967 = vrot.slane %v2966, 4
      %v2968 = vrot.slane %v2150, 5
      %v2969 = vsel %vm1339, %v2967, %v2968
      %v2970 = vrot.slane %v2968, 4
      %v2971 = vrot.slane %v2151, 5
      %v2972 = vsel %vm1339, %v2970, %v2971
      %v2973 = vrot.slane %v2891, 5
      %v2974 = vrot.slane %v2973, 4
      %v2975 = vrot.slane %v2153, 5
      %v2976 = vsel %vm1339, %v2974, %v2975
      %v2977 = vrot.slane %v2975, 4
      %v2978 = vrot.slane %v2154, 5
      %v2979 = vsel %vm1339, %v2977, %v2978
      %v2980 = vrot.slane %v2892, 5
      %v2981 = vrot.slane %v2980, 4
      %v2982 = vrot.slane %v2156, 5
      %v2983 = vsel %vm1339, %v2981, %v2982
      %v2984 = vrot.slane %v2982, 4
      %v2985 = vrot.slane %v2157, 5
      %v2986 = vsel %vm1339, %v2984, %v2985
      %v2987 = vrot.slane %v2893, 5
      %v2988 = vrot.slane %v2987, 4
      %v2989 = vrot.slane %v2159, 5
      %v2990 = vsel %vm1339, %v2988, %v2989
      %v2991 = vrot.slane %v2989, 4
      %v2992 = vrot.slane %v2160, 5
      %v2993 = vsel %vm1339, %v2991, %v2992
      %v2994 = vrot.slane %v2894, 5
      %v2995 = vrot.slane %v2994, 4
      %v2996 = vrot.slane %v2162, 5
      %v2997 = vsel %vm1339, %v2995, %v2996
      %v2998 = vrot.slane %v2996, 4
      %v2999 = vrot.slane %v2163, 5
      %v3000 = vsel %vm1339, %v2998, %v2999
      %v3001 = vrot.slane %v2895, 5
      %v3002 = vrot.slane %v3001, 4
      %v3003 = vrot.slane %v2165, 5
      %v3004 = vsel %vm1339, %v3002, %v3003
      %v3005 = vrot.slane %v3003, 4
      %v3006 = vrot.slane %v2166, 5
      %v3007 = vsel %vm1339, %v3005, %v3006
      %v3008 = vrot.slane %v2896, 5
      %v3009 = vrot.slane %v3008, 4
      %v3010 = vrot.slane %v2168, 5
      %v3011 = vsel %vm1339, %v3009, %v3010
      %v3012 = vrot.slane %v3010, 4
      %v3013 = vrot.slane %v2169, 5
      %v3014 = vsel %vm1339, %v3012, %v3013
      %v3015 = vrot.slane %v2897, 5
      %v3016 = vrot.slane %v3015, 4
      %v3017 = vrot.slane %v2171, 5
      %v3018 = vsel %vm1339, %v3016, %v3017
      %v3019 = vrot.slane %v3017, 4
      %v3020 = vrot.slane %v2172, 5
      %v3021 = vsel %vm1339, %v3019, %v3020
      %v3022 = vrot.slane %v2898, 5
      %v3023 = vrot.slane %v3022, 4
      %v3024 = vrot.slane %v2174, 5
      %v3025 = vsel %vm1339, %v3023, %v3024
      %v3026 = vrot.slane %v3024, 4
      %v3027 = vrot.slane %v2175, 5
      %v3028 = vsel %vm1339, %v3026, %v3027
      %v3029 = vrot.slane %v2899, 5
      %v3030 = vrot.slane %v3029, 4
      %v3031 = vrot.slane %v2177, 5
      %v3032 = vsel %vm1339, %v3030, %v3031
      %v3033 = vrot.slane %v3031, 4
      %v3034 = vrot.slane %v2178, 5
      %v3035 = vsel %vm1339, %v3033, %v3034
      %v3036 = vrot.slane %v2900, 5
      %v3037 = vrot.slane %v3036, 4
      %v3038 = vrot.slane %v2180, 5
      %v3039 = vsel %vm1339, %v3037, %v3038
      %v3040 = vrot.slane %v3038, 4
      %v3041 = vrot.slane %v2181, 5
      %v3042 = vsel %vm1339, %v3040, %v3041
      %v3043 = vrot.slane %v2901, 5
      %v3044 = vrot.slane %v3043, 4
      %v3045 = vrot.slane %v2183, 5
      %v3046 = vsel %vm1339, %v3044, %v3045
      %v3047 = vrot.slane %v3045, 4
      %v3048 = vrot.slane %v2184, 5
      %v3049 = vsel %vm1339, %v3047, %v3048
      %v3050 = vrot.slane %v2902, 5
      %v3051 = vrot.slane %v3050, 4
      %v3052 = vrot.slane %v2186, 5
      %v3053 = vsel %vm1339, %v3051, %v3052
      %v3054 = vrot.slane %v3052, 4
      %v3055 = vrot.slane %v2187, 5
      %v3056 = vsel %vm1339, %v3054, %v3055
      %v3057 = vrot.slane %v2903, 5
      %v3058 = vrot.slane %v3057, 4
      %v3059 = vrot.slane %v2189, 5
      %v3060 = vsel %vm1339, %v3058, %v3059
      %v3061 = vrot.slane %v3059, 4
      %v3062 = vrot.slane %v2190, 5
      %v3063 = vsel %vm1339, %v3061, %v3062
      %s3064 = scalar_lea.vmem %s1, 100
      %v3065 = vld [vmem:[%s3064] sm:$0xf]
      %v3066 = vld [vmem:[%s3064 + $0x4] sm:$0xf]
      %v3067 = vld [vmem:[%s3064 + $0x8] sm:$0xf]
      %v3068 = vld [vmem:[%s3064 + $0xc] sm:$0xf]
      %v3069 = vld [vmem:[%s3064 + $0x10] sm:$0x3]
      %v3070 = vunpack.c.l.b16 %v2955
      %v3071 = vunpack.c.l.b16 %v2958
      %v3072 = vunpack.c.l.b16 %v2962
      %v3073 = vunpack.c.l.b16 %v2965
      %v3074 = vunpack.c.l.b16 %v2969
      %v3075 = vunpack.c.l.b16 %v2972
      %v3076 = vunpack.c.l.b16 %v2976
      %v3077 = vunpack.c.l.b16 %v2979
      %v3078 = vunpack.c.l.b16 %v2983
      %v3079 = vunpack.c.l.b16 %v2986
      %v3080 = vunpack.c.l.b16 %v2990
      %v3081 = vunpack.c.l.b16 %v2993
      %v3082 = vunpack.c.l.b16 %v2997
      %v3083 = vunpack.c.l.b16 %v3000
      %v3084 = vunpack.c.l.b16 %v3004
      %v3085 = vunpack.c.l.b16 %v3007
      %v3086 = vunpack.c.l.b16 %v3011
      %v3087 = vunpack.c.l.b16 %v3014
      %v3088 = vunpack.c.l.b16 %v3018
      %v3089 = vunpack.c.l.b16 %v3021
      %v3090 = vunpack.c.l.b16 %v3025
      %v3091 = vunpack.c.l.b16 %v3028
      %v3092 = vunpack.c.l.b16 %v3032
      %v3093 = vunpack.c.l.b16 %v3035
      %v3094 = vunpack.c.l.b16 %v3039
      %v3095 = vunpack.c.l.b16 %v3042
      %v3096 = vunpack.c.l.b16 %v3046
      %v3097 = vunpack.c.l.b16 %v3049
      %v3098 = vunpack.c.l.b16 %v3053
      %v3099 = vunpack.c.l.b16 %v3056
      %v3100 = vunpack.c.l.b16 %v3060
      %v3101 = vunpack.c.l.b16 %v3063
      %v3102 = vpack.c.b16 %v3071, %v3070
      %v3103 = vpack.c.b16 %v3073, %v3072
      %v3104 = vpack.c.b16 %v3075, %v3074
      %v3105 = vpack.c.b16 %v3077, %v3076
      %v3106 = vpack.c.b16 %v3079, %v3078
      %v3107 = vpack.c.b16 %v3081, %v3080
      %v3108 = vpack.c.b16 %v3083, %v3082
      %v3109 = vpack.c.b16 %v3085, %v3084
      %v3110 = vpack.c.b16 %v3087, %v3086
      %v3111 = vpack.c.b16 %v3089, %v3088
      %v3112 = vpack.c.b16 %v3091, %v3090
      %v3113 = vpack.c.b16 %v3093, %v3092
      %v3114 = vpack.c.b16 %v3095, %v3094
      %v3115 = vpack.c.b16 %v3097, %v3096
      %v3116 = vpack.c.b16 %v3099, %v3098
      %v3117 = vpack.c.b16 %v3101, %v3100
      %v3123 = vunpack.c.l.b16 %v3065
      %v3124 = vunpack.c.l.b16 %v3066
      %v3125 = vunpack.c.l.b16 %v3067
      %v3126 = vunpack.c.l.b16 %v3068
      %v3127 = vunpack.c.l.b16 %v3069
      %v3128 = vpack.c.b16 %v3124, %v3123
      %v3129 = vpack.c.b16 %v3126, %v3125
      %v3130 = vpack.c.b16 %v3127, %v3127
      %v3134 = vsel %vm768, %v3102, 0
      %v3137 = vsel %vm768, %v3103, 0
      %v3140 = vsel %vm768, %v3104, 0
      %v3143 = vsel %vm768, %v3105, 0
      %v3146 = vsel %vm768, %v3106, 0
      %v3149 = vsel %vm768, %v3107, 0
      %v3152 = vsel %vm768, %v3108, 0
      %v3155 = vsel %vm768, %v3109, 0
      %v3158 = vsel %vm768, %v3110, 0
      %v3161 = vsel %vm768, %v3111, 0
      %v3164 = vsel %vm768, %v3112, 0
      %v3167 = vsel %vm768, %v3113, 0
      %v3170 = vsel %vm768, %v3114, 0
      %v3173 = vsel %vm768, %v3115, 0
      %v3176 = vsel %vm768, %v3116, 0
      %v3179 = vsel %vm768, %v3117, 0
      %v3182 = vsel %vm817, %v3130, 0
      %3184 = vmatprep.subr.bf16.mxu0 0
      %3185 = vmatpush1.bf16.msra.mxu0 %v3128
      %3186 = vmatprep.subr.bf16.mxu0 0
      %3187 = vmatpush1.bf16.msra.mxu0 %v3129
      %3188 = vmatprep.subr.bf16.mxu0 0
      %3189 = vmatpush1.bf16.msra.mxu0 %v3182
      %3190 = vmatprep.subr.bf16.mxu0 0
      %3191 = vmatpush1.bf16.msra.mxu0 0
      %3192 = vmatprep.subr.bf16.mxu0 0
      %3193 = vmatpush1.bf16.msra.mxu0 0
      %3194 = vmatprep.subr.bf16.mxu0 0
      %3195 = vmatpush1.bf16.msra.mxu0 0
      %3196 = vmatprep.subr.bf16.mxu0 0
      %3197 = vmatpush1.bf16.msra.mxu0 0
      %3198 = vmatprep.subr.bf16.mxu0 0
      %3199 = vmatpush1.bf16.msra.mxu0 0
      %3200 = vmatprep.subr.bf16.mxu0 0
      %3201 = vmatpush1.bf16.msra.mxu0 0
      %3202 = vmatprep.subr.bf16.mxu0 0
      %3203 = vmatpush1.bf16.msra.mxu0 0
      %3204 = vmatprep.subr.bf16.mxu0 0
      %3205 = vmatpush1.bf16.msra.mxu0 0
      %3206 = vmatprep.subr.bf16.mxu0 0
      %3207 = vmatpush1.bf16.msra.mxu0 0
      %3208 = vmatprep.subr.bf16.mxu0 0
      %3209 = vmatpush1.bf16.msra.mxu0 0
      %3210 = vmatprep.subr.bf16.mxu0 0
      %3211 = vmatpush1.bf16.msra.mxu0 0
      %3212 = vmatprep.subr.bf16.mxu0 0
      %3213 = vmatpush1.bf16.msra.mxu0 0
      %3214 = vmatprep.subr.bf16.mxu0 0
      %3215 = vmatpush1.bf16.msra.mxu0 0
      %3216 = vmatprep.mubr.bf16.mxu0 0
      %3217 = vmatmul.mubr.bf16.gmra.mrb[0].mxu0 %v3134
      %v3218 = vpop.f32.mrb[0].mxu0
      %v3219 = vadd.f32 0.0, %v3218
      %v3220 = vpop.f32.mrb[0].mxu0
      %v3221 = vpop.f32.mrb[0].mxu0
      %v3222 = vadd.f32 0.0, %v3221
      %v3223 = vpop.f32.mrb[0].mxu0
      %3224 = vmatprep.mubr.bf16.mxu0 0
      %3225 = vmatmul.mubr.bf16.gmra.mrb[0].mxu0 %v3137
      %v3226 = vpop.f32.mrb[0].mxu0
      %v3227 = vadd.f32 0.0, %v3226
      %v3228 = vpop.f32.mrb[0].mxu0
      %v3229 = vpop.f32.mrb[0].mxu0
      %v3230 = vadd.f32 0.0, %v3229
      %v3231 = vpop.f32.mrb[0].mxu0
      %3232 = vmatprep.mubr.bf16.mxu0 0
      %3233 = vmatmul.mubr.bf16.gmra.mrb[0].mxu0 %v3140
      %v3234 = vpop.f32.mrb[0].mxu0
      %v3235 = vadd.f32 0.0, %v3234
      %v3236 = vpop.f32.mrb[0].mxu0
      %v3237 = vpop.f32.mrb[0].mxu0
      %v3238 = vadd.f32 0.0, %v3237
      %v3239 = vpop.f32.mrb[0].mxu0
      %3240 = vmatprep.mubr.bf16.mxu0 0
      %3241 = vmatmul.mubr.bf16.gmra.mrb[0].mxu0 %v3143
      %v3242 = vpop.f32.mrb[0].mxu0
      %v3243 = vadd.f32 0.0, %v3242
      %v3244 = vpop.f32.mrb[0].mxu0
      %v3245 = vpop.f32.mrb[0].mxu0
      %v3246 = vadd.f32 0.0, %v3245
      %v3247 = vpop.f32.mrb[0].mxu0
      %3248 = vmatprep.mubr.bf16.mxu0 0
      %3249 = vmatmul.mubr.bf16.gmra.mrb[0].mxu0 %v3146
      %v3250 = vpop.f32.mrb[0].mxu0
      %v3251 = vadd.f32 0.0, %v3250
      %v3252 = vpop.f32.mrb[0].mxu0
      %v3253 = vpop.f32.mrb[0].mxu0
      %v3254 = vadd.f32 0.0, %v3253
      %v3255 = vpop.f32.mrb[0].mxu0
      %3256 = vmatprep.mubr.bf16.mxu0 0
      %3257 = vmatmul.mubr.bf16.gmra.mrb[0].mxu0 %v3149
      %v3258 = vpop.f32.mrb[0].mxu0
      %v3259 = vadd.f32 0.0, %v3258
      %v3260 = vpop.f32.mrb[0].mxu0
      %v3261 = vpop.f32.mrb[0].mxu0
      %v3262 = vadd.f32 0.0, %v3261
      %v3263 = vpop.f32.mrb[0].mxu0
      %3264 = vmatprep.mubr.bf16.mxu0 0
      %3265 = vmatmul.mubr.bf16.gmra.mrb[0].mxu0 %v3152
      %v3266 = vpop.f32.mrb[0].mxu0
      %v3267 = vadd.f32 0.0, %v3266
      %v3268 = vpop.f32.mrb[0].mxu0
      %v3269 = vpop.f32.mrb[0].mxu0
      %v3270 = vadd.f32 0.0, %v3269
      %v3271 = vpop.f32.mrb[0].mxu0
      %3272 = vmatprep.mubr.bf16.mxu0 0
      %3273 = vmatmul.mubr.bf16.gmra.mrb[0].mxu0 %v3155
      %v3274 = vpop.f32.mrb[0].mxu0
      %v3275 = vadd.f32 0.0, %v3274
      %v3276 = vpop.f32.mrb[0].mxu0
      %v3277 = vpop.f32.mrb[0].mxu0
      %v3278 = vadd.f32 0.0, %v3277
      %v3279 = vpop.f32.mrb[0].mxu0
      %3280 = vmatprep.mubr.bf16.mxu0 0
      %3281 = vmatmul.mubr.bf16.gmra.mrb[0].mxu0 %v3158
      %v3282 = vpop.f32.mrb[0].mxu0
      %v3283 = vadd.f32 0.0, %v3282
      %v3284 = vpop.f32.mrb[0].mxu0
      %v3285 = vpop.f32.mrb[0].mxu0
      %v3286 = vadd.f32 0.0, %v3285
      %v3287 = vpop.f32.mrb[0].mxu0
      %3288 = vmatprep.mubr.bf16.mxu0 0
      %3289 = vmatmul.mubr.bf16.gmra.mrb[0].mxu0 %v3161
      %v3290 = vpop.f32.mrb[0].mxu0
      %v3291 = vadd.f32 0.0, %v3290
      %v3292 = vpop.f32.mrb[0].mxu0
      %v3293 = vpop.f32.mrb[0].mxu0
      %v3294 = vadd.f32 0.0, %v3293
      %v3295 = vpop.f32.mrb[0].mxu0
      %3296 = vmatprep.mubr.bf16.mxu0 0
      %3297 = vmatmul.mubr.bf16.gmra.mrb[0].mxu0 %v3164
      %v3298 = vpop.f32.mrb[0].mxu0
      %v3299 = vadd.f32 0.0, %v3298
      %v3300 = vpop.f32.mrb[0].mxu0
      %v3301 = vpop.f32.mrb[0].mxu0
      %v3302 = vadd.f32 0.0, %v3301
      %v3303 = vpop.f32.mrb[0].mxu0
      %3304 = vmatprep.mubr.bf16.mxu0 0
      %3305 = vmatmul.mubr.bf16.gmra.mrb[0].mxu0 %v3167
      %v3306 = vpop.f32.mrb[0].mxu0
      %v3307 = vadd.f32 0.0, %v3306
      %v3308 = vpop.f32.mrb[0].mxu0
      %v3309 = vpop.f32.mrb[0].mxu0
      %v3310 = vadd.f32 0.0, %v3309
      %v3311 = vpop.f32.mrb[0].mxu0
      %3312 = vmatprep.mubr.bf16.mxu0 0
      %3313 = vmatmul.mubr.bf16.gmra.mrb[0].mxu0 %v3170
      %v3314 = vpop.f32.mrb[0].mxu0
      %v3315 = vadd.f32 0.0, %v3314
      %v3316 = vpop.f32.mrb[0].mxu0
      %v3317 = vpop.f32.mrb[0].mxu0
      %v3318 = vadd.f32 0.0, %v3317
      %v3319 = vpop.f32.mrb[0].mxu0
      %3320 = vmatprep.mubr.bf16.mxu0 0
      %3321 = vmatmul.mubr.bf16.gmra.mrb[0].mxu0 %v3173
      %v3322 = vpop.f32.mrb[0].mxu0
      %v3323 = vadd.f32 0.0, %v3322
      %v3324 = vpop.f32.mrb[0].mxu0
      %v3325 = vpop.f32.mrb[0].mxu0
      %v3326 = vadd.f32 0.0, %v3325
      %v3327 = vpop.f32.mrb[0].mxu0
      %3328 = vmatprep.mubr.bf16.mxu0 0
      %3329 = vmatmul.mubr.bf16.gmra.mrb[0].mxu0 %v3176
      %v3330 = vpop.f32.mrb[0].mxu0
      %v3331 = vadd.f32 0.0, %v3330
      %v3332 = vpop.f32.mrb[0].mxu0
      %v3333 = vpop.f32.mrb[0].mxu0
      %v3334 = vadd.f32 0.0, %v3333
      %v3335 = vpop.f32.mrb[0].mxu0
      %3336 = vmatprep.mubr.bf16.mxu0 0
      %3337 = vmatmul.mubr.bf16.gmra.mrb[0].mxu0 %v3179
      %v3338 = vpop.f32.mrb[0].mxu0
      %v3339 = vadd.f32 0.0, %v3338
      %v3340 = vpop.f32.mrb[0].mxu0
      %v3341 = vpop.f32.mrb[0].mxu0
      %v3342 = vadd.f32 0.0, %v3341
      %v3343 = vpop.f32.mrb[0].mxu0
      %3344 = vdwg.mxu0
      %v3345 = vadd.f32 %v2856, %v3219
      %v3346 = vadd.f32 %v2857, %v3222
      %v3347 = vadd.f32 %v2858, %v3227
      %v3348 = vadd.f32 %v2859, %v3230
      %v3349 = vadd.f32 %v2860, %v3235
      %v3350 = vadd.f32 %v2861, %v3238
      %v3351 = vadd.f32 %v2862, %v3243
      %v3352 = vadd.f32 %v2863, %v3246
      %v3353 = vadd.f32 %v2864, %v3251
      %v3354 = vadd.f32 %v2865, %v3254
      %v3355 = vadd.f32 %v2866, %v3259
      %v3356 = vadd.f32 %v2867, %v3262
      %v3357 = vadd.f32 %v2868, %v3267
      %v3358 = vadd.f32 %v2869, %v3270
      %v3359 = vadd.f32 %v2870, %v3275
      %v3360 = vadd.f32 %v2871, %v3278
      %v3361 = vadd.f32 %v2872, %v3283
      %v3362 = vadd.f32 %v2873, %v3286
      %v3363 = vadd.f32 %v2874, %v3291
      %v3364 = vadd.f32 %v2875, %v3294
      %v3365 = vadd.f32 %v2876, %v3299
      %v3366 = vadd.f32 %v2877, %v3302
      %v3367 = vadd.f32 %v2878, %v3307
      %v3368 = vadd.f32 %v2879, %v3310
      %v3369 = vadd.f32 %v2880, %v3315
      %v3370 = vadd.f32 %v2881, %v3318
      %v3371 = vadd.f32 %v2882, %v3323
      %v3372 = vadd.f32 %v2883, %v3326
      %v3373 = vadd.f32 %v2884, %v3331
      %v3374 = vadd.f32 %v2885, %v3334
      %v3375 = vadd.f32 %v2886, %v3339
      %v3376 = vadd.f32 %v2887, %v3342
      %s3377 = scalar_lea.vmem %s242, 24
      %v3378 = vld [vmem:[%s3377] sm:$0xf]
      %v3379 = vld [vmem:[%s3377 + $0x4] sm:$0xf]
      %v3380 = vld [vmem:[%s3377 + $0xc] sm:$0xf]
      %v3381 = vld [vmem:[%s3377 + $0x10] sm:$0xf]
      %v3382 = vld [vmem:[%s3377 + $0x18] sm:$0xf]
      %v3383 = vld [vmem:[%s3377 + $0x1c] sm:$0xf]
      %v3384 = vld [vmem:[%s3377 + $0x24] sm:$0xf]
      %v3385 = vld [vmem:[%s3377 + $0x28] sm:$0xf]
      %v3386 = vld [vmem:[%s3377 + $0x30] sm:$0xf]
      %v3387 = vld [vmem:[%s3377 + $0x34] sm:$0xf]
      %v3388 = vld [vmem:[%s3377 + $0x3c] sm:$0xf]
      %v3389 = vld [vmem:[%s3377 + $0x40] sm:$0xf]
      %v3390 = vld [vmem:[%s3377 + $0x48] sm:$0xf]
      %v3391 = vld [vmem:[%s3377 + $0x4c] sm:$0xf]
      %v3392 = vld [vmem:[%s3377 + $0x54] sm:$0xf]
      %v3393 = vld [vmem:[%s3377 + $0x58] sm:$0xf]
      %v3394 = vld [vmem:[%s3377 + $0x60] sm:$0xf]
      %v3395 = vld [vmem:[%s3377 + $0x64] sm:$0xf]
      %v3396 = vld [vmem:[%s3377 + $0x6c] sm:$0xf]
      %v3397 = vld [vmem:[%s3377 + $0x70] sm:$0xf]
      %v3398 = vld [vmem:[%s3377 + $0x78] sm:$0xf]
      %v3399 = vld [vmem:[%s3377 + $0x7c] sm:$0xf]
      %v3400 = vld [vmem:[%s3377 + $0x84] sm:$0xf]
      %v3401 = vld [vmem:[%s3377 + $0x88] sm:$0xf]
      %v3402 = vld [vmem:[%s3377 + $0x90] sm:$0xf]
      %v3403 = vld [vmem:[%s3377 + $0x94] sm:$0xf]
      %v3404 = vld [vmem:[%s3377 + $0x9c] sm:$0xf]
      %v3405 = vld [vmem:[%s3377 + $0xa0] sm:$0xf]
      %v3406 = vld [vmem:[%s3377 + $0xa8] sm:$0xf]
      %v3407 = vld [vmem:[%s3377 + $0xac] sm:$0xf]
      %v3408 = vld [vmem:[%s3377 + $0xb4] sm:$0xf]
      %v3409 = vld [vmem:[%s3377 + $0xb8] sm:$0xf]
      %s3410 = scalar_lea.vmem %s1, 120
      %v3411 = vld [vmem:[%s3410] sm:$0xf]
      %v3412 = vld [vmem:[%s3410 + $0x4] sm:$0xf]
      %v3413 = vld [vmem:[%s3410 + $0x8] sm:$0xf]
      %v3414 = vld [vmem:[%s3410 + $0xc] sm:$0xf]
      %v3415 = vld [vmem:[%s3410 + $0x10] sm:$0x3]
      %v3448 = vunpack.c.l.b16 %v3378
      %v3449 = vunpack.c.l.b16 %v3379
      %v3450 = vunpack.c.l.b16 %v3380
      %v3451 = vunpack.c.l.b16 %v3381
      %v3452 = vunpack.c.l.b16 %v3382
      %v3453 = vunpack.c.l.b16 %v3383
      %v3454 = vunpack.c.l.b16 %v3384
      %v3455 = vunpack.c.l.b16 %v3385
      %v3456 = vunpack.c.l.b16 %v3386
      %v3457 = vunpack.c.l.b16 %v3387
      %v3458 = vunpack.c.l.b16 %v3388
      %v3459 = vunpack.c.l.b16 %v3389
      %v3460 = vunpack.c.l.b16 %v3390
      %v3461 = vunpack.c.l.b16 %v3391
      %v3462 = vunpack.c.l.b16 %v3392
      %v3463 = vunpack.c.l.b16 %v3393
      %v3464 = vunpack.c.l.b16 %v3394
      %v3465 = vunpack.c.l.b16 %v3395
      %v3466 = vunpack.c.l.b16 %v3396
      %v3467 = vunpack.c.l.b16 %v3397
      %v3468 = vunpack.c.l.b16 %v3398
      %v3469 = vunpack.c.l.b16 %v3399
      %v3470 = vunpack.c.l.b16 %v3400
      %v3471 = vunpack.c.l.b16 %v3401
      %v3472 = vunpack.c.l.b16 %v3402
      %v3473 = vunpack.c.l.b16 %v3403
      %v3474 = vunpack.c.l.b16 %v3404
      %v3475 = vunpack.c.l.b16 %v3405
      %v3476 = vunpack.c.l.b16 %v3406
      %v3477 = vunpack.c.l.b16 %v3407
      %v3478 = vunpack.c.l.b16 %v3408
      %v3479 = vunpack.c.l.b16 %v3409
      %v3480 = vpack.c.b16 %v3449, %v3448
      %v3481 = vpack.c.b16 %v3451, %v3450
      %v3482 = vpack.c.b16 %v3453, %v3452
      %v3483 = vpack.c.b16 %v3455, %v3454
      %v3484 = vpack.c.b16 %v3457, %v3456
      %v3485 = vpack.c.b16 %v3459, %v3458
      %v3486 = vpack.c.b16 %v3461, %v3460
      %v3487 = vpack.c.b16 %v3463, %v3462
      %v3488 = vpack.c.b16 %v3465, %v3464
      %v3489 = vpack.c.b16 %v3467, %v3466
      %v3490 = vpack.c.b16 %v3469, %v3468
      %v3491 = vpack.c.b16 %v3471, %v3470
      %v3492 = vpack.c.b16 %v3473, %v3472
      %v3493 = vpack.c.b16 %v3475, %v3474
      %v3494 = vpack.c.b16 %v3477, %v3476
      %v3495 = vpack.c.b16 %v3479, %v3478
      %v3501 = vunpack.c.l.b16 %v3411
      %v3502 = vunpack.c.l.b16 %v3412
      %v3503 = vunpack.c.l.b16 %v3413
      %v3504 = vunpack.c.l.b16 %v3414
      %v3505 = vunpack.c.l.b16 %v3415
      %v3506 = vpack.c.b16 %v3502, %v3501
      %v3507 = vpack.c.b16 %v3504, %v3503
      %v3508 = vpack.c.b16 %v3505, %v3505
      %v3512 = vsel %vm768, %v3480, 0
      %v3515 = vsel %vm768, %v3481, 0
      %v3518 = vsel %vm768, %v3482, 0
      %v3521 = vsel %vm768, %v3483, 0
      %v3524 = vsel %vm768, %v3484, 0
      %v3527 = vsel %vm768, %v3485, 0
      %v3530 = vsel %vm768, %v3486, 0
      %v3533 = vsel %vm768, %v3487, 0
      %v3536 = vsel %vm768, %v3488, 0
      %v3539 = vsel %vm768, %v3489, 0
      %v3542 = vsel %vm768, %v3490, 0
      %v3545 = vsel %vm768, %v3491, 0
      %v3548 = vsel %vm768, %v3492, 0
      %v3551 = vsel %vm768, %v3493, 0
      %v3554 = vsel %vm768, %v3494, 0
      %v3557 = vsel %vm768, %v3495, 0
      %v3560 = vsel %vm817, %v3508, 0
      %3562 = vmatprep.subr.bf16.mxu0 0
      %3563 = vmatpush1.bf16.msra.mxu0 %v3506
      %3564 = vmatprep.subr.bf16.mxu0 0
      %3565 = vmatpush1.bf16.msra.mxu0 %v3507
      %3566 = vmatprep.subr.bf16.mxu0 0
      %3567 = vmatpush1.bf16.msra.mxu0 %v3560
      %3568 = vmatprep.subr.bf16.mxu0 0
      %3569 = vmatpush1.bf16.msra.mxu0 0
      %3570 = vmatprep.subr.bf16.mxu0 0
      %3571 = vmatpush1.bf16.msra.mxu0 0
      %3572 = vmatprep.subr.bf16.mxu0 0
      %3573 = vmatpush1.bf16.msra.mxu0 0
      %3574 = vmatprep.subr.bf16.mxu0 0
      %3575 = vmatpush1.bf16.msra.mxu0 0
      %3576 = vmatprep.subr.bf16.mxu0 0
      %3577 = vmatpush1.bf16.msra.mxu0 0
      %3578 = vmatprep.subr.bf16.mxu0 0
      %3579 = vmatpush1.bf16.msra.mxu0 0
      %3580 = vmatprep.subr.bf16.mxu0 0
      %3581 = vmatpush1.bf16.msra.mxu0 0
      %3582 = vmatprep.subr.bf16.mxu0 0
      %3583 = vmatpush1.bf16.msra.mxu0 0
      %3584 = vmatprep.subr.bf16.mxu0 0
      %3585 = vmatpush1.bf16.msra.mxu0 0
      %3586 = vmatprep.subr.bf16.mxu0 0
      %3587 = vmatpush1.bf16.msra.mxu0 0
      %3588 = vmatprep.subr.bf16.mxu0 0
      %3589 = vmatpush1.bf16.msra.mxu0 0
      %3590 = vmatprep.subr.bf16.mxu0 0
      %3591 = vmatpush1.bf16.msra.mxu0 0
      %3592 = vmatprep.subr.bf16.mxu0 0
      %3593 = vmatpush1.bf16.msra.mxu0 0
      %3594 = vmatprep.mubr.bf16.mxu0 0
      %3595 = vmatmul.mubr.bf16.gmra.mrb[0].mxu0 %v3512
      %v3596 = vpop.f32.mrb[0].mxu0
      %v3597 = vadd.f32 0.0, %v3596
      %v3598 = vpop.f32.mrb[0].mxu0
      %v3599 = vpop.f32.mrb[0].mxu0
      %v3600 = vadd.f32 0.0, %v3599
      %v3601 = vpop.f32.mrb[0].mxu0
      %3602 = vmatprep.mubr.bf16.mxu0 0
      %3603 = vmatmul.mubr.bf16.gmra.mrb[0].mxu0 %v3515
      %v3604 = vpop.f32.mrb[0].mxu0
      %v3605 = vadd.f32 0.0, %v3604
      %v3606 = vpop.f32.mrb[0].mxu0
      %v3607 = vpop.f32.mrb[0].mxu0
      %v3608 = vadd.f32 0.0, %v3607
      %v3609 = vpop.f32.mrb[0].mxu0
      %3610 = vmatprep.mubr.bf16.mxu0 0
      %3611 = vmatmul.mubr.bf16.gmra.mrb[0].mxu0 %v3518
      %v3612 = vpop.f32.mrb[0].mxu0
      %v3613 = vadd.f32 0.0, %v3612
      %v3614 = vpop.f32.mrb[0].mxu0
      %v3615 = vpop.f32.mrb[0].mxu0
      %v3616 = vadd.f32 0.0, %v3615
      %v3617 = vpop.f32.mrb[0].mxu0
      %3618 = vmatprep.mubr.bf16.mxu0 0
      %3619 = vmatmul.mubr.bf16.gmra.mrb[0].mxu0 %v3521
      %v3620 = vpop.f32.mrb[0].mxu0
      %v3621 = vadd.f32 0.0, %v3620
      %v3622 = vpop.f32.mrb[0].mxu0
      %v3623 = vpop.f32.mrb[0].mxu0
      %v3624 = vadd.f32 0.0, %v3623
      %v3625 = vpop.f32.mrb[0].mxu0
      %3626 = vmatprep.mubr.bf16.mxu0 0
      %3627 = vmatmul.mubr.bf16.gmra.mrb[0].mxu0 %v3524
      %v3628 = vpop.f32.mrb[0].mxu0
      %v3629 = vadd.f32 0.0, %v3628
      %v3630 = vpop.f32.mrb[0].mxu0
      %v3631 = vpop.f32.mrb[0].mxu0
      %v3632 = vadd.f32 0.0, %v3631
      %v3633 = vpop.f32.mrb[0].mxu0
      %3634 = vmatprep.mubr.bf16.mxu0 0
      %3635 = vmatmul.mubr.bf16.gmra.mrb[0].mxu0 %v3527
      %v3636 = vpop.f32.mrb[0].mxu0
      %v3637 = vadd.f32 0.0, %v3636
      %v3638 = vpop.f32.mrb[0].mxu0
      %v3639 = vpop.f32.mrb[0].mxu0
      %v3640 = vadd.f32 0.0, %v3639
      %v3641 = vpop.f32.mrb[0].mxu0
      %3642 = vmatprep.mubr.bf16.mxu0 0
      %3643 = vmatmul.mubr.bf16.gmra.mrb[0].mxu0 %v3530
      %v3644 = vpop.f32.mrb[0].mxu0
      %v3645 = vadd.f32 0.0, %v3644
      %v3646 = vpop.f32.mrb[0].mxu0
      %v3647 = vpop.f32.mrb[0].mxu0
      %v3648 = vadd.f32 0.0, %v3647
      %v3649 = vpop.f32.mrb[0].mxu0
      %3650 = vmatprep.mubr.bf16.mxu0 0
      %3651 = vmatmul.mubr.bf16.gmra.mrb[0].mxu0 %v3533
      %v3652 = vpop.f32.mrb[0].mxu0
      %v3653 = vadd.f32 0.0, %v3652
      %v3654 = vpop.f32.mrb[0].mxu0
      %v3655 = vpop.f32.mrb[0].mxu0
      %v3656 = vadd.f32 0.0, %v3655
      %v3657 = vpop.f32.mrb[0].mxu0
      %3658 = vmatprep.mubr.bf16.mxu0 0
      %3659 = vmatmul.mubr.bf16.gmra.mrb[0].mxu0 %v3536
      %v3660 = vpop.f32.mrb[0].mxu0
      %v3661 = vadd.f32 0.0, %v3660
      %v3662 = vpop.f32.mrb[0].mxu0
      %v3663 = vpop.f32.mrb[0].mxu0
      %v3664 = vadd.f32 0.0, %v3663
      %v3665 = vpop.f32.mrb[0].mxu0
      %3666 = vmatprep.mubr.bf16.mxu0 0
      %3667 = vmatmul.mubr.bf16.gmra.mrb[0].mxu0 %v3539
      %v3668 = vpop.f32.mrb[0].mxu0
      %v3669 = vadd.f32 0.0, %v3668
      %v3670 = vpop.f32.mrb[0].mxu0
      %v3671 = vpop.f32.mrb[0].mxu0
      %v3672 = vadd.f32 0.0, %v3671
      %v3673 = vpop.f32.mrb[0].mxu0
      %3674 = vmatprep.mubr.bf16.mxu0 0
      %3675 = vmatmul.mubr.bf16.gmra.mrb[0].mxu0 %v3542
      %v3676 = vpop.f32.mrb[0].mxu0
      %v3677 = vadd.f32 0.0, %v3676
      %v3678 = vpop.f32.mrb[0].mxu0
      %v3679 = vpop.f32.mrb[0].mxu0
      %v3680 = vadd.f32 0.0, %v3679
      %v3681 = vpop.f32.mrb[0].mxu0
      %3682 = vmatprep.mubr.bf16.mxu0 0
      %3683 = vmatmul.mubr.bf16.gmra.mrb[0].mxu0 %v3545
      %v3684 = vpop.f32.mrb[0].mxu0
      %v3685 = vadd.f32 0.0, %v3684
      %v3686 = vpop.f32.mrb[0].mxu0
      %v3687 = vpop.f32.mrb[0].mxu0
      %v3688 = vadd.f32 0.0, %v3687
      %v3689 = vpop.f32.mrb[0].mxu0
      %3690 = vmatprep.mubr.bf16.mxu0 0
      %3691 = vmatmul.mubr.bf16.gmra.mrb[0].mxu0 %v3548
      %v3692 = vpop.f32.mrb[0].mxu0
      %v3693 = vadd.f32 0.0, %v3692
      %v3694 = vpop.f32.mrb[0].mxu0
      %v3695 = vpop.f32.mrb[0].mxu0
      %v3696 = vadd.f32 0.0, %v3695
      %v3697 = vpop.f32.mrb[0].mxu0
      %3698 = vmatprep.mubr.bf16.mxu0 0
      %3699 = vmatmul.mubr.bf16.gmra.mrb[0].mxu0 %v3551
      %v3700 = vpop.f32.mrb[0].mxu0
      %v3701 = vadd.f32 0.0, %v3700
      %v3702 = vpop.f32.mrb[0].mxu0
      %v3703 = vpop.f32.mrb[0].mxu0
      %v3704 = vadd.f32 0.0, %v3703
      %v3705 = vpop.f32.mrb[0].mxu0
      %3706 = vmatprep.mubr.bf16.mxu0 0
      %3707 = vmatmul.mubr.bf16.gmra.mrb[0].mxu0 %v3554
      %v3708 = vpop.f32.mrb[0].mxu0
      %v3709 = vadd.f32 0.0, %v3708
      %v3710 = vpop.f32.mrb[0].mxu0
      %v3711 = vpop.f32.mrb[0].mxu0
      %v3712 = vadd.f32 0.0, %v3711
      %v3713 = vpop.f32.mrb[0].mxu0
      %3714 = vmatprep.mubr.bf16.mxu0 0
      %3715 = vmatmul.mubr.bf16.gmra.mrb[0].mxu0 %v3557
      %v3716 = vpop.f32.mrb[0].mxu0
      %v3717 = vadd.f32 0.0, %v3716
      %v3718 = vpop.f32.mrb[0].mxu0
      %v3719 = vpop.f32.mrb[0].mxu0
      %v3720 = vadd.f32 0.0, %v3719
      %v3721 = vpop.f32.mrb[0].mxu0
      %3722 = vdwg.mxu0
      %v3723 = vadd.f32 %v3345, %v3597
      %v3724 = vadd.f32 %v3346, %v3600
      %v3725 = vadd.f32 %v3347, %v3605
      %v3726 = vadd.f32 %v3348, %v3608
      %v3727 = vadd.f32 %v3349, %v3613
      %v3728 = vadd.f32 %v3350, %v3616
      %v3729 = vadd.f32 %v3351, %v3621
      %v3730 = vadd.f32 %v3352, %v3624
      %v3731 = vadd.f32 %v3353, %v3629
      %v3732 = vadd.f32 %v3354, %v3632
      %v3733 = vadd.f32 %v3355, %v3637
      %v3734 = vadd.f32 %v3356, %v3640
      %v3735 = vadd.f32 %v3357, %v3645
      %v3736 = vadd.f32 %v3358, %v3648
      %v3737 = vadd.f32 %v3359, %v3653
      %v3738 = vadd.f32 %v3360, %v3656
      %v3739 = vadd.f32 %v3361, %v3661
      %v3740 = vadd.f32 %v3362, %v3664
      %v3741 = vadd.f32 %v3363, %v3669
      %v3742 = vadd.f32 %v3364, %v3672
      %v3743 = vadd.f32 %v3365, %v3677
      %v3744 = vadd.f32 %v3366, %v3680
      %v3745 = vadd.f32 %v3367, %v3685
      %v3746 = vadd.f32 %v3368, %v3688
      %v3747 = vadd.f32 %v3369, %v3693
      %v3748 = vadd.f32 %v3370, %v3696
      %v3749 = vadd.f32 %v3371, %v3701
      %v3750 = vadd.f32 %v3372, %v3704
      %v3751 = vadd.f32 %v3373, %v3709
      %v3752 = vadd.f32 %v3374, %v3712
      %v3753 = vadd.f32 %v3375, %v3717
      %v3754 = vadd.f32 %v3376, %v3720
      %v3755 = vld [vmem:[%s3377] sm:$0xf]
      %v3756 = vld [vmem:[%s3377 + $0x4] sm:$0xf]
      %v3757 = vld [vmem:[%s3377 + $0x8] sm:$0x1]
      %v3758 = vld [vmem:[%s3377 + $0xc] sm:$0xf]
      %v3759 = vld [vmem:[%s3377 + $0x10] sm:$0xf]
      %v3760 = vld [vmem:[%s3377 + $0x14] sm:$0x1]
      %v3761 = vld [vmem:[%s3377 + $0x18] sm:$0xf]
      %v3762 = vld [vmem:[%s3377 + $0x1c] sm:$0xf]
      %v3763 = vld [vmem:[%s3377 + $0x20] sm:$0x1]
      %v3764 = vld [vmem:[%s3377 + $0x24] sm:$0xf]
      %v3765 = vld [vmem:[%s3377 + $0x28] sm:$0xf]
      %v3766 = vld [vmem:[%s3377 + $0x2c] sm:$0x1]
      %v3767 = vld [vmem:[%s3377 + $0x30] sm:$0xf]
      %v3768 = vld [vmem:[%s3377 + $0x34] sm:$0xf]
      %v3769 = vld [vmem:[%s3377 + $0x38] sm:$0x1]
      %v3770 = vld [vmem:[%s3377 + $0x3c] sm:$0xf]
      %v3771 = vld [vmem:[%s3377 + $0x40] sm:$0xf]
      %v3772 = vld [vmem:[%s3377 + $0x44] sm:$0x1]
      %v3773 = vld [vmem:[%s3377 + $0x48] sm:$0xf]
      %v3774 = vld [vmem:[%s3377 + $0x4c] sm:$0xf]
      %v3775 = vld [vmem:[%s3377 + $0x50] sm:$0x1]
      %v3776 = vld [vmem:[%s3377 + $0x54] sm:$0xf]
      %v3777 = vld [vmem:[%s3377 + $0x58] sm:$0xf]
      %v3778 = vld [vmem:[%s3377 + $0x5c] sm:$0x1]
      %v3779 = vld [vmem:[%s3377 + $0x60] sm:$0xf]
      %v3780 = vld [vmem:[%s3377 + $0x64] sm:$0xf]
      %v3781 = vld [vmem:[%s3377 + $0x68] sm:$0x1]
      %v3782 = vld [vmem:[%s3377 + $0x6c] sm:$0xf]
      %v3783 = vld [vmem:[%s3377 + $0x70] sm:$0xf]
      %v3784 = vld [vmem:[%s3377 + $0x74] sm:$0x1]
      %v3785 = vld [vmem:[%s3377 + $0x78] sm:$0xf]
      %v3786 = vld [vmem:[%s3377 + $0x7c] sm:$0xf]
      %v3787 = vld [vmem:[%s3377 + $0x80] sm:$0x1]
      %v3788 = vld [vmem:[%s3377 + $0x84] sm:$0xf]
      %v3789 = vld [vmem:[%s3377 + $0x88] sm:$0xf]
      %v3790 = vld [vmem:[%s3377 + $0x8c] sm:$0x1]
      %v3791 = vld [vmem:[%s3377 + $0x90] sm:$0xf]
      %v3792 = vld [vmem:[%s3377 + $0x94] sm:$0xf]
      %v3793 = vld [vmem:[%s3377 + $0x98] sm:$0x1]
      %v3794 = vld [vmem:[%s3377 + $0x9c] sm:$0xf]
      %v3795 = vld [vmem:[%s3377 + $0xa0] sm:$0xf]
      %v3796 = vld [vmem:[%s3377 + $0xa4] sm:$0x1]
      %v3797 = vld [vmem:[%s3377 + $0xa8] sm:$0xf]
      %v3798 = vld [vmem:[%s3377 + $0xac] sm:$0xf]
      %v3799 = vld [vmem:[%s3377 + $0xb0] sm:$0x1]
      %v3800 = vld [vmem:[%s3377 + $0xb4] sm:$0xf]
      %v3801 = vld [vmem:[%s3377 + $0xb8] sm:$0xf]
      %v3802 = vld [vmem:[%s3377 + $0xbc] sm:$0x1]
      %v3804 = vshrl.u32 %v3755, 16
      %v3806 = vrot.slane %v3804, 4
      %v3807 = vshll.u32 %v3755, 16
      %v3809 = vrot.slane %v3807, 5
      %v3810 = vor.u32 %v3806, %v3809
      %v3811 = vrot.slane %v3810, 4
      %v3813 = vshll.u32 %v3756, 16
      %v3815 = vrot.slane %v3813, 5
      %v3816 = vsel %vm314, %v3811, %v3815
      %v3817 = vshrl.u32 %v3756, 16
      %v3819 = vrot.slane %v3817, 4
      %v3820 = vor.u32 %v3819, %v3815
      %v3821 = vrot.slane %v3820, 4
      %v3823 = vshll.u32 %v3757, 16
      %v3825 = vrot.slane %v3823, 5
      %v3826 = vsel %vm314, %v3821, %v3825
      %v3828 = vshrl.u32 %v3758, 16
      %v3830 = vrot.slane %v3828, 4
      %v3831 = vshll.u32 %v3758, 16
      %v3833 = vrot.slane %v3831, 5
      %v3834 = vor.u32 %v3830, %v3833
      %v3835 = vrot.slane %v3834, 4
      %v3837 = vshll.u32 %v3759, 16
      %v3839 = vrot.slane %v3837, 5
      %v3840 = vsel %vm314, %v3835, %v3839
      %v3841 = vshrl.u32 %v3759, 16
      %v3843 = vrot.slane %v3841, 4
      %v3844 = vor.u32 %v3843, %v3839
      %v3845 = vrot.slane %v3844, 4
      %v3847 = vshll.u32 %v3760, 16
      %v3849 = vrot.slane %v3847, 5
      %v3850 = vsel %vm314, %v3845, %v3849
      %v3852 = vshrl.u32 %v3761, 16
      %v3854 = vrot.slane %v3852, 4
      %v3855 = vshll.u32 %v3761, 16
      %v3857 = vrot.slane %v3855, 5
      %v3858 = vor.u32 %v3854, %v3857
      %v3859 = vrot.slane %v3858, 4
      %v3861 = vshll.u32 %v3762, 16
      %v3863 = vrot.slane %v3861, 5
      %v3864 = vsel %vm314, %v3859, %v3863
      %v3865 = vshrl.u32 %v3762, 16
      %v3867 = vrot.slane %v3865, 4
      %v3868 = vor.u32 %v3867, %v3863
      %v3869 = vrot.slane %v3868, 4
      %v3871 = vshll.u32 %v3763, 16
      %v3873 = vrot.slane %v3871, 5
      %v3874 = vsel %vm314, %v3869, %v3873
      %v3876 = vshrl.u32 %v3764, 16
      %v3878 = vrot.slane %v3876, 4
      %v3879 = vshll.u32 %v3764, 16
      %v3881 = vrot.slane %v3879, 5
      %v3882 = vor.u32 %v3878, %v3881
      %v3883 = vrot.slane %v3882, 4
      %v3885 = vshll.u32 %v3765, 16
      %v3887 = vrot.slane %v3885, 5
      %v3888 = vsel %vm314, %v3883, %v3887
      %v3889 = vshrl.u32 %v3765, 16
      %v3891 = vrot.slane %v3889, 4
      %v3892 = vor.u32 %v3891, %v3887
      %v3893 = vrot.slane %v3892, 4
      %v3895 = vshll.u32 %v3766, 16
      %v3897 = vrot.slane %v3895, 5
      %v3898 = vsel %vm314, %v3893, %v3897
      %v3900 = vshrl.u32 %v3767, 16
      %v3902 = vrot.slane %v3900, 4
      %v3903 = vshll.u32 %v3767, 16
      %v3905 = vrot.slane %v3903, 5
      %v3906 = vor.u32 %v3902, %v3905
      %v3907 = vrot.slane %v3906, 4
      %v3909 = vshll.u32 %v3768, 16
      %v3911 = vrot.slane %v3909, 5
      %v3912 = vsel %vm314, %v3907, %v3911
      %v3913 = vshrl.u32 %v3768, 16
      %v3915 = vrot.slane %v3913, 4
      %v3916 = vor.u32 %v3915, %v3911
      %v3917 = vrot.slane %v3916, 4
      %v3919 = vshll.u32 %v3769, 16
      %v3921 = vrot.slane %v3919, 5
      %v3922 = vsel %vm314, %v3917, %v3921
      %v3924 = vshrl.u32 %v3770, 16
      %v3926 = vrot.slane %v3924, 4
      %v3927 = vshll.u32 %v3770, 16
      %v3929 = vrot.slane %v3927, 5
      %v3930 = vor.u32 %v3926, %v3929
      %v3931 = vrot.slane %v3930, 4
      %v3933 = vshll.u32 %v3771, 16
      %v3935 = vrot.slane %v3933, 5
      %v3936 = vsel %vm314, %v3931, %v3935
      %v3937 = vshrl.u32 %v3771, 16
      %v3939 = vrot.slane %v3937, 4
      %v3940 = vor.u32 %v3939, %v3935
      %v3941 = vrot.slane %v3940, 4
      %v3943 = vshll.u32 %v3772, 16
      %v3945 = vrot.slane %v3943, 5
      %v3946 = vsel %vm314, %v3941, %v3945
      %v3948 = vshrl.u32 %v3773, 16
      %v3950 = vrot.slane %v3948, 4
      %v3951 = vshll.u32 %v3773, 16
      %v3953 = vrot.slane %v3951, 5
      %v3954 = vor.u32 %v3950, %v3953
      %v3955 = vrot.slane %v3954, 4
      %v3957 = vshll.u32 %v3774, 16
      %v3959 = vrot.slane %v3957, 5
      %v3960 = vsel %vm314, %v3955, %v3959
      %v3961 = vshrl.u32 %v3774, 16
      %v3963 = vrot.slane %v3961, 4
      %v3964 = vor.u32 %v3963, %v3959
      %v3965 = vrot.slane %v3964, 4
      %v3967 = vshll.u32 %v3775, 16
      %v3969 = vrot.slane %v3967, 5
      %v3970 = vsel %vm314, %v3965, %v3969
      %v3972 = vshrl.u32 %v3776, 16
      %v3974 = vrot.slane %v3972, 4
      %v3975 = vshll.u32 %v3776, 16
      %v3977 = vrot.slane %v3975, 5
      %v3978 = vor.u32 %v3974, %v3977
      %v3979 = vrot.slane %v3978, 4
      %v3981 = vshll.u32 %v3777, 16
      %v3983 = vrot.slane %v3981, 5
      %v3984 = vsel %vm314, %v3979, %v3983
      %v3985 = vshrl.u32 %v3777, 16
      %v3987 = vrot.slane %v3985, 4
      %v3988 = vor.u32 %v3987, %v3983
      %v3989 = vrot.slane %v3988, 4
      %v3991 = vshll.u32 %v3778, 16
      %v3993 = vrot.slane %v3991, 5
      %v3994 = vsel %vm314, %v3989, %v3993
      %v3996 = vshrl.u32 %v3779, 16
      %v3998 = vrot.slane %v3996, 4
      %v3999 = vshll.u32 %v3779, 16
      %v4001 = vrot.slane %v3999, 5
      %v4002 = vor.u32 %v3998, %v4001
      %v4003 = vrot.slane %v4002, 4
      %v4005 = vshll.u32 %v3780, 16
      %v4007 = vrot.slane %v4005, 5
      %v4008 = vsel %vm314, %v4003, %v4007
      %v4009 = vshrl.u32 %v3780, 16
      %v4011 = vrot.slane %v4009, 4
      %v4012 = vor.u32 %v4011, %v4007
      %v4013 = vrot.slane %v4012, 4
      %v4015 = vshll.u32 %v3781, 16
      %v4017 = vrot.slane %v4015, 5
      %v4018 = vsel %vm314, %v4013, %v4017
      %v4020 = vshrl.u32 %v3782, 16
      %v4022 = vrot.slane %v4020, 4
      %v4023 = vshll.u32 %v3782, 16
      %v4025 = vrot.slane %v4023, 5
      %v4026 = vor.u32 %v4022, %v4025
      %v4027 = vrot.slane %v4026, 4
      %v4029 = vshll.u32 %v3783, 16
      %v4031 = vrot.slane %v4029, 5
      %v4032 = vsel %vm314, %v4027, %v4031
      %v4033 = vshrl.u32 %v3783, 16
      %v4035 = vrot.slane %v4033, 4
      %v4036 = vor.u32 %v4035, %v4031
      %v4037 = vrot.slane %v4036, 4
      %v4039 = vshll.u32 %v3784, 16
      %v4041 = vrot.slane %v4039, 5
      %v4042 = vsel %vm314, %v4037, %v4041
      %v4044 = vshrl.u32 %v3785, 16
      %v4046 = vrot.slane %v4044, 4
      %v4047 = vshll.u32 %v3785, 16
      %v4049 = vrot.slane %v4047, 5
      %v4050 = vor.u32 %v4046, %v4049
      %v4051 = vrot.slane %v4050, 4
      %v4053 = vshll.u32 %v3786, 16
      %v4055 = vrot.slane %v4053, 5
      %v4056 = vsel %vm314, %v4051, %v4055
      %v4057 = vshrl.u32 %v3786, 16
      %v4059 = vrot.slane %v4057, 4
      %v4060 = vor.u32 %v4059, %v4055
      %v4061 = vrot.slane %v4060, 4
      %v4063 = vshll.u32 %v3787, 16
      %v4065 = vrot.slane %v4063, 5
      %v4066 = vsel %vm314, %v4061, %v4065
      %v4068 = vshrl.u32 %v3788, 16
      %v4070 = vrot.slane %v4068, 4
      %v4071 = vshll.u32 %v3788, 16
      %v4073 = vrot.slane %v4071, 5
      %v4074 = vor.u32 %v4070, %v4073
      %v4075 = vrot.slane %v4074, 4
      %v4077 = vshll.u32 %v3789, 16
      %v4079 = vrot.slane %v4077, 5
      %v4080 = vsel %vm314, %v4075, %v4079
      %v4081 = vshrl.u32 %v3789, 16
      %v4083 = vrot.slane %v4081, 4
      %v4084 = vor.u32 %v4083, %v4079
      %v4085 = vrot.slane %v4084, 4
      %v4087 = vshll.u32 %v3790, 16
      %v4089 = vrot.slane %v4087, 5
      %v4090 = vsel %vm314, %v4085, %v4089
      %v4092 = vshrl.u32 %v3791, 16
      %v4094 = vrot.slane %v4092, 4
      %v4095 = vshll.u32 %v3791, 16
      %v4097 = vrot.slane %v4095, 5
      %v4098 = vor.u32 %v4094, %v4097
      %v4099 = vrot.slane %v4098, 4
      %v4101 = vshll.u32 %v3792, 16
      %v4103 = vrot.slane %v4101, 5
      %v4104 = vsel %vm314, %v4099, %v4103
      %v4105 = vshrl.u32 %v3792, 16
      %v4107 = vrot.slane %v4105, 4
      %v4108 = vor.u32 %v4107, %v4103
      %v4109 = vrot.slane %v4108, 4
      %v4111 = vshll.u32 %v3793, 16
      %v4113 = vrot.slane %v4111, 5
      %v4114 = vsel %vm314, %v4109, %v4113
      %v4116 = vshrl.u32 %v3794, 16
      %v4118 = vrot.slane %v4116, 4
      %v4119 = vshll.u32 %v3794, 16
      %v4121 = vrot.slane %v4119, 5
      %v4122 = vor.u32 %v4118, %v4121
      %v4123 = vrot.slane %v4122, 4
      %v4125 = vshll.u32 %v3795, 16
      %v4127 = vrot.slane %v4125, 5
      %v4128 = vsel %vm314, %v4123, %v4127
      %v4129 = vshrl.u32 %v3795, 16
      %v4131 = vrot.slane %v4129, 4
      %v4132 = vor.u32 %v4131, %v4127
      %v4133 = vrot.slane %v4132, 4
      %v4135 = vshll.u32 %v3796, 16
      %v4137 = vrot.slane %v4135, 5
      %v4138 = vsel %vm314, %v4133, %v4137
      %v4140 = vshrl.u32 %v3797, 16
      %v4142 = vrot.slane %v4140, 4
      %v4143 = vshll.u32 %v3797, 16
      %v4145 = vrot.slane %v4143, 5
      %v4146 = vor.u32 %v4142, %v4145
      %v4147 = vrot.slane %v4146, 4
      %v4149 = vshll.u32 %v3798, 16
      %v4151 = vrot.slane %v4149, 5
      %v4152 = vsel %vm314, %v4147, %v4151
      %v4153 = vshrl.u32 %v3798, 16
      %v4155 = vrot.slane %v4153, 4
      %v4156 = vor.u32 %v4155, %v4151
      %v4157 = vrot.slane %v4156, 4
      %v4159 = vshll.u32 %v3799, 16
      %v4161 = vrot.slane %v4159, 5
      %v4162 = vsel %vm314, %v4157, %v4161
      %v4164 = vshrl.u32 %v3800, 16
      %v4166 = vrot.slane %v4164, 4
      %v4167 = vshll.u32 %v3800, 16
      %v4169 = vrot.slane %v4167, 5
      %v4170 = vor.u32 %v4166, %v4169
      %v4171 = vrot.slane %v4170, 4
      %v4173 = vshll.u32 %v3801, 16
      %v4175 = vrot.slane %v4173, 5
      %v4176 = vsel %vm314, %v4171, %v4175
      %v4177 = vshrl.u32 %v3801, 16
      %v4179 = vrot.slane %v4177, 4
      %v4180 = vor.u32 %v4179, %v4175
      %v4181 = vrot.slane %v4180, 4
      %v4183 = vshll.u32 %v3802, 16
      %v4185 = vrot.slane %v4183, 5
      %v4186 = vsel %vm314, %v4181, %v4185
      %s4187 = scalar_lea.vmem %s1, 140
      %v4188 = vld [vmem:[%s4187] sm:$0xf]
      %v4189 = vld [vmem:[%s4187 + $0x4] sm:$0xf]
      %v4190 = vld [vmem:[%s4187 + $0x8] sm:$0xf]
      %v4191 = vld [vmem:[%s4187 + $0xc] sm:$0xf]
      %v4192 = vld [vmem:[%s4187 + $0x10] sm:$0x3]
      %v4193 = vunpack.c.l.b16 %v3816
      %v4194 = vunpack.c.l.b16 %v3826
      %v4195 = vunpack.c.l.b16 %v3840
      %v4196 = vunpack.c.l.b16 %v3850
      %v4197 = vunpack.c.l.b16 %v3864
      %v4198 = vunpack.c.l.b16 %v3874
      %v4199 = vunpack.c.l.b16 %v3888
      %v4200 = vunpack.c.l.b16 %v3898
      %v4201 = vunpack.c.l.b16 %v3912
      %v4202 = vunpack.c.l.b16 %v3922
      %v4203 = vunpack.c.l.b16 %v3936
      %v4204 = vunpack.c.l.b16 %v3946
      %v4205 = vunpack.c.l.b16 %v3960
      %v4206 = vunpack.c.l.b16 %v3970
      %v4207 = vunpack.c.l.b16 %v3984
      %v4208 = vunpack.c.l.b16 %v3994
      %v4209 = vunpack.c.l.b16 %v4008
      %v4210 = vunpack.c.l.b16 %v4018
      %v4211 = vunpack.c.l.b16 %v4032
      %v4212 = vunpack.c.l.b16 %v4042
      %v4213 = vunpack.c.l.b16 %v4056
      %v4214 = vunpack.c.l.b16 %v4066
      %v4215 = vunpack.c.l.b16 %v4080
      %v4216 = vunpack.c.l.b16 %v4090
      %v4217 = vunpack.c.l.b16 %v4104
      %v4218 = vunpack.c.l.b16 %v4114
      %v4219 = vunpack.c.l.b16 %v4128
      %v4220 = vunpack.c.l.b16 %v4138
      %v4221 = vunpack.c.l.b16 %v4152
      %v4222 = vunpack.c.l.b16 %v4162
      %v4223 = vunpack.c.l.b16 %v4176
      %v4224 = vunpack.c.l.b16 %v4186
      %v4225 = vpack.c.b16 %v4194, %v4193
      %v4226 = vpack.c.b16 %v4196, %v4195
      %v4227 = vpack.c.b16 %v4198, %v4197
      %v4228 = vpack.c.b16 %v4200, %v4199
      %v4229 = vpack.c.b16 %v4202, %v4201
      %v4230 = vpack.c.b16 %v4204, %v4203
      %v4231 = vpack.c.b16 %v4206, %v4205
      %v4232 = vpack.c.b16 %v4208, %v4207
      %v4233 = vpack.c.b16 %v4210, %v4209
      %v4234 = vpack.c.b16 %v4212, %v4211
      %v4235 = vpack.c.b16 %v4214, %v4213
      %v4236 = vpack.c.b16 %v4216, %v4215
      %v4237 = vpack.c.b16 %v4218, %v4217
      %v4238 = vpack.c.b16 %v4220, %v4219
      %v4239 = vpack.c.b16 %v4222, %v4221
      %v4240 = vpack.c.b16 %v4224, %v4223
      %v4246 = vunpack.c.l.b16 %v4188
      %v4247 = vunpack.c.l.b16 %v4189
      %v4248 = vunpack.c.l.b16 %v4190
      %v4249 = vunpack.c.l.b16 %v4191
      %v4250 = vunpack.c.l.b16 %v4192
      %v4251 = vpack.c.b16 %v4247, %v4246
      %v4252 = vpack.c.b16 %v4249, %v4248
      %v4253 = vpack.c.b16 %v4250, %v4250
      %v4257 = vsel %vm768, %v4225, 0
      %v4260 = vsel %vm768, %v4226, 0
      %v4263 = vsel %vm768, %v4227, 0
      %v4266 = vsel %vm768, %v4228, 0
      %v4269 = vsel %vm768, %v4229, 0
      %v4272 = vsel %vm768, %v4230, 0
      %v4275 = vsel %vm768, %v4231, 0
      %v4278 = vsel %vm768, %v4232, 0
      %v4281 = vsel %vm768, %v4233, 0
      %v4284 = vsel %vm768, %v4234, 0
      %v4287 = vsel %vm768, %v4235, 0
      %v4290 = vsel %vm768, %v4236, 0
      %v4293 = vsel %vm768, %v4237, 0
      %v4296 = vsel %vm768, %v4238, 0
      %v4299 = vsel %vm768, %v4239, 0
      %v4302 = vsel %vm768, %v4240, 0
      %v4305 = vsel %vm817, %v4253, 0
      %4307 = vmatprep.subr.bf16.mxu0 0
      %4308 = vmatpush1.bf16.msra.mxu0 %v4251
      %4309 = vmatprep.subr.bf16.mxu0 0
      %4310 = vmatpush1.bf16.msra.mxu0 %v4252
      %4311 = vmatprep.subr.bf16.mxu0 0
      %4312 = vmatpush1.bf16.msra.mxu0 %v4305
      %4313 = vmatprep.subr.bf16.mxu0 0
      %4314 = vmatpush1.bf16.msra.mxu0 0
      %4315 = vmatprep.subr.bf16.mxu0 0
      %4316 = vmatpush1.bf16.msra.mxu0 0
      %4317 = vmatprep.subr.bf16.mxu0 0
      %4318 = vmatpush1.bf16.msra.mxu0 0
      %4319 = vmatprep.subr.bf16.mxu0 0
      %4320 = vmatpush1.bf16.msra.mxu0 0
      %4321 = vmatprep.subr.bf16.mxu0 0
      %4322 = vmatpush1.bf16.msra.mxu0 0
      %4323 = vmatprep.subr.bf16.mxu0 0
      %4324 = vmatpush1.bf16.msra.mxu0 0
      %4325 = vmatprep.subr.bf16.mxu0 0
      %4326 = vmatpush1.bf16.msra.mxu0 0
      %4327 = vmatprep.subr.bf16.mxu0 0
      %4328 = vmatpush1.bf16.msra.mxu0 0
      %4329 = vmatprep.subr.bf16.mxu0 0
      %4330 = vmatpush1.bf16.msra.mxu0 0
      %4331 = vmatprep.subr.bf16.mxu0 0
      %4332 = vmatpush1.bf16.msra.mxu0 0
      %4333 = vmatprep.subr.bf16.mxu0 0
      %4334 = vmatpush1.bf16.msra.mxu0 0
      %4335 = vmatprep.subr.bf16.mxu0 0
      %4336 = vmatpush1.bf16.msra.mxu0 0
      %4337 = vmatprep.subr.bf16.mxu0 0
      %4338 = vmatpush1.bf16.msra.mxu0 0
      %4339 = vmatprep.mubr.bf16.mxu0 0
      %4340 = vmatmul.mubr.bf16.gmra.mrb[0].mxu0 %v4257
      %v4341 = vpop.f32.mrb[0].mxu0
      %v4342 = vadd.f32 0.0, %v4341
      %v4343 = vpop.f32.mrb[0].mxu0
      %v4344 = vpop.f32.mrb[0].mxu0
      %v4345 = vadd.f32 0.0, %v4344
      %v4346 = vpop.f32.mrb[0].mxu0
      %4347 = vmatprep.mubr.bf16.mxu0 0
      %4348 = vmatmul.mubr.bf16.gmra.mrb[0].mxu0 %v4260
      %v4349 = vpop.f32.mrb[0].mxu0
      %v4350 = vadd.f32 0.0, %v4349
      %v4351 = vpop.f32.mrb[0].mxu0
      %v4352 = vpop.f32.mrb[0].mxu0
      %v4353 = vadd.f32 0.0, %v4352
      %v4354 = vpop.f32.mrb[0].mxu0
      %4355 = vmatprep.mubr.bf16.mxu0 0
      %4356 = vmatmul.mubr.bf16.gmra.mrb[0].mxu0 %v4263
      %v4357 = vpop.f32.mrb[0].mxu0
      %v4358 = vadd.f32 0.0, %v4357
      %v4359 = vpop.f32.mrb[0].mxu0
      %v4360 = vpop.f32.mrb[0].mxu0
      %v4361 = vadd.f32 0.0, %v4360
      %v4362 = vpop.f32.mrb[0].mxu0
      %4363 = vmatprep.mubr.bf16.mxu0 0
      %4364 = vmatmul.mubr.bf16.gmra.mrb[0].mxu0 %v4266
      %v4365 = vpop.f32.mrb[0].mxu0
      %v4366 = vadd.f32 0.0, %v4365
      %v4367 = vpop.f32.mrb[0].mxu0
      %v4368 = vpop.f32.mrb[0].mxu0
      %v4369 = vadd.f32 0.0, %v4368
      %v4370 = vpop.f32.mrb[0].mxu0
      %4371 = vmatprep.mubr.bf16.mxu0 0
      %4372 = vmatmul.mubr.bf16.gmra.mrb[0].mxu0 %v4269
      %v4373 = vpop.f32.mrb[0].mxu0
      %v4374 = vadd.f32 0.0, %v4373
      %v4375 = vpop.f32.mrb[0].mxu0
      %v4376 = vpop.f32.mrb[0].mxu0
      %v4377 = vadd.f32 0.0, %v4376
      %v4378 = vpop.f32.mrb[0].mxu0
      %4379 = vmatprep.mubr.bf16.mxu0 0
      %4380 = vmatmul.mubr.bf16.gmra.mrb[0].mxu0 %v4272
      %v4381 = vpop.f32.mrb[0].mxu0
      %v4382 = vadd.f32 0.0, %v4381
      %v4383 = vpop.f32.mrb[0].mxu0
      %v4384 = vpop.f32.mrb[0].mxu0
      %v4385 = vadd.f32 0.0, %v4384
      %v4386 = vpop.f32.mrb[0].mxu0
      %4387 = vmatprep.mubr.bf16.mxu0 0
      %4388 = vmatmul.mubr.bf16.gmra.mrb[0].mxu0 %v4275
      %v4389 = vpop.f32.mrb[0].mxu0
      %v4390 = vadd.f32 0.0, %v4389
      %v4391 = vpop.f32.mrb[0].mxu0
      %v4392 = vpop.f32.mrb[0].mxu0
      %v4393 = vadd.f32 0.0, %v4392
      %v4394 = vpop.f32.mrb[0].mxu0
      %4395 = vmatprep.mubr.bf16.mxu0 0
      %4396 = vmatmul.mubr.bf16.gmra.mrb[0].mxu0 %v4278
      %v4397 = vpop.f32.mrb[0].mxu0
      %v4398 = vadd.f32 0.0, %v4397
      %v4399 = vpop.f32.mrb[0].mxu0
      %v4400 = vpop.f32.mrb[0].mxu0
      %v4401 = vadd.f32 0.0, %v4400
      %v4402 = vpop.f32.mrb[0].mxu0
      %4403 = vmatprep.mubr.bf16.mxu0 0
      %4404 = vmatmul.mubr.bf16.gmra.mrb[0].mxu0 %v4281
      %v4405 = vpop.f32.mrb[0].mxu0
      %v4406 = vadd.f32 0.0, %v4405
      %v4407 = vpop.f32.mrb[0].mxu0
      %v4408 = vpop.f32.mrb[0].mxu0
      %v4409 = vadd.f32 0.0, %v4408
      %v4410 = vpop.f32.mrb[0].mxu0
      %4411 = vmatprep.mubr.bf16.mxu0 0
      %4412 = vmatmul.mubr.bf16.gmra.mrb[0].mxu0 %v4284
      %v4413 = vpop.f32.mrb[0].mxu0
      %v4414 = vadd.f32 0.0, %v4413
      %v4415 = vpop.f32.mrb[0].mxu0
      %v4416 = vpop.f32.mrb[0].mxu0
      %v4417 = vadd.f32 0.0, %v4416
      %v4418 = vpop.f32.mrb[0].mxu0
      %4419 = vmatprep.mubr.bf16.mxu0 0
      %4420 = vmatmul.mubr.bf16.gmra.mrb[0].mxu0 %v4287
      %v4421 = vpop.f32.mrb[0].mxu0
      %v4422 = vadd.f32 0.0, %v4421
      %v4423 = vpop.f32.mrb[0].mxu0
      %v4424 = vpop.f32.mrb[0].mxu0
      %v4425 = vadd.f32 0.0, %v4424
      %v4426 = vpop.f32.mrb[0].mxu0
      %4427 = vmatprep.mubr.bf16.mxu0 0
      %4428 = vmatmul.mubr.bf16.gmra.mrb[0].mxu0 %v4290
      %v4429 = vpop.f32.mrb[0].mxu0
      %v4430 = vadd.f32 0.0, %v4429
      %v4431 = vpop.f32.mrb[0].mxu0
      %v4432 = vpop.f32.mrb[0].mxu0
      %v4433 = vadd.f32 0.0, %v4432
      %v4434 = vpop.f32.mrb[0].mxu0
      %4435 = vmatprep.mubr.bf16.mxu0 0
      %4436 = vmatmul.mubr.bf16.gmra.mrb[0].mxu0 %v4293
      %v4437 = vpop.f32.mrb[0].mxu0
      %v4438 = vadd.f32 0.0, %v4437
      %v4439 = vpop.f32.mrb[0].mxu0
      %v4440 = vpop.f32.mrb[0].mxu0
      %v4441 = vadd.f32 0.0, %v4440
      %v4442 = vpop.f32.mrb[0].mxu0
      %4443 = vmatprep.mubr.bf16.mxu0 0
      %4444 = vmatmul.mubr.bf16.gmra.mrb[0].mxu0 %v4296
      %v4445 = vpop.f32.mrb[0].mxu0
      %v4446 = vadd.f32 0.0, %v4445
      %v4447 = vpop.f32.mrb[0].mxu0
      %v4448 = vpop.f32.mrb[0].mxu0
      %v4449 = vadd.f32 0.0, %v4448
      %v4450 = vpop.f32.mrb[0].mxu0
      %4451 = vmatprep.mubr.bf16.mxu0 0
      %4452 = vmatmul.mubr.bf16.gmra.mrb[0].mxu0 %v4299
      %v4453 = vpop.f32.mrb[0].mxu0
      %v4454 = vadd.f32 0.0, %v4453
      %v4455 = vpop.f32.mrb[0].mxu0
      %v4456 = vpop.f32.mrb[0].mxu0
      %v4457 = vadd.f32 0.0, %v4456
      %v4458 = vpop.f32.mrb[0].mxu0
      %4459 = vmatprep.mubr.bf16.mxu0 0
      %4460 = vmatmul.mubr.bf16.gmra.mrb[0].mxu0 %v4302
      %v4461 = vpop.f32.mrb[0].mxu0
      %v4462 = vadd.f32 0.0, %v4461
      %v4463 = vpop.f32.mrb[0].mxu0
      %v4464 = vpop.f32.mrb[0].mxu0
      %v4465 = vadd.f32 0.0, %v4464
      %v4466 = vpop.f32.mrb[0].mxu0
      %4467 = vdwg.mxu0
      %v4468 = vadd.f32 %v3723, %v4342
      %v4469 = vadd.f32 %v3724, %v4345
      %v4470 = vadd.f32 %v3725, %v4350
      %v4471 = vadd.f32 %v3726, %v4353
      %v4472 = vadd.f32 %v3727, %v4358
      %v4473 = vadd.f32 %v3728, %v4361
      %v4474 = vadd.f32 %v3729, %v4366
      %v4475 = vadd.f32 %v3730, %v4369
      %v4476 = vadd.f32 %v3731, %v4374
      %v4477 = vadd.f32 %v3732, %v4377
      %v4478 = vadd.f32 %v3733, %v4382
      %v4479 = vadd.f32 %v3734, %v4385
      %v4480 = vadd.f32 %v3735, %v4390
      %v4481 = vadd.f32 %v3736, %v4393
      %v4482 = vadd.f32 %v3737, %v4398
      %v4483 = vadd.f32 %v3738, %v4401
      %v4484 = vadd.f32 %v3739, %v4406
      %v4485 = vadd.f32 %v3740, %v4409
      %v4486 = vadd.f32 %v3741, %v4414
      %v4487 = vadd.f32 %v3742, %v4417
      %v4488 = vadd.f32 %v3743, %v4422
      %v4489 = vadd.f32 %v3744, %v4425
      %v4490 = vadd.f32 %v3745, %v4430
      %v4491 = vadd.f32 %v3746, %v4433
      %v4492 = vadd.f32 %v3747, %v4438
      %v4493 = vadd.f32 %v3748, %v4441
      %v4494 = vadd.f32 %v3749, %v4446
      %v4495 = vadd.f32 %v3750, %v4449
      %v4496 = vadd.f32 %v3751, %v4454
      %v4497 = vadd.f32 %v3752, %v4457
      %v4498 = vadd.f32 %v3753, %v4462
      %v4499 = vadd.f32 %v3754, %v4465
      %v4500 = vld [vmem:[%s3377] sm:$0xe]
      %v4501 = vld [vmem:[%s3377 + $0xc] sm:$0xe]
      %v4502 = vld [vmem:[%s3377 + $0x18] sm:$0xe]
      %v4503 = vld [vmem:[%s3377 + $0x24] sm:$0xe]
      %v4504 = vld [vmem:[%s3377 + $0x30] sm:$0xe]
      %v4505 = vld [vmem:[%s3377 + $0x3c] sm:$0xe]
      %v4506 = vld [vmem:[%s3377 + $0x48] sm:$0xe]
      %v4507 = vld [vmem:[%s3377 + $0x54] sm:$0xe]
      %v4508 = vld [vmem:[%s3377 + $0x60] sm:$0xe]
      %v4509 = vld [vmem:[%s3377 + $0x6c] sm:$0xe]
      %v4510 = vld [vmem:[%s3377 + $0x78] sm:$0xe]
      %v4511 = vld [vmem:[%s3377 + $0x84] sm:$0xe]
      %v4512 = vld [vmem:[%s3377 + $0x90] sm:$0xe]
      %v4513 = vld [vmem:[%s3377 + $0x9c] sm:$0xe]
      %v4514 = vld [vmem:[%s3377 + $0xa8] sm:$0xe]
      %v4515 = vld [vmem:[%s3377 + $0xb4] sm:$0xe]
      %v4564 = vrot.slane %v4500, 5
      %v4565 = vrot.slane %v4564, 4
      %v4566 = vrot.slane %v3756, 5
      %v4567 = vsel %vm1339, %v4565, %v4566
      %v4568 = vrot.slane %v4566, 4
      %v4569 = vrot.slane %v3757, 5
      %v4570 = vsel %vm1339, %v4568, %v4569
      %v4571 = vrot.slane %v4501, 5
      %v4572 = vrot.slane %v4571, 4
      %v4573 = vrot.slane %v3759, 5
      %v4574 = vsel %vm1339, %v4572, %v4573
      %v4575 = vrot.slane %v4573, 4
      %v4576 = vrot.slane %v3760, 5
      %v4577 = vsel %vm1339, %v4575, %v4576
      %v4578 = vrot.slane %v4502, 5
      %v4579 = vrot.slane %v4578, 4
      %v4580 = vrot.slane %v3762, 5
      %v4581 = vsel %vm1339, %v4579, %v4580
      %v4582 = vrot.slane %v4580, 4
      %v4583 = vrot.slane %v3763, 5
      %v4584 = vsel %vm1339, %v4582, %v4583
      %v4585 = vrot.slane %v4503, 5
      %v4586 = vrot.slane %v4585, 4
      %v4587 = vrot.slane %v3765, 5
      %v4588 = vsel %vm1339, %v4586, %v4587
      %v4589 = vrot.slane %v4587, 4
      %v4590 = vrot.slane %v3766, 5
      %v4591 = vsel %vm1339, %v4589, %v4590
      %v4592 = vrot.slane %v4504, 5
      %v4593 = vrot.slane %v4592, 4
      %v4594 = vrot.slane %v3768, 5
      %v4595 = vsel %vm1339, %v4593, %v4594
      %v4596 = vrot.slane %v4594, 4
      %v4597 = vrot.slane %v3769, 5
      %v4598 = vsel %vm1339, %v4596, %v4597
      %v4599 = vrot.slane %v4505, 5
      %v4600 = vrot.slane %v4599, 4
      %v4601 = vrot.slane %v3771, 5
      %v4602 = vsel %vm1339, %v4600, %v4601
      %v4603 = vrot.slane %v4601, 4
      %v4604 = vrot.slane %v3772, 5
      %v4605 = vsel %vm1339, %v4603, %v4604
      %v4606 = vrot.slane %v4506, 5
      %v4607 = vrot.slane %v4606, 4
      %v4608 = vrot.slane %v3774, 5
      %v4609 = vsel %vm1339, %v4607, %v4608
      %v4610 = vrot.slane %v4608, 4
      %v4611 = vrot.slane %v3775, 5
      %v4612 = vsel %vm1339, %v4610, %v4611
      %v4613 = vrot.slane %v4507, 5
      %v4614 = vrot.slane %v4613, 4
      %v4615 = vrot.slane %v3777, 5
      %v4616 = vsel %vm1339, %v4614, %v4615
      %v4617 = vrot.slane %v4615, 4
      %v4618 = vrot.slane %v3778, 5
      %v4619 = vsel %vm1339, %v4617, %v4618
      %v4620 = vrot.slane %v4508, 5
      %v4621 = vrot.slane %v4620, 4
      %v4622 = vrot.slane %v3780, 5
      %v4623 = vsel %vm1339, %v4621, %v4622
      %v4624 = vrot.slane %v4622, 4
      %v4625 = vrot.slane %v3781, 5
      %v4626 = vsel %vm1339, %v4624, %v4625
      %v4627 = vrot.slane %v4509, 5
      %v4628 = vrot.slane %v4627, 4
      %v4629 = vrot.slane %v3783, 5
      %v4630 = vsel %vm1339, %v4628, %v4629
      %v4631 = vrot.slane %v4629, 4
      %v4632 = vrot.slane %v3784, 5
      %v4633 = vsel %vm1339, %v4631, %v4632
      %v4634 = vrot.slane %v4510, 5
      %v4635 = vrot.slane %v4634, 4
      %v4636 = vrot.slane %v3786, 5
      %v4637 = vsel %vm1339, %v4635, %v4636
      %v4638 = vrot.slane %v4636, 4
      %v4639 = vrot.slane %v3787, 5
      %v4640 = vsel %vm1339, %v4638, %v4639
      %v4641 = vrot.slane %v4511, 5
      %v4642 = vrot.slane %v4641, 4
      %v4643 = vrot.slane %v3789, 5
      %v4644 = vsel %vm1339, %v4642, %v4643
      %v4645 = vrot.slane %v4643, 4
      %v4646 = vrot.slane %v3790, 5
      %v4647 = vsel %vm1339, %v4645, %v4646
      %v4648 = vrot.slane %v4512, 5
      %v4649 = vrot.slane %v4648, 4
      %v4650 = vrot.slane %v3792, 5
      %v4651 = vsel %vm1339, %v4649, %v4650
      %v4652 = vrot.slane %v4650, 4
      %v4653 = vrot.slane %v3793, 5
      %v4654 = vsel %vm1339, %v4652, %v4653
      %v4655 = vrot.slane %v4513, 5
      %v4656 = vrot.slane %v4655, 4
      %v4657 = vrot.slane %v3795, 5
      %v4658 = vsel %vm1339, %v4656, %v4657
      %v4659 = vrot.slane %v4657, 4
      %v4660 = vrot.slane %v3796, 5
      %v4661 = vsel %vm1339, %v4659, %v4660
      %v4662 = vrot.slane %v4514, 5
      %v4663 = vrot.slane %v4662, 4
      %v4664 = vrot.slane %v3798, 5
      %v4665 = vsel %vm1339, %v4663, %v4664
      %v4666 = vrot.slane %v4664, 4
      %v4667 = vrot.slane %v3799, 5
      %v4668 = vsel %vm1339, %v4666, %v4667
      %v4669 = vrot.slane %v4515, 5
      %v4670 = vrot.slane %v4669, 4
      %v4671 = vrot.slane %v3801, 5
      %v4672 = vsel %vm1339, %v4670, %v4671
      %v4673 = vrot.slane %v4671, 4
      %v4674 = vrot.slane %v3802, 5
      %v4675 = vsel %vm1339, %v4673, %v4674
      %s4676 = scalar_lea.vmem %s1, 160
      %v4677 = vld [vmem:[%s4676] sm:$0xf]
      %v4678 = vld [vmem:[%s4676 + $0x4] sm:$0xf]
      %v4679 = vld [vmem:[%s4676 + $0x8] sm:$0xf]
      %v4680 = vld [vmem:[%s4676 + $0xc] sm:$0xf]
      %v4681 = vld [vmem:[%s4676 + $0x10] sm:$0x3]
      %v4682 = vunpack.c.l.b16 %v4567
      %v4683 = vunpack.c.l.b16 %v4570
      %v4684 = vunpack.c.l.b16 %v4574
      %v4685 = vunpack.c.l.b16 %v4577
      %v4686 = vunpack.c.l.b16 %v4581
      %v4687 = vunpack.c.l.b16 %v4584
      %v4688 = vunpack.c.l.b16 %v4588
      %v4689 = vunpack.c.l.b16 %v4591
      %v4690 = vunpack.c.l.b16 %v4595
      %v4691 = vunpack.c.l.b16 %v4598
      %v4692 = vunpack.c.l.b16 %v4602
      %v4693 = vunpack.c.l.b16 %v4605
      %v4694 = vunpack.c.l.b16 %v4609
      %v4695 = vunpack.c.l.b16 %v4612
      %v4696 = vunpack.c.l.b16 %v4616
      %v4697 = vunpack.c.l.b16 %v4619
      %v4698 = vunpack.c.l.b16 %v4623
      %v4699 = vunpack.c.l.b16 %v4626
      %v4700 = vunpack.c.l.b16 %v4630
      %v4701 = vunpack.c.l.b16 %v4633
      %v4702 = vunpack.c.l.b16 %v4637
      %v4703 = vunpack.c.l.b16 %v4640
      %v4704 = vunpack.c.l.b16 %v4644
      %v4705 = vunpack.c.l.b16 %v4647
      %v4706 = vunpack.c.l.b16 %v4651
      %v4707 = vunpack.c.l.b16 %v4654
      %v4708 = vunpack.c.l.b16 %v4658
      %v4709 = vunpack.c.l.b16 %v4661
      %v4710 = vunpack.c.l.b16 %v4665
      %v4711 = vunpack.c.l.b16 %v4668
      %v4712 = vunpack.c.l.b16 %v4672
      %v4713 = vunpack.c.l.b16 %v4675
      %v4714 = vpack.c.b16 %v4683, %v4682
      %v4715 = vpack.c.b16 %v4685, %v4684
      %v4716 = vpack.c.b16 %v4687, %v4686
      %v4717 = vpack.c.b16 %v4689, %v4688
      %v4718 = vpack.c.b16 %v4691, %v4690
      %v4719 = vpack.c.b16 %v4693, %v4692
      %v4720 = vpack.c.b16 %v4695, %v4694
      %v4721 = vpack.c.b16 %v4697, %v4696
      %v4722 = vpack.c.b16 %v4699, %v4698
      %v4723 = vpack.c.b16 %v4701, %v4700
      %v4724 = vpack.c.b16 %v4703, %v4702
      %v4725 = vpack.c.b16 %v4705, %v4704
      %v4726 = vpack.c.b16 %v4707, %v4706
      %v4727 = vpack.c.b16 %v4709, %v4708
      %v4728 = vpack.c.b16 %v4711, %v4710
      %v4729 = vpack.c.b16 %v4713, %v4712
      %v4735 = vunpack.c.l.b16 %v4677
      %v4736 = vunpack.c.l.b16 %v4678
      %v4737 = vunpack.c.l.b16 %v4679
      %v4738 = vunpack.c.l.b16 %v4680
      %v4739 = vunpack.c.l.b16 %v4681
      %v4740 = vpack.c.b16 %v4736, %v4735
      %v4741 = vpack.c.b16 %v4738, %v4737
      %v4742 = vpack.c.b16 %v4739, %v4739
      %v4746 = vsel %vm768, %v4714, 0
      %v4749 = vsel %vm768, %v4715, 0
      %v4752 = vsel %vm768, %v4716, 0
      %v4755 = vsel %vm768, %v4717, 0
      %v4758 = vsel %vm768, %v4718, 0
      %v4761 = vsel %vm768, %v4719, 0
      %v4764 = vsel %vm768, %v4720, 0
      %v4767 = vsel %vm768, %v4721, 0
      %v4770 = vsel %vm768, %v4722, 0
      %v4773 = vsel %vm768, %v4723, 0
      %v4776 = vsel %vm768, %v4724, 0
      %v4779 = vsel %vm768, %v4725, 0
      %v4782 = vsel %vm768, %v4726, 0
      %v4785 = vsel %vm768, %v4727, 0
      %v4788 = vsel %vm768, %v4728, 0
      %v4791 = vsel %vm768, %v4729, 0
      %v4794 = vsel %vm817, %v4742, 0
      %4796 = vmatprep.subr.bf16.mxu0 0
      %4797 = vmatpush1.bf16.msra.mxu0 %v4740
      %4798 = vmatprep.subr.bf16.mxu0 0
      %4799 = vmatpush1.bf16.msra.mxu0 %v4741
      %4800 = vmatprep.subr.bf16.mxu0 0
      %4801 = vmatpush1.bf16.msra.mxu0 %v4794
      %4802 = vmatprep.subr.bf16.mxu0 0
      %4803 = vmatpush1.bf16.msra.mxu0 0
      %4804 = vmatprep.subr.bf16.mxu0 0
      %4805 = vmatpush1.bf16.msra.mxu0 0
      %4806 = vmatprep.subr.bf16.mxu0 0
      %4807 = vmatpush1.bf16.msra.mxu0 0
      %4808 = vmatprep.subr.bf16.mxu0 0
      %4809 = vmatpush1.bf16.msra.mxu0 0
      %4810 = vmatprep.subr.bf16.mxu0 0
      %4811 = vmatpush1.bf16.msra.mxu0 0
      %4812 = vmatprep.subr.bf16.mxu0 0
      %4813 = vmatpush1.bf16.msra.mxu0 0
      %4814 = vmatprep.subr.bf16.mxu0 0
      %4815 = vmatpush1.bf16.msra.mxu0 0
      %4816 = vmatprep.subr.bf16.mxu0 0
      %4817 = vmatpush1.bf16.msra.mxu0 0
      %4818 = vmatprep.subr.bf16.mxu0 0
      %4819 = vmatpush1.bf16.msra.mxu0 0
      %4820 = vmatprep.subr.bf16.mxu0 0
      %4821 = vmatpush1.bf16.msra.mxu0 0
      %4822 = vmatprep.subr.bf16.mxu0 0
      %4823 = vmatpush1.bf16.msra.mxu0 0
      %4824 = vmatprep.subr.bf16.mxu0 0
      %4825 = vmatpush1.bf16.msra.mxu0 0
      %4826 = vmatprep.subr.bf16.mxu0 0
      %4827 = vmatpush1.bf16.msra.mxu0 0
      %4828 = vmatprep.mubr.bf16.mxu0 0
      %4829 = vmatmul.mubr.bf16.gmra.mrb[0].mxu0 %v4746
      %v4830 = vpop.f32.mrb[0].mxu0
      %v4831 = vadd.f32 0.0, %v4830
      %v4832 = vpop.f32.mrb[0].mxu0
      %v4833 = vpop.f32.mrb[0].mxu0
      %v4834 = vadd.f32 0.0, %v4833
      %v4835 = vpop.f32.mrb[0].mxu0
      %4836 = vmatprep.mubr.bf16.mxu0 0
      %4837 = vmatmul.mubr.bf16.gmra.mrb[0].mxu0 %v4749
      %v4838 = vpop.f32.mrb[0].mxu0
      %v4839 = vadd.f32 0.0, %v4838
      %v4840 = vpop.f32.mrb[0].mxu0
      %v4841 = vpop.f32.mrb[0].mxu0
      %v4842 = vadd.f32 0.0, %v4841
      %v4843 = vpop.f32.mrb[0].mxu0
      %4844 = vmatprep.mubr.bf16.mxu0 0
      %4845 = vmatmul.mubr.bf16.gmra.mrb[0].mxu0 %v4752
      %v4846 = vpop.f32.mrb[0].mxu0
      %v4847 = vadd.f32 0.0, %v4846
      %v4848 = vpop.f32.mrb[0].mxu0
      %v4849 = vpop.f32.mrb[0].mxu0
      %v4850 = vadd.f32 0.0, %v4849
      %v4851 = vpop.f32.mrb[0].mxu0
      %4852 = vmatprep.mubr.bf16.mxu0 0
      %4853 = vmatmul.mubr.bf16.gmra.mrb[0].mxu0 %v4755
      %v4854 = vpop.f32.mrb[0].mxu0
      %v4855 = vadd.f32 0.0, %v4854
      %v4856 = vpop.f32.mrb[0].mxu0
      %v4857 = vpop.f32.mrb[0].mxu0
      %v4858 = vadd.f32 0.0, %v4857
      %v4859 = vpop.f32.mrb[0].mxu0
      %4860 = vmatprep.mubr.bf16.mxu0 0
      %4861 = vmatmul.mubr.bf16.gmra.mrb[0].mxu0 %v4758
      %v4862 = vpop.f32.mrb[0].mxu0
      %v4863 = vadd.f32 0.0, %v4862
      %v4864 = vpop.f32.mrb[0].mxu0
      %v4865 = vpop.f32.mrb[0].mxu0
      %v4866 = vadd.f32 0.0, %v4865
      %v4867 = vpop.f32.mrb[0].mxu0
      %4868 = vmatprep.mubr.bf16.mxu0 0
      %4869 = vmatmul.mubr.bf16.gmra.mrb[0].mxu0 %v4761
      %v4870 = vpop.f32.mrb[0].mxu0
      %v4871 = vadd.f32 0.0, %v4870
      %v4872 = vpop.f32.mrb[0].mxu0
      %v4873 = vpop.f32.mrb[0].mxu0
      %v4874 = vadd.f32 0.0, %v4873
      %v4875 = vpop.f32.mrb[0].mxu0
      %4876 = vmatprep.mubr.bf16.mxu0 0
      %4877 = vmatmul.mubr.bf16.gmra.mrb[0].mxu0 %v4764
      %v4878 = vpop.f32.mrb[0].mxu0
      %v4879 = vadd.f32 0.0, %v4878
      %v4880 = vpop.f32.mrb[0].mxu0
      %v4881 = vpop.f32.mrb[0].mxu0
      %v4882 = vadd.f32 0.0, %v4881
      %v4883 = vpop.f32.mrb[0].mxu0
      %4884 = vmatprep.mubr.bf16.mxu0 0
      %4885 = vmatmul.mubr.bf16.gmra.mrb[0].mxu0 %v4767
      %v4886 = vpop.f32.mrb[0].mxu0
      %v4887 = vadd.f32 0.0, %v4886
      %v4888 = vpop.f32.mrb[0].mxu0
      %v4889 = vpop.f32.mrb[0].mxu0
      %v4890 = vadd.f32 0.0, %v4889
      %v4891 = vpop.f32.mrb[0].mxu0
      %4892 = vmatprep.mubr.bf16.mxu0 0
      %4893 = vmatmul.mubr.bf16.gmra.mrb[0].mxu0 %v4770
      %v4894 = vpop.f32.mrb[0].mxu0
      %v4895 = vadd.f32 0.0, %v4894
      %v4896 = vpop.f32.mrb[0].mxu0
      %v4897 = vpop.f32.mrb[0].mxu0
      %v4898 = vadd.f32 0.0, %v4897
      %v4899 = vpop.f32.mrb[0].mxu0
      %4900 = vmatprep.mubr.bf16.mxu0 0
      %4901 = vmatmul.mubr.bf16.gmra.mrb[0].mxu0 %v4773
      %v4902 = vpop.f32.mrb[0].mxu0
      %v4903 = vadd.f32 0.0, %v4902
      %v4904 = vpop.f32.mrb[0].mxu0
      %v4905 = vpop.f32.mrb[0].mxu0
      %v4906 = vadd.f32 0.0, %v4905
      %v4907 = vpop.f32.mrb[0].mxu0
      %4908 = vmatprep.mubr.bf16.mxu0 0
      %4909 = vmatmul.mubr.bf16.gmra.mrb[0].mxu0 %v4776
      %v4910 = vpop.f32.mrb[0].mxu0
      %v4911 = vadd.f32 0.0, %v4910
      %v4912 = vpop.f32.mrb[0].mxu0
      %v4913 = vpop.f32.mrb[0].mxu0
      %v4914 = vadd.f32 0.0, %v4913
      %v4915 = vpop.f32.mrb[0].mxu0
      %4916 = vmatprep.mubr.bf16.mxu0 0
      %4917 = vmatmul.mubr.bf16.gmra.mrb[0].mxu0 %v4779
      %v4918 = vpop.f32.mrb[0].mxu0
      %v4919 = vadd.f32 0.0, %v4918
      %v4920 = vpop.f32.mrb[0].mxu0
      %v4921 = vpop.f32.mrb[0].mxu0
      %v4922 = vadd.f32 0.0, %v4921
      %v4923 = vpop.f32.mrb[0].mxu0
      %4924 = vmatprep.mubr.bf16.mxu0 0
      %4925 = vmatmul.mubr.bf16.gmra.mrb[0].mxu0 %v4782
      %v4926 = vpop.f32.mrb[0].mxu0
      %v4927 = vadd.f32 0.0, %v4926
      %v4928 = vpop.f32.mrb[0].mxu0
      %v4929 = vpop.f32.mrb[0].mxu0
      %v4930 = vadd.f32 0.0, %v4929
      %v4931 = vpop.f32.mrb[0].mxu0
      %4932 = vmatprep.mubr.bf16.mxu0 0
      %4933 = vmatmul.mubr.bf16.gmra.mrb[0].mxu0 %v4785
      %v4934 = vpop.f32.mrb[0].mxu0
      %v4935 = vadd.f32 0.0, %v4934
      %v4936 = vpop.f32.mrb[0].mxu0
      %v4937 = vpop.f32.mrb[0].mxu0
      %v4938 = vadd.f32 0.0, %v4937
      %v4939 = vpop.f32.mrb[0].mxu0
      %4940 = vmatprep.mubr.bf16.mxu0 0
      %4941 = vmatmul.mubr.bf16.gmra.mrb[0].mxu0 %v4788
      %v4942 = vpop.f32.mrb[0].mxu0
      %v4943 = vadd.f32 0.0, %v4942
      %v4944 = vpop.f32.mrb[0].mxu0
      %v4945 = vpop.f32.mrb[0].mxu0
      %v4946 = vadd.f32 0.0, %v4945
      %v4947 = vpop.f32.mrb[0].mxu0
      %4948 = vmatprep.mubr.bf16.mxu0 0
      %4949 = vmatmul.mubr.bf16.gmra.mrb[0].mxu0 %v4791
      %v4950 = vpop.f32.mrb[0].mxu0
      %v4951 = vadd.f32 0.0, %v4950
      %v4952 = vpop.f32.mrb[0].mxu0
      %v4953 = vpop.f32.mrb[0].mxu0
      %v4954 = vadd.f32 0.0, %v4953
      %v4955 = vpop.f32.mrb[0].mxu0
      %4956 = vdwg.mxu0
      %v4957 = vadd.f32 %v4468, %v4831
      %v4958 = vadd.f32 %v4469, %v4834
      %v4959 = vadd.f32 %v4470, %v4839
      %v4960 = vadd.f32 %v4471, %v4842
      %v4961 = vadd.f32 %v4472, %v4847
      %v4962 = vadd.f32 %v4473, %v4850
      %v4963 = vadd.f32 %v4474, %v4855
      %v4964 = vadd.f32 %v4475, %v4858
      %v4965 = vadd.f32 %v4476, %v4863
      %v4966 = vadd.f32 %v4477, %v4866
      %v4967 = vadd.f32 %v4478, %v4871
      %v4968 = vadd.f32 %v4479, %v4874
      %v4969 = vadd.f32 %v4480, %v4879
      %v4970 = vadd.f32 %v4481, %v4882
      %v4971 = vadd.f32 %v4482, %v4887
      %v4972 = vadd.f32 %v4483, %v4890
      %v4973 = vadd.f32 %v4484, %v4895
      %v4974 = vadd.f32 %v4485, %v4898
      %v4975 = vadd.f32 %v4486, %v4903
      %v4976 = vadd.f32 %v4487, %v4906
      %v4977 = vadd.f32 %v4488, %v4911
      %v4978 = vadd.f32 %v4489, %v4914
      %v4979 = vadd.f32 %v4490, %v4919
      %v4980 = vadd.f32 %v4491, %v4922
      %v4981 = vadd.f32 %v4492, %v4927
      %v4982 = vadd.f32 %v4493, %v4930
      %v4983 = vadd.f32 %v4494, %v4935
      %v4984 = vadd.f32 %v4495, %v4938
      %v4985 = vadd.f32 %v4496, %v4943
      %v4986 = vadd.f32 %v4497, %v4946
      %v4987 = vadd.f32 %v4498, %v4951
      %v4988 = vadd.f32 %v4499, %v4954
      %v4989 = vld [vmem:[%s2] sm:$0x1]
      %v4991 = vlaneseq
      %v4992 = vshrl.u32 %v4991, 7
      %v4993 = vsub.s32 0, %v4992
      %v4994 = vrot.slane %v4989, %v4993
      %v4996 = vadd.f32 %v4957, %v4994
      %v4997 = vadd.f32 %v4958, %v4994
      %v4998 = vadd.f32 %v4959, %v4994
      %v4999 = vadd.f32 %v4960, %v4994
      %v5000 = vadd.f32 %v4961, %v4994
      %v5001 = vadd.f32 %v4962, %v4994
      %v5002 = vadd.f32 %v4963, %v4994
      %v5003 = vadd.f32 %v4964, %v4994
      %v5004 = vadd.f32 %v4965, %v4994
      %v5005 = vadd.f32 %v4966, %v4994
      %v5006 = vadd.f32 %v4967, %v4994
      %v5007 = vadd.f32 %v4968, %v4994
      %v5008 = vadd.f32 %v4969, %v4994
      %v5009 = vadd.f32 %v4970, %v4994
      %v5010 = vadd.f32 %v4971, %v4994
      %v5011 = vadd.f32 %v4972, %v4994
      %v5012 = vadd.f32 %v4973, %v4994
      %v5013 = vadd.f32 %v4974, %v4994
      %v5014 = vadd.f32 %v4975, %v4994
      %v5015 = vadd.f32 %v4976, %v4994
      %v5016 = vadd.f32 %v4977, %v4994
      %v5017 = vadd.f32 %v4978, %v4994
      %v5018 = vadd.f32 %v4979, %v4994
      %v5019 = vadd.f32 %v4980, %v4994
      %v5020 = vadd.f32 %v4981, %v4994
      %v5021 = vadd.f32 %v4982, %v4994
      %v5022 = vadd.f32 %v4983, %v4994
      %v5023 = vadd.f32 %v4984, %v4994
      %v5024 = vadd.f32 %v4985, %v4994
      %v5025 = vadd.f32 %v4986, %v4994
      %v5026 = vadd.f32 %v4987, %v4994
      %v5027 = vadd.f32 %v4988, %v4994
      %v5028 = vxor.u32 %v4996, 2147483648
      %v5029 = vxor.u32 %v4997, 2147483648
      %v5030 = vxor.u32 %v4998, 2147483648
      %v5031 = vxor.u32 %v4999, 2147483648
      %v5032 = vxor.u32 %v5000, 2147483648
      %v5033 = vxor.u32 %v5001, 2147483648
      %v5034 = vxor.u32 %v5002, 2147483648
      %v5035 = vxor.u32 %v5003, 2147483648
      %v5036 = vxor.u32 %v5004, 2147483648
      %v5037 = vxor.u32 %v5005, 2147483648
      %v5038 = vxor.u32 %v5006, 2147483648
      %v5039 = vxor.u32 %v5007, 2147483648
      %v5040 = vxor.u32 %v5008, 2147483648
      %v5041 = vxor.u32 %v5009, 2147483648
      %v5042 = vxor.u32 %v5010, 2147483648
      %v5043 = vxor.u32 %v5011, 2147483648
      %v5044 = vxor.u32 %v5012, 2147483648
      %v5045 = vxor.u32 %v5013, 2147483648
      %v5046 = vxor.u32 %v5014, 2147483648
      %v5047 = vxor.u32 %v5015, 2147483648
      %v5048 = vxor.u32 %v5016, 2147483648
      %v5049 = vxor.u32 %v5017, 2147483648
      %v5050 = vxor.u32 %v5018, 2147483648
      %v5051 = vxor.u32 %v5019, 2147483648
      %v5052 = vxor.u32 %v5020, 2147483648
      %v5053 = vxor.u32 %v5021, 2147483648
      %v5054 = vxor.u32 %v5022, 2147483648
      %v5055 = vxor.u32 %v5023, 2147483648
      %v5056 = vxor.u32 %v5024, 2147483648
      %v5057 = vxor.u32 %v5025, 2147483648
      %v5058 = vxor.u32 %v5026, 2147483648
      %v5059 = vxor.u32 %v5027, 2147483648
      %v5060 = vmul.f32 %v5028, 1.442695
      %v5061 = vpow.pop %v5060
      %v5062 = vmul.f32 %v5029, 1.442695
      %v5063 = vpow.pop %v5062
      %v5064 = vmul.f32 %v5030, 1.442695
      %v5065 = vpow.pop %v5064
      %v5066 = vmul.f32 %v5031, 1.442695
      %v5067 = vpow.pop %v5066
      %v5068 = vmul.f32 %v5032, 1.442695
      %v5069 = vpow.pop %v5068
      %v5070 = vmul.f32 %v5033, 1.442695
      %v5071 = vpow.pop %v5070
      %v5072 = vmul.f32 %v5034, 1.442695
      %v5073 = vpow.pop %v5072
      %v5074 = vmul.f32 %v5035, 1.442695
      %v5075 = vpow.pop %v5074
      %v5076 = vmul.f32 %v5036, 1.442695
      %v5077 = vpow.pop %v5076
      %v5078 = vmul.f32 %v5037, 1.442695
      %v5079 = vpow.pop %v5078
      %v5080 = vmul.f32 %v5038, 1.442695
      %v5081 = vpow.pop %v5080
      %v5082 = vmul.f32 %v5039, 1.442695
      %v5083 = vpow.pop %v5082
      %v5084 = vmul.f32 %v5040, 1.442695
      %v5085 = vpow.pop %v5084
      %v5086 = vmul.f32 %v5041, 1.442695
      %v5087 = vpow.pop %v5086
      %v5088 = vmul.f32 %v5042, 1.442695
      %v5089 = vpow.pop %v5088
      %v5090 = vmul.f32 %v5043, 1.442695
      %v5091 = vpow.pop %v5090
      %v5092 = vmul.f32 %v5044, 1.442695
      %v5093 = vpow.pop %v5092
      %v5094 = vmul.f32 %v5045, 1.442695
      %v5095 = vpow.pop %v5094
      %v5096 = vmul.f32 %v5046, 1.442695
      %v5097 = vpow.pop %v5096
      %v5098 = vmul.f32 %v5047, 1.442695
      %v5099 = vpow.pop %v5098
      %v5100 = vmul.f32 %v5048, 1.442695
      %v5101 = vpow.pop %v5100
      %v5102 = vmul.f32 %v5049, 1.442695
      %v5103 = vpow.pop %v5102
      %v5104 = vmul.f32 %v5050, 1.442695
      %v5105 = vpow.pop %v5104
      %v5106 = vmul.f32 %v5051, 1.442695
      %v5107 = vpow.pop %v5106
      %v5108 = vmul.f32 %v5052, 1.442695
      %v5109 = vpow.pop %v5108
      %v5110 = vmul.f32 %v5053, 1.442695
      %v5111 = vpow.pop %v5110
      %v5112 = vmul.f32 %v5054, 1.442695
      %v5113 = vpow.pop %v5112
      %v5114 = vmul.f32 %v5055, 1.442695
      %v5115 = vpow.pop %v5114
      %v5116 = vmul.f32 %v5056, 1.442695
      %v5117 = vpow.pop %v5116
      %v5118 = vmul.f32 %v5057, 1.442695
      %v5119 = vpow.pop %v5118
      %v5120 = vmul.f32 %v5058, 1.442695
      %v5121 = vpow.pop %v5120
      %v5122 = vmul.f32 %v5059, 1.442695
      %v5123 = vpow.pop %v5122
      %v5124 = vadd.f32 %v5061, 1.0
      %v5125 = vadd.f32 %v5063, 1.0
      %v5126 = vadd.f32 %v5065, 1.0
      %v5127 = vadd.f32 %v5067, 1.0
      %v5128 = vadd.f32 %v5069, 1.0
      %v5129 = vadd.f32 %v5071, 1.0
      %v5130 = vadd.f32 %v5073, 1.0
      %v5131 = vadd.f32 %v5075, 1.0
      %v5132 = vadd.f32 %v5077, 1.0
      %v5133 = vadd.f32 %v5079, 1.0
      %v5134 = vadd.f32 %v5081, 1.0
      %v5135 = vadd.f32 %v5083, 1.0
      %v5136 = vadd.f32 %v5085, 1.0
      %v5137 = vadd.f32 %v5087, 1.0
      %v5138 = vadd.f32 %v5089, 1.0
      %v5139 = vadd.f32 %v5091, 1.0
      %v5140 = vadd.f32 %v5093, 1.0
      %v5141 = vadd.f32 %v5095, 1.0
      %v5142 = vadd.f32 %v5097, 1.0
      %v5143 = vadd.f32 %v5099, 1.0
      %v5144 = vadd.f32 %v5101, 1.0
      %v5145 = vadd.f32 %v5103, 1.0
      %v5146 = vadd.f32 %v5105, 1.0
      %v5147 = vadd.f32 %v5107, 1.0
      %v5148 = vadd.f32 %v5109, 1.0
      %v5149 = vadd.f32 %v5111, 1.0
      %v5150 = vadd.f32 %v5113, 1.0
      %v5151 = vadd.f32 %v5115, 1.0
      %v5152 = vadd.f32 %v5117, 1.0
      %v5153 = vadd.f32 %v5119, 1.0
      %v5154 = vadd.f32 %v5121, 1.0
      %v5155 = vadd.f32 %v5123, 1.0
      %v5156 = vrcp.pop %v5124
      %v5157 = vmul.f32 1.0, %v5156
      %v5158 = vrcp.pop %v5125
      %v5159 = vmul.f32 1.0, %v5158
      %v5160 = vrcp.pop %v5126
      %v5161 = vmul.f32 1.0, %v5160
      %v5162 = vrcp.pop %v5127
      %v5163 = vmul.f32 1.0, %v5162
      %v5164 = vrcp.pop %v5128
      %v5165 = vmul.f32 1.0, %v5164
      %v5166 = vrcp.pop %v5129
      %v5167 = vmul.f32 1.0, %v5166
      %v5168 = vrcp.pop %v5130
      %v5169 = vmul.f32 1.0, %v5168
      %v5170 = vrcp.pop %v5131
      %v5171 = vmul.f32 1.0, %v5170
      %v5172 = vrcp.pop %v5132
      %v5173 = vmul.f32 1.0, %v5172
      %v5174 = vrcp.pop %v5133
      %v5175 = vmul.f32 1.0, %v5174
      %v5176 = vrcp.pop %v5134
      %v5177 = vmul.f32 1.0, %v5176
      %v5178 = vrcp.pop %v5135
      %v5179 = vmul.f32 1.0, %v5178
      %v5180 = vrcp.pop %v5136
      %v5181 = vmul.f32 1.0, %v5180
      %v5182 = vrcp.pop %v5137
      %v5183 = vmul.f32 1.0, %v5182
      %v5184 = vrcp.pop %v5138
      %v5185 = vmul.f32 1.0, %v5184
      %v5186 = vrcp.pop %v5139
      %v5187 = vmul.f32 1.0, %v5186
      %v5188 = vrcp.pop %v5140
      %v5189 = vmul.f32 1.0, %v5188
      %v5190 = vrcp.pop %v5141
      %v5191 = vmul.f32 1.0, %v5190
      %v5192 = vrcp.pop %v5142
      %v5193 = vmul.f32 1.0, %v5192
      %v5194 = vrcp.pop %v5143
      %v5195 = vmul.f32 1.0, %v5194
      %v5196 = vrcp.pop %v5144
      %v5197 = vmul.f32 1.0, %v5196
      %v5198 = vrcp.pop %v5145
      %v5199 = vmul.f32 1.0, %v5198
      %v5200 = vrcp.pop %v5146
      %v5201 = vmul.f32 1.0, %v5200
      %v5202 = vrcp.pop %v5147
      %v5203 = vmul.f32 1.0, %v5202
      %v5204 = vrcp.pop %v5148
      %v5205 = vmul.f32 1.0, %v5204
      %v5206 = vrcp.pop %v5149
      %v5207 = vmul.f32 1.0, %v5206
      %v5208 = vrcp.pop %v5150
      %v5209 = vmul.f32 1.0, %v5208
      %v5210 = vrcp.pop %v5151
      %v5211 = vmul.f32 1.0, %v5210
      %v5212 = vrcp.pop %v5152
      %v5213 = vmul.f32 1.0, %v5212
      %v5214 = vrcp.pop %v5153
      %v5215 = vmul.f32 1.0, %v5214
      %v5216 = vrcp.pop %v5154
      %v5217 = vmul.f32 1.0, %v5216
      %v5218 = vrcp.pop %v5155
      %v5219 = vmul.f32 1.0, %v5218
      %v5220 = vtanh.pop %v4996
      %v5221 = vtanh.pop %v4997
      %v5222 = vtanh.pop %v4998
      %v5223 = vtanh.pop %v4999
      %v5224 = vtanh.pop %v5000
      %v5225 = vtanh.pop %v5001
      %v5226 = vtanh.pop %v5002
      %v5227 = vtanh.pop %v5003
      %v5228 = vtanh.pop %v5004
      %v5229 = vtanh.pop %v5005
      %v5230 = vtanh.pop %v5006
      %v5231 = vtanh.pop %v5007
      %v5232 = vtanh.pop %v5008
      %v5233 = vtanh.pop %v5009
      %v5234 = vtanh.pop %v5010
      %v5235 = vtanh.pop %v5011
      %v5236 = vtanh.pop %v5012
      %v5237 = vtanh.pop %v5013
      %v5238 = vtanh.pop %v5014
      %v5239 = vtanh.pop %v5015
      %v5240 = vtanh.pop %v5016
      %v5241 = vtanh.pop %v5017
      %v5242 = vtanh.pop %v5018
      %v5243 = vtanh.pop %v5019
      %v5244 = vtanh.pop %v5020
      %v5245 = vtanh.pop %v5021
      %v5246 = vtanh.pop %v5022
      %v5247 = vtanh.pop %v5023
      %v5248 = vtanh.pop %v5024
      %v5249 = vtanh.pop %v5025
      %v5250 = vtanh.pop %v5026
      %v5251 = vtanh.pop %v5027
      %v5252 = vld [vmem:[%s247] sm:$0xff]
      %v5253 = vld [vmem:[%s247 + $0x8] sm:$0xff]
      %v5254 = vld [vmem:[%s247 + $0x10] sm:$0xff]
      %v5255 = vld [vmem:[%s247 + $0x18] sm:$0xff]
      %v5256 = vld [vmem:[%s247 + $0x20] sm:$0xff]
      %v5257 = vld [vmem:[%s247 + $0x28] sm:$0xff]
      %v5258 = vld [vmem:[%s247 + $0x30] sm:$0xff]
      %v5259 = vld [vmem:[%s247 + $0x38] sm:$0xff]
      %v5260 = vld [vmem:[%s247 + $0x40] sm:$0xff]
      %v5261 = vld [vmem:[%s247 + $0x48] sm:$0xff]
      %v5262 = vld [vmem:[%s247 + $0x50] sm:$0xff]
      %v5263 = vld [vmem:[%s247 + $0x58] sm:$0xff]
      %v5264 = vld [vmem:[%s247 + $0x60] sm:$0xff]
      %v5265 = vld [vmem:[%s247 + $0x68] sm:$0xff]
      %v5266 = vld [vmem:[%s247 + $0x70] sm:$0xff]
      %v5267 = vld [vmem:[%s247 + $0x78] sm:$0xff]
      %v5268 = vld [vmem:[%s247 + $0x80] sm:$0xff]
      %v5269 = vld [vmem:[%s247 + $0x88] sm:$0xff]
      %v5270 = vld [vmem:[%s247 + $0x90] sm:$0xff]
      %v5271 = vld [vmem:[%s247 + $0x98] sm:$0xff]
      %v5272 = vld [vmem:[%s247 + $0xa0] sm:$0xff]
      %v5273 = vld [vmem:[%s247 + $0xa8] sm:$0xff]
      %v5274 = vld [vmem:[%s247 + $0xb0] sm:$0xff]
      %v5275 = vld [vmem:[%s247 + $0xb8] sm:$0xff]
      %v5276 = vld [vmem:[%s247 + $0xc0] sm:$0xff]
      %v5277 = vld [vmem:[%s247 + $0xc8] sm:$0xff]
      %v5278 = vld [vmem:[%s247 + $0xd0] sm:$0xff]
      %v5279 = vld [vmem:[%s247 + $0xd8] sm:$0xff]
      %v5280 = vld [vmem:[%s247 + $0xe0] sm:$0xff]
      %v5281 = vld [vmem:[%s247 + $0xe8] sm:$0xff]
      %v5282 = vld [vmem:[%s247 + $0xf0] sm:$0xff]
      %v5283 = vld [vmem:[%s247 + $0xf8] sm:$0xff]
      %5316 = vrot.lane.b32.xlu0 %v5252, 32
      %v5317 = vpop.permute.xlu0 %5316
      %5318 = vrot.lane.b32.xlu0 %v5253, 32
      %v5319 = vpop.permute.xlu0 %5318
      %5320 = vrot.lane.b32.xlu0 %v5254, 32
      %v5321 = vpop.permute.xlu0 %5320
      %5322 = vrot.lane.b32.xlu0 %v5255, 32
      %v5323 = vpop.permute.xlu0 %5322
      %5324 = vrot.lane.b32.xlu0 %v5256, 32
      %v5325 = vpop.permute.xlu0 %5324
      %5326 = vrot.lane.b32.xlu0 %v5257, 32
      %v5327 = vpop.permute.xlu0 %5326
      %5328 = vrot.lane.b32.xlu0 %v5258, 32
      %v5329 = vpop.permute.xlu0 %5328
      %5330 = vrot.lane.b32.xlu0 %v5259, 32
      %v5331 = vpop.permute.xlu0 %5330
      %5332 = vrot.lane.b32.xlu0 %v5260, 32
      %v5333 = vpop.permute.xlu0 %5332
      %5334 = vrot.lane.b32.xlu0 %v5261, 32
      %v5335 = vpop.permute.xlu0 %5334
      %5336 = vrot.lane.b32.xlu0 %v5262, 32
      %v5337 = vpop.permute.xlu0 %5336
      %5338 = vrot.lane.b32.xlu0 %v5263, 32
      %v5339 = vpop.permute.xlu0 %5338
      %5340 = vrot.lane.b32.xlu0 %v5264, 32
      %v5341 = vpop.permute.xlu0 %5340
      %5342 = vrot.lane.b32.xlu0 %v5265, 32
      %v5343 = vpop.permute.xlu0 %5342
      %5344 = vrot.lane.b32.xlu0 %v5266, 32
      %v5345 = vpop.permute.xlu0 %5344
      %5346 = vrot.lane.b32.xlu0 %v5267, 32
      %v5347 = vpop.permute.xlu0 %5346
      %5348 = vrot.lane.b32.xlu0 %v5268, 32
      %v5349 = vpop.permute.xlu0 %5348
      %5350 = vrot.lane.b32.xlu0 %v5269, 32
      %v5351 = vpop.permute.xlu0 %5350
      %5352 = vrot.lane.b32.xlu0 %v5270, 32
      %v5353 = vpop.permute.xlu0 %5352
      %5354 = vrot.lane.b32.xlu0 %v5271, 32
      %v5355 = vpop.permute.xlu0 %5354
      %5356 = vrot.lane.b32.xlu0 %v5272, 32
      %v5357 = vpop.permute.xlu0 %5356
      %5358 = vrot.lane.b32.xlu0 %v5273, 32
      %v5359 = vpop.permute.xlu0 %5358
      %5360 = vrot.lane.b32.xlu0 %v5274, 32
      %v5361 = vpop.permute.xlu0 %5360
      %5362 = vrot.lane.b32.xlu0 %v5275, 32
      %v5363 = vpop.permute.xlu0 %5362
      %5364 = vrot.lane.b32.xlu0 %v5276, 32
      %v5365 = vpop.permute.xlu0 %5364
      %5366 = vrot.lane.b32.xlu0 %v5277, 32
      %v5367 = vpop.permute.xlu0 %5366
      %5368 = vrot.lane.b32.xlu0 %v5278, 32
      %v5369 = vpop.permute.xlu0 %5368
      %5370 = vrot.lane.b32.xlu0 %v5279, 32
      %v5371 = vpop.permute.xlu0 %5370
      %5372 = vrot.lane.b32.xlu0 %v5280, 32
      %v5373 = vpop.permute.xlu0 %5372
      %5374 = vrot.lane.b32.xlu0 %v5281, 32
      %v5375 = vpop.permute.xlu0 %5374
      %5376 = vrot.lane.b32.xlu0 %v5282, 32
      %v5377 = vpop.permute.xlu0 %5376
      %5378 = vrot.lane.b32.xlu0 %v5283, 32
      %v5379 = vpop.permute.xlu0 %5378
      %v5412 = vmul.f32 %v5157, %v5317
      %v5413 = vmul.f32 %v5159, %v5319
      %v5414 = vmul.f32 %v5161, %v5321
      %v5415 = vmul.f32 %v5163, %v5323
      %v5416 = vmul.f32 %v5165, %v5325
      %v5417 = vmul.f32 %v5167, %v5327
      %v5418 = vmul.f32 %v5169, %v5329
      %v5419 = vmul.f32 %v5171, %v5331
      %v5420 = vmul.f32 %v5173, %v5333
      %v5421 = vmul.f32 %v5175, %v5335
      %v5422 = vmul.f32 %v5177, %v5337
      %v5423 = vmul.f32 %v5179, %v5339
      %v5424 = vmul.f32 %v5181, %v5341
      %v5425 = vmul.f32 %v5183, %v5343
      %v5426 = vmul.f32 %v5185, %v5345
      %v5427 = vmul.f32 %v5187, %v5347
      %v5428 = vmul.f32 %v5189, %v5349
      %v5429 = vmul.f32 %v5191, %v5351
      %v5430 = vmul.f32 %v5193, %v5353
      %v5431 = vmul.f32 %v5195, %v5355
      %v5432 = vmul.f32 %v5197, %v5357
      %v5433 = vmul.f32 %v5199, %v5359
      %v5434 = vmul.f32 %v5201, %v5361
      %v5435 = vmul.f32 %v5203, %v5363
      %v5436 = vmul.f32 %v5205, %v5365
      %v5437 = vmul.f32 %v5207, %v5367
      %v5438 = vmul.f32 %v5209, %v5369
      %v5439 = vmul.f32 %v5211, %v5371
      %v5440 = vmul.f32 %v5213, %v5373
      %v5441 = vmul.f32 %v5215, %v5375
      %v5442 = vmul.f32 %v5217, %v5377
      %v5443 = vmul.f32 %v5219, %v5379
      %5476 = vrot.lane.b32.xlu0 %v5220, 32
      %v5477 = vpop.permute.xlu0 %5476
      %5478 = vrot.lane.b32.xlu0 %v5221, 32
      %v5479 = vpop.permute.xlu0 %5478
      %5480 = vrot.lane.b32.xlu0 %v5222, 32
      %v5481 = vpop.permute.xlu0 %5480
      %5482 = vrot.lane.b32.xlu0 %v5223, 32
      %v5483 = vpop.permute.xlu0 %5482
      %5484 = vrot.lane.b32.xlu0 %v5224, 32
      %v5485 = vpop.permute.xlu0 %5484
      %5486 = vrot.lane.b32.xlu0 %v5225, 32
      %v5487 = vpop.permute.xlu0 %5486
      %5488 = vrot.lane.b32.xlu0 %v5226, 32
      %v5489 = vpop.permute.xlu0 %5488
      %5490 = vrot.lane.b32.xlu0 %v5227, 32
      %v5491 = vpop.permute.xlu0 %5490
      %5492 = vrot.lane.b32.xlu0 %v5228, 32
      %v5493 = vpop.permute.xlu0 %5492
      %5494 = vrot.lane.b32.xlu0 %v5229, 32
      %v5495 = vpop.permute.xlu0 %5494
      %5496 = vrot.lane.b32.xlu0 %v5230, 32
      %v5497 = vpop.permute.xlu0 %5496
      %5498 = vrot.lane.b32.xlu0 %v5231, 32
      %v5499 = vpop.permute.xlu0 %5498
      %5500 = vrot.lane.b32.xlu0 %v5232, 32
      %v5501 = vpop.permute.xlu0 %5500
      %5502 = vrot.lane.b32.xlu0 %v5233, 32
      %v5503 = vpop.permute.xlu0 %5502
      %5504 = vrot.lane.b32.xlu0 %v5234, 32
      %v5505 = vpop.permute.xlu0 %5504
      %5506 = vrot.lane.b32.xlu0 %v5235, 32
      %v5507 = vpop.permute.xlu0 %5506
      %5508 = vrot.lane.b32.xlu0 %v5236, 32
      %v5509 = vpop.permute.xlu0 %5508
      %5510 = vrot.lane.b32.xlu0 %v5237, 32
      %v5511 = vpop.permute.xlu0 %5510
      %5512 = vrot.lane.b32.xlu0 %v5238, 32
      %v5513 = vpop.permute.xlu0 %5512
      %5514 = vrot.lane.b32.xlu0 %v5239, 32
      %v5515 = vpop.permute.xlu0 %5514
      %5516 = vrot.lane.b32.xlu0 %v5240, 32
      %v5517 = vpop.permute.xlu0 %5516
      %5518 = vrot.lane.b32.xlu0 %v5241, 32
      %v5519 = vpop.permute.xlu0 %5518
      %5520 = vrot.lane.b32.xlu0 %v5242, 32
      %v5521 = vpop.permute.xlu0 %5520
      %5522 = vrot.lane.b32.xlu0 %v5243, 32
      %v5523 = vpop.permute.xlu0 %5522
      %5524 = vrot.lane.b32.xlu0 %v5244, 32
      %v5525 = vpop.permute.xlu0 %5524
      %5526 = vrot.lane.b32.xlu0 %v5245, 32
      %v5527 = vpop.permute.xlu0 %5526
      %5528 = vrot.lane.b32.xlu0 %v5246, 32
      %v5529 = vpop.permute.xlu0 %5528
      %5530 = vrot.lane.b32.xlu0 %v5247, 32
      %v5531 = vpop.permute.xlu0 %5530
      %5532 = vrot.lane.b32.xlu0 %v5248, 32
      %v5533 = vpop.permute.xlu0 %5532
      %5534 = vrot.lane.b32.xlu0 %v5249, 32
      %v5535 = vpop.permute.xlu0 %5534
      %5536 = vrot.lane.b32.xlu0 %v5250, 32
      %v5537 = vpop.permute.xlu0 %5536
      %5538 = vrot.lane.b32.xlu0 %v5251, 32
      %v5539 = vpop.permute.xlu0 %5538
      %v5572 = vmul.f32 %v5157, %v5477
      %v5573 = vmul.f32 %v5159, %v5479
      %v5574 = vmul.f32 %v5161, %v5481
      %v5575 = vmul.f32 %v5163, %v5483
      %v5576 = vmul.f32 %v5165, %v5485
      %v5577 = vmul.f32 %v5167, %v5487
      %v5578 = vmul.f32 %v5169, %v5489
      %v5579 = vmul.f32 %v5171, %v5491
      %v5580 = vmul.f32 %v5173, %v5493
      %v5581 = vmul.f32 %v5175, %v5495
      %v5582 = vmul.f32 %v5177, %v5497
      %v5583 = vmul.f32 %v5179, %v5499
      %v5584 = vmul.f32 %v5181, %v5501
      %v5585 = vmul.f32 %v5183, %v5503
      %v5586 = vmul.f32 %v5185, %v5505
      %v5587 = vmul.f32 %v5187, %v5507
      %v5588 = vmul.f32 %v5189, %v5509
      %v5589 = vmul.f32 %v5191, %v5511
      %v5590 = vmul.f32 %v5193, %v5513
      %v5591 = vmul.f32 %v5195, %v5515
      %v5592 = vmul.f32 %v5197, %v5517
      %v5593 = vmul.f32 %v5199, %v5519
      %v5594 = vmul.f32 %v5201, %v5521
      %v5595 = vmul.f32 %v5203, %v5523
      %v5596 = vmul.f32 %v5205, %v5525
      %v5597 = vmul.f32 %v5207, %v5527
      %v5598 = vmul.f32 %v5209, %v5529
      %v5599 = vmul.f32 %v5211, %v5531
      %v5600 = vmul.f32 %v5213, %v5533
      %v5601 = vmul.f32 %v5215, %v5535
      %v5602 = vmul.f32 %v5217, %v5537
      %v5603 = vmul.f32 %v5219, %v5539
      %5636 = vrot.lane.b32.xlu0 %v5572, 32
      %v5637 = vpop.permute.xlu0 %5636
      %5638 = vrot.lane.b32.xlu0 %v5573, 32
      %v5639 = vpop.permute.xlu0 %5638
      %5640 = vrot.lane.b32.xlu0 %v5574, 32
      %v5641 = vpop.permute.xlu0 %5640
      %5642 = vrot.lane.b32.xlu0 %v5575, 32
      %v5643 = vpop.permute.xlu0 %5642
      %5644 = vrot.lane.b32.xlu0 %v5576, 32
      %v5645 = vpop.permute.xlu0 %5644
      %5646 = vrot.lane.b32.xlu0 %v5577, 32
      %v5647 = vpop.permute.xlu0 %5646
      %5648 = vrot.lane.b32.xlu0 %v5578, 32
      %v5649 = vpop.permute.xlu0 %5648
      %5650 = vrot.lane.b32.xlu0 %v5579, 32
      %v5651 = vpop.permute.xlu0 %5650
      %5652 = vrot.lane.b32.xlu0 %v5580, 32
      %v5653 = vpop.permute.xlu0 %5652
      %5654 = vrot.lane.b32.xlu0 %v5581, 32
      %v5655 = vpop.permute.xlu0 %5654
      %5656 = vrot.lane.b32.xlu0 %v5582, 32
      %v5657 = vpop.permute.xlu0 %5656
      %5658 = vrot.lane.b32.xlu0 %v5583, 32
      %v5659 = vpop.permute.xlu0 %5658
      %5660 = vrot.lane.b32.xlu0 %v5584, 32
      %v5661 = vpop.permute.xlu0 %5660
      %5662 = vrot.lane.b32.xlu0 %v5585, 32
      %v5663 = vpop.permute.xlu0 %5662
      %5664 = vrot.lane.b32.xlu0 %v5586, 32
      %v5665 = vpop.permute.xlu0 %5664
      %5666 = vrot.lane.b32.xlu0 %v5587, 32
      %v5667 = vpop.permute.xlu0 %5666
      %5668 = vrot.lane.b32.xlu0 %v5588, 32
      %v5669 = vpop.permute.xlu0 %5668
      %5670 = vrot.lane.b32.xlu0 %v5589, 32
      %v5671 = vpop.permute.xlu0 %5670
      %5672 = vrot.lane.b32.xlu0 %v5590, 32
      %v5673 = vpop.permute.xlu0 %5672
      %5674 = vrot.lane.b32.xlu0 %v5591, 32
      %v5675 = vpop.permute.xlu0 %5674
      %5676 = vrot.lane.b32.xlu0 %v5592, 32
      %v5677 = vpop.permute.xlu0 %5676
      %5678 = vrot.lane.b32.xlu0 %v5593, 32
      %v5679 = vpop.permute.xlu0 %5678
      %5680 = vrot.lane.b32.xlu0 %v5594, 32
      %v5681 = vpop.permute.xlu0 %5680
      %5682 = vrot.lane.b32.xlu0 %v5595, 32
      %v5683 = vpop.permute.xlu0 %5682
      %5684 = vrot.lane.b32.xlu0 %v5596, 32
      %v5685 = vpop.permute.xlu0 %5684
      %5686 = vrot.lane.b32.xlu0 %v5597, 32
      %v5687 = vpop.permute.xlu0 %5686
      %5688 = vrot.lane.b32.xlu0 %v5598, 32
      %v5689 = vpop.permute.xlu0 %5688
      %5690 = vrot.lane.b32.xlu0 %v5599, 32
      %v5691 = vpop.permute.xlu0 %5690
      %5692 = vrot.lane.b32.xlu0 %v5600, 32
      %v5693 = vpop.permute.xlu0 %5692
      %5694 = vrot.lane.b32.xlu0 %v5601, 32
      %v5695 = vpop.permute.xlu0 %5694
      %5696 = vrot.lane.b32.xlu0 %v5602, 32
      %v5697 = vpop.permute.xlu0 %5696
      %5698 = vrot.lane.b32.xlu0 %v5603, 32
      %v5699 = vpop.permute.xlu0 %5698
      %v5732 = vadd.f32 %v5412, %v5637
      %v5733 = vadd.f32 %v5413, %v5639
      %v5734 = vadd.f32 %v5414, %v5641
      %v5735 = vadd.f32 %v5415, %v5643
      %v5736 = vadd.f32 %v5416, %v5645
      %v5737 = vadd.f32 %v5417, %v5647
      %v5738 = vadd.f32 %v5418, %v5649
      %v5739 = vadd.f32 %v5419, %v5651
      %v5740 = vadd.f32 %v5420, %v5653
      %v5741 = vadd.f32 %v5421, %v5655
      %v5742 = vadd.f32 %v5422, %v5657
      %v5743 = vadd.f32 %v5423, %v5659
      %v5744 = vadd.f32 %v5424, %v5661
      %v5745 = vadd.f32 %v5425, %v5663
      %v5746 = vadd.f32 %v5426, %v5665
      %v5747 = vadd.f32 %v5427, %v5667
      %v5748 = vadd.f32 %v5428, %v5669
      %v5749 = vadd.f32 %v5429, %v5671
      %v5750 = vadd.f32 %v5430, %v5673
      %v5751 = vadd.f32 %v5431, %v5675
      %v5752 = vadd.f32 %v5432, %v5677
      %v5753 = vadd.f32 %v5433, %v5679
      %v5754 = vadd.f32 %v5434, %v5681
      %v5755 = vadd.f32 %v5435, %v5683
      %v5756 = vadd.f32 %v5436, %v5685
      %v5757 = vadd.f32 %v5437, %v5687
      %v5758 = vadd.f32 %v5438, %v5689
      %v5759 = vadd.f32 %v5439, %v5691
      %v5760 = vadd.f32 %v5440, %v5693
      %v5761 = vadd.f32 %v5441, %v5695
      %v5762 = vadd.f32 %v5442, %v5697
      %v5763 = vadd.f32 %v5443, %v5699
      %v5764 = vtanh.pop %v5732
      %v5765 = vtanh.pop %v5733
      %v5766 = vtanh.pop %v5734
      %v5767 = vtanh.pop %v5735
      %v5768 = vtanh.pop %v5736
      %v5769 = vtanh.pop %v5737
      %v5770 = vtanh.pop %v5738
      %v5771 = vtanh.pop %v5739
      %v5772 = vtanh.pop %v5740
      %v5773 = vtanh.pop %v5741
      %v5774 = vtanh.pop %v5742
      %v5775 = vtanh.pop %v5743
      %v5776 = vtanh.pop %v5744
      %v5777 = vtanh.pop %v5745
      %v5778 = vtanh.pop %v5746
      %v5779 = vtanh.pop %v5747
      %v5780 = vtanh.pop %v5748
      %v5781 = vtanh.pop %v5749
      %v5782 = vtanh.pop %v5750
      %v5783 = vtanh.pop %v5751
      %v5784 = vtanh.pop %v5752
      %v5785 = vtanh.pop %v5753
      %v5786 = vtanh.pop %v5754
      %v5787 = vtanh.pop %v5755
      %v5788 = vtanh.pop %v5756
      %v5789 = vtanh.pop %v5757
      %v5790 = vtanh.pop %v5758
      %v5791 = vtanh.pop %v5759
      %v5792 = vtanh.pop %v5760
      %v5793 = vtanh.pop %v5761
      %v5794 = vtanh.pop %v5762
      %v5795 = vtanh.pop %v5763
      %5828 = vrot.lane.b32.xlu0 %v5764, 32
      %v5829 = vpop.permute.xlu0 %5828
      %5830 = vrot.lane.b32.xlu0 %v5765, 32
      %v5831 = vpop.permute.xlu0 %5830
      %5832 = vrot.lane.b32.xlu0 %v5766, 32
      %v5833 = vpop.permute.xlu0 %5832
      %5834 = vrot.lane.b32.xlu0 %v5767, 32
      %v5835 = vpop.permute.xlu0 %5834
      %5836 = vrot.lane.b32.xlu0 %v5768, 32
      %v5837 = vpop.permute.xlu0 %5836
      %5838 = vrot.lane.b32.xlu0 %v5769, 32
      %v5839 = vpop.permute.xlu0 %5838
      %5840 = vrot.lane.b32.xlu0 %v5770, 32
      %v5841 = vpop.permute.xlu0 %5840
      %5842 = vrot.lane.b32.xlu0 %v5771, 32
      %v5843 = vpop.permute.xlu0 %5842
      %5844 = vrot.lane.b32.xlu0 %v5772, 32
      %v5845 = vpop.permute.xlu0 %5844
      %5846 = vrot.lane.b32.xlu0 %v5773, 32
      %v5847 = vpop.permute.xlu0 %5846
      %5848 = vrot.lane.b32.xlu0 %v5774, 32
      %v5849 = vpop.permute.xlu0 %5848
      %5850 = vrot.lane.b32.xlu0 %v5775, 32
      %v5851 = vpop.permute.xlu0 %5850
      %5852 = vrot.lane.b32.xlu0 %v5776, 32
      %v5853 = vpop.permute.xlu0 %5852
      %5854 = vrot.lane.b32.xlu0 %v5777, 32
      %v5855 = vpop.permute.xlu0 %5854
      %5856 = vrot.lane.b32.xlu0 %v5778, 32
      %v5857 = vpop.permute.xlu0 %5856
      %5858 = vrot.lane.b32.xlu0 %v5779, 32
      %v5859 = vpop.permute.xlu0 %5858
      %5860 = vrot.lane.b32.xlu0 %v5780, 32
      %v5861 = vpop.permute.xlu0 %5860
      %5862 = vrot.lane.b32.xlu0 %v5781, 32
      %v5863 = vpop.permute.xlu0 %5862
      %5864 = vrot.lane.b32.xlu0 %v5782, 32
      %v5865 = vpop.permute.xlu0 %5864
      %5866 = vrot.lane.b32.xlu0 %v5783, 32
      %v5867 = vpop.permute.xlu0 %5866
      %5868 = vrot.lane.b32.xlu0 %v5784, 32
      %v5869 = vpop.permute.xlu0 %5868
      %5870 = vrot.lane.b32.xlu0 %v5785, 32
      %v5871 = vpop.permute.xlu0 %5870
      %5872 = vrot.lane.b32.xlu0 %v5786, 32
      %v5873 = vpop.permute.xlu0 %5872
      %5874 = vrot.lane.b32.xlu0 %v5787, 32
      %v5875 = vpop.permute.xlu0 %5874
      %5876 = vrot.lane.b32.xlu0 %v5788, 32
      %v5877 = vpop.permute.xlu0 %5876
      %5878 = vrot.lane.b32.xlu0 %v5789, 32
      %v5879 = vpop.permute.xlu0 %5878
      %5880 = vrot.lane.b32.xlu0 %v5790, 32
      %v5881 = vpop.permute.xlu0 %5880
      %5882 = vrot.lane.b32.xlu0 %v5791, 32
      %v5883 = vpop.permute.xlu0 %5882
      %5884 = vrot.lane.b32.xlu0 %v5792, 32
      %v5885 = vpop.permute.xlu0 %5884
      %5886 = vrot.lane.b32.xlu0 %v5793, 32
      %v5887 = vpop.permute.xlu0 %5886
      %5888 = vrot.lane.b32.xlu0 %v5794, 32
      %v5889 = vpop.permute.xlu0 %5888
      %5890 = vrot.lane.b32.xlu0 %v5795, 32
      %v5891 = vpop.permute.xlu0 %5890
      %v5924 = vmul.f32 %v5157, %v5829
      %v5925 = vmul.f32 %v5159, %v5831
      %v5926 = vmul.f32 %v5161, %v5833
      %v5927 = vmul.f32 %v5163, %v5835
      %v5928 = vmul.f32 %v5165, %v5837
      %v5929 = vmul.f32 %v5167, %v5839
      %v5930 = vmul.f32 %v5169, %v5841
      %v5931 = vmul.f32 %v5171, %v5843
      %v5932 = vmul.f32 %v5173, %v5845
      %v5933 = vmul.f32 %v5175, %v5847
      %v5934 = vmul.f32 %v5177, %v5849
      %v5935 = vmul.f32 %v5179, %v5851
      %v5936 = vmul.f32 %v5181, %v5853
      %v5937 = vmul.f32 %v5183, %v5855
      %v5938 = vmul.f32 %v5185, %v5857
      %v5939 = vmul.f32 %v5187, %v5859
      %v5940 = vmul.f32 %v5189, %v5861
      %v5941 = vmul.f32 %v5191, %v5863
      %v5942 = vmul.f32 %v5193, %v5865
      %v5943 = vmul.f32 %v5195, %v5867
      %v5944 = vmul.f32 %v5197, %v5869
      %v5945 = vmul.f32 %v5199, %v5871
      %v5946 = vmul.f32 %v5201, %v5873
      %v5947 = vmul.f32 %v5203, %v5875
      %v5948 = vmul.f32 %v5205, %v5877
      %v5949 = vmul.f32 %v5207, %v5879
      %v5950 = vmul.f32 %v5209, %v5881
      %v5951 = vmul.f32 %v5211, %v5883
      %v5952 = vmul.f32 %v5213, %v5885
      %v5953 = vmul.f32 %v5215, %v5887
      %v5954 = vmul.f32 %v5217, %v5889
      %v5955 = vmul.f32 %v5219, %v5891
      %v5956 = vpack.c.bf16 %v5925, %v5924
      %v5957 = vpack.c.bf16 %v5927, %v5926
      %v5958 = vpack.c.bf16 %v5929, %v5928
      %v5959 = vpack.c.bf16 %v5931, %v5930
      %v5960 = vpack.c.bf16 %v5933, %v5932
      %v5961 = vpack.c.bf16 %v5935, %v5934
      %v5962 = vpack.c.bf16 %v5937, %v5936
      %v5963 = vpack.c.bf16 %v5939, %v5938
      %v5964 = vpack.c.bf16 %v5941, %v5940
      %v5965 = vpack.c.bf16 %v5943, %v5942
      %v5966 = vpack.c.bf16 %v5945, %v5944
      %v5967 = vpack.c.bf16 %v5947, %v5946
      %v5968 = vpack.c.bf16 %v5949, %v5948
      %v5969 = vpack.c.bf16 %v5951, %v5950
      %v5970 = vpack.c.bf16 %v5953, %v5952
      %v5971 = vpack.c.bf16 %v5955, %v5954
      %v5988 = vunpack.c.l.b16 %v5956
      %v5989 = vunpack.c.h.b16 %v5956
      %v5990 = vunpack.c.l.b16 %v5957
      %v5991 = vunpack.c.h.b16 %v5957
      %v5992 = vunpack.c.l.b16 %v5958
      %v5993 = vunpack.c.h.b16 %v5958
      %v5994 = vunpack.c.l.b16 %v5959
      %v5995 = vunpack.c.h.b16 %v5959
      %v5996 = vunpack.c.l.b16 %v5960
      %v5997 = vunpack.c.h.b16 %v5960
      %v5998 = vunpack.c.l.b16 %v5961
      %v5999 = vunpack.c.h.b16 %v5961
      %v6000 = vunpack.c.l.b16 %v5962
      %v6001 = vunpack.c.h.b16 %v5962
      %v6002 = vunpack.c.l.b16 %v5963
      %v6003 = vunpack.c.h.b16 %v5963
      %v6004 = vunpack.c.l.b16 %v5964
      %v6005 = vunpack.c.h.b16 %v5964
      %v6006 = vunpack.c.l.b16 %v5965
      %v6007 = vunpack.c.h.b16 %v5965
      %v6008 = vunpack.c.l.b16 %v5966
      %v6009 = vunpack.c.h.b16 %v5966
      %v6010 = vunpack.c.l.b16 %v5967
      %v6011 = vunpack.c.h.b16 %v5967
      %v6012 = vunpack.c.l.b16 %v5968
      %v6013 = vunpack.c.h.b16 %v5968
      %v6014 = vunpack.c.l.b16 %v5969
      %v6015 = vunpack.c.h.b16 %v5969
      %v6016 = vunpack.c.l.b16 %v5970
      %v6017 = vunpack.c.h.b16 %v5970
      %v6018 = vunpack.c.l.b16 %v5971
      %v6019 = vunpack.c.h.b16 %v5971
      %v6020 = vpack.c.b16 %v5988, %v5988
      %v6021 = vpack.c.b16 %v5989, %v5989
      %v6022 = vpack.c.b16 %v5990, %v5990
      %v6023 = vpack.c.b16 %v5991, %v5991
      %v6024 = vpack.c.b16 %v5992, %v5992
      %v6025 = vpack.c.b16 %v5993, %v5993
      %v6026 = vpack.c.b16 %v5994, %v5994
      %v6027 = vpack.c.b16 %v5995, %v5995
      %v6028 = vpack.c.b16 %v5996, %v5996
      %v6029 = vpack.c.b16 %v5997, %v5997
      %v6030 = vpack.c.b16 %v5998, %v5998
      %v6031 = vpack.c.b16 %v5999, %v5999
      %v6032 = vpack.c.b16 %v6000, %v6000
      %v6033 = vpack.c.b16 %v6001, %v6001
      %v6034 = vpack.c.b16 %v6002, %v6002
      %v6035 = vpack.c.b16 %v6003, %v6003
      %v6036 = vpack.c.b16 %v6004, %v6004
      %v6037 = vpack.c.b16 %v6005, %v6005
      %v6038 = vpack.c.b16 %v6006, %v6006
      %v6039 = vpack.c.b16 %v6007, %v6007
      %v6040 = vpack.c.b16 %v6008, %v6008
      %v6041 = vpack.c.b16 %v6009, %v6009
      %v6042 = vpack.c.b16 %v6010, %v6010
      %v6043 = vpack.c.b16 %v6011, %v6011
      %v6044 = vpack.c.b16 %v6012, %v6012
      %v6045 = vpack.c.b16 %v6013, %v6013
      %v6046 = vpack.c.b16 %v6014, %v6014
      %v6047 = vpack.c.b16 %v6015, %v6015
      %v6048 = vpack.c.b16 %v6016, %v6016
      %v6049 = vpack.c.b16 %v6017, %v6017
      %v6050 = vpack.c.b16 %v6018, %v6018
      %v6051 = vpack.c.b16 %v6019, %v6019
      %6052 = vrot.lane.b32.xlu0 %v6020, 64
      %v6053 = vpop.permute.xlu0 %6052
      %6054 = vrot.lane.b32.xlu0 %v6021, 64
      %v6055 = vpop.permute.xlu0 %6054
      %6056 = vrot.lane.b32.xlu0 %v6022, 64
      %v6057 = vpop.permute.xlu0 %6056
      %6058 = vrot.lane.b32.xlu0 %v6023, 64
      %v6059 = vpop.permute.xlu0 %6058
      %6060 = vrot.lane.b32.xlu0 %v6024, 64
      %v6061 = vpop.permute.xlu0 %6060
      %6062 = vrot.lane.b32.xlu0 %v6025, 64
      %v6063 = vpop.permute.xlu0 %6062
      %6064 = vrot.lane.b32.xlu0 %v6026, 64
      %v6065 = vpop.permute.xlu0 %6064
      %6066 = vrot.lane.b32.xlu0 %v6027, 64
      %v6067 = vpop.permute.xlu0 %6066
      %6068 = vrot.lane.b32.xlu0 %v6028, 64
      %v6069 = vpop.permute.xlu0 %6068
      %6070 = vrot.lane.b32.xlu0 %v6029, 64
      %v6071 = vpop.permute.xlu0 %6070
      %6072 = vrot.lane.b32.xlu0 %v6030, 64
      %v6073 = vpop.permute.xlu0 %6072
      %6074 = vrot.lane.b32.xlu0 %v6031, 64
      %v6075 = vpop.permute.xlu0 %6074
      %6076 = vrot.lane.b32.xlu0 %v6032, 64
      %v6077 = vpop.permute.xlu0 %6076
      %6078 = vrot.lane.b32.xlu0 %v6033, 64
      %v6079 = vpop.permute.xlu0 %6078
      %6080 = vrot.lane.b32.xlu0 %v6034, 64
      %v6081 = vpop.permute.xlu0 %6080
      %6082 = vrot.lane.b32.xlu0 %v6035, 64
      %v6083 = vpop.permute.xlu0 %6082
      %6084 = vrot.lane.b32.xlu0 %v6036, 64
      %v6085 = vpop.permute.xlu0 %6084
      %6086 = vrot.lane.b32.xlu0 %v6037, 64
      %v6087 = vpop.permute.xlu0 %6086
      %6088 = vrot.lane.b32.xlu0 %v6038, 64
      %v6089 = vpop.permute.xlu0 %6088
      %6090 = vrot.lane.b32.xlu0 %v6039, 64
      %v6091 = vpop.permute.xlu0 %6090
      %6092 = vrot.lane.b32.xlu0 %v6040, 64
      %v6093 = vpop.permute.xlu0 %6092
      %6094 = vrot.lane.b32.xlu0 %v6041, 64
      %v6095 = vpop.permute.xlu0 %6094
      %6096 = vrot.lane.b32.xlu0 %v6042, 64
      %v6097 = vpop.permute.xlu0 %6096
      %6098 = vrot.lane.b32.xlu0 %v6043, 64
      %v6099 = vpop.permute.xlu0 %6098
      %6100 = vrot.lane.b32.xlu0 %v6044, 64
      %v6101 = vpop.permute.xlu0 %6100
      %6102 = vrot.lane.b32.xlu0 %v6045, 64
      %v6103 = vpop.permute.xlu0 %6102
      %6104 = vrot.lane.b32.xlu0 %v6046, 64
      %v6105 = vpop.permute.xlu0 %6104
      %6106 = vrot.lane.b32.xlu0 %v6047, 64
      %v6107 = vpop.permute.xlu0 %6106
      %6108 = vrot.lane.b32.xlu0 %v6048, 64
      %v6109 = vpop.permute.xlu0 %6108
      %6110 = vrot.lane.b32.xlu0 %v6049, 64
      %v6111 = vpop.permute.xlu0 %6110
      %6112 = vrot.lane.b32.xlu0 %v6050, 64
      %v6113 = vpop.permute.xlu0 %6112
      %6114 = vrot.lane.b32.xlu0 %v6051, 64
      %v6115 = vpop.permute.xlu0 %6114
      %vm6148 = vcmask 257024
      %6149 = vst.msk [vmem:[%s252] sm:$0xf] %vm6148, %v6053
      %6150 = vst.msk [vmem:[%s252 + $0x4] sm:$0xf] %vm6148, %v6055
      %6151 = vst.msk [vmem:[%s252 + $0x8] sm:$0xf] %vm6148, %v6057
      %6152 = vst.msk [vmem:[%s252 + $0xc] sm:$0xf] %vm6148, %v6059
      %6153 = vst.msk [vmem:[%s252 + $0x10] sm:$0xf] %vm6148, %v6061
      %6154 = vst.msk [vmem:[%s252 + $0x14] sm:$0xf] %vm6148, %v6063
      %6155 = vst.msk [vmem:[%s252 + $0x18] sm:$0xf] %vm6148, %v6065
      %6156 = vst.msk [vmem:[%s252 + $0x1c] sm:$0xf] %vm6148, %v6067
      %6157 = vst.msk [vmem:[%s252 + $0x20] sm:$0xf] %vm6148, %v6069
      %6158 = vst.msk [vmem:[%s252 + $0x24] sm:$0xf] %vm6148, %v6071
      %6159 = vst.msk [vmem:[%s252 + $0x28] sm:$0xf] %vm6148, %v6073
      %6160 = vst.msk [vmem:[%s252 + $0x2c] sm:$0xf] %vm6148, %v6075
      %6161 = vst.msk [vmem:[%s252 + $0x30] sm:$0xf] %vm6148, %v6077
      %6162 = vst.msk [vmem:[%s252 + $0x34] sm:$0xf] %vm6148, %v6079
      %6163 = vst.msk [vmem:[%s252 + $0x38] sm:$0xf] %vm6148, %v6081
      %6164 = vst.msk [vmem:[%s252 + $0x3c] sm:$0xf] %vm6148, %v6083
      %6165 = vst.msk [vmem:[%s252 + $0x40] sm:$0xf] %vm6148, %v6085
      %6166 = vst.msk [vmem:[%s252 + $0x44] sm:$0xf] %vm6148, %v6087
      %6167 = vst.msk [vmem:[%s252 + $0x48] sm:$0xf] %vm6148, %v6089
      %6168 = vst.msk [vmem:[%s252 + $0x4c] sm:$0xf] %vm6148, %v6091
      %6169 = vst.msk [vmem:[%s252 + $0x50] sm:$0xf] %vm6148, %v6093
      %6170 = vst.msk [vmem:[%s252 + $0x54] sm:$0xf] %vm6148, %v6095
      %6171 = vst.msk [vmem:[%s252 + $0x58] sm:$0xf] %vm6148, %v6097
      %6172 = vst.msk [vmem:[%s252 + $0x5c] sm:$0xf] %vm6148, %v6099
      %6173 = vst.msk [vmem:[%s252 + $0x60] sm:$0xf] %vm6148, %v6101
      %6174 = vst.msk [vmem:[%s252 + $0x64] sm:$0xf] %vm6148, %v6103
      %6175 = vst.msk [vmem:[%s252 + $0x68] sm:$0xf] %vm6148, %v6105
      %6176 = vst.msk [vmem:[%s252 + $0x6c] sm:$0xf] %vm6148, %v6107
      %6177 = vst.msk [vmem:[%s252 + $0x70] sm:$0xf] %vm6148, %v6109
      %6178 = vst.msk [vmem:[%s252 + $0x74] sm:$0xf] %vm6148, %v6111
      %6179 = vst.msk [vmem:[%s252 + $0x78] sm:$0xf] %vm6148, %v6113
      %6180 = vst.msk [vmem:[%s252 + $0x7c] sm:$0xf] %vm6148, %v6115
      %6213 = vrot.lane.b32.xlu0 %v5732, 96
      %v6214 = vpop.permute.xlu0 %6213
      %6215 = vrot.lane.b32.xlu0 %v5733, 96
      %v6216 = vpop.permute.xlu0 %6215
      %6217 = vrot.lane.b32.xlu0 %v5734, 96
      %v6218 = vpop.permute.xlu0 %6217
      %6219 = vrot.lane.b32.xlu0 %v5735, 96
      %v6220 = vpop.permute.xlu0 %6219
      %6221 = vrot.lane.b32.xlu0 %v5736, 96
      %v6222 = vpop.permute.xlu0 %6221
      %6223 = vrot.lane.b32.xlu0 %v5737, 96
      %v6224 = vpop.permute.xlu0 %6223
      %6225 = vrot.lane.b32.xlu0 %v5738, 96
      %v6226 = vpop.permute.xlu0 %6225
      %6227 = vrot.lane.b32.xlu0 %v5739, 96
      %v6228 = vpop.permute.xlu0 %6227
      %6229 = vrot.lane.b32.xlu0 %v5740, 96
      %v6230 = vpop.permute.xlu0 %6229
      %6231 = vrot.lane.b32.xlu0 %v5741, 96
      %v6232 = vpop.permute.xlu0 %6231
      %6233 = vrot.lane.b32.xlu0 %v5742, 96
      %v6234 = vpop.permute.xlu0 %6233
      %6235 = vrot.lane.b32.xlu0 %v5743, 96
      %v6236 = vpop.permute.xlu0 %6235
      %6237 = vrot.lane.b32.xlu0 %v5744, 96
      %v6238 = vpop.permute.xlu0 %6237
      %6239 = vrot.lane.b32.xlu0 %v5745, 96
      %v6240 = vpop.permute.xlu0 %6239
      %6241 = vrot.lane.b32.xlu0 %v5746, 96
      %v6242 = vpop.permute.xlu0 %6241
      %6243 = vrot.lane.b32.xlu0 %v5747, 96
      %v6244 = vpop.permute.xlu0 %6243
      %6245 = vrot.lane.b32.xlu0 %v5748, 96
      %v6246 = vpop.permute.xlu0 %6245
      %6247 = vrot.lane.b32.xlu0 %v5749, 96
      %v6248 = vpop.permute.xlu0 %6247
      %6249 = vrot.lane.b32.xlu0 %v5750, 96
      %v6250 = vpop.permute.xlu0 %6249
      %6251 = vrot.lane.b32.xlu0 %v5751, 96
      %v6252 = vpop.permute.xlu0 %6251
      %6253 = vrot.lane.b32.xlu0 %v5752, 96
      %v6254 = vpop.permute.xlu0 %6253
      %6255 = vrot.lane.b32.xlu0 %v5753, 96
      %v6256 = vpop.permute.xlu0 %6255
      %6257 = vrot.lane.b32.xlu0 %v5754, 96
      %v6258 = vpop.permute.xlu0 %6257
      %6259 = vrot.lane.b32.xlu0 %v5755, 96
      %v6260 = vpop.permute.xlu0 %6259
      %6261 = vrot.lane.b32.xlu0 %v5756, 96
      %v6262 = vpop.permute.xlu0 %6261
      %6263 = vrot.lane.b32.xlu0 %v5757, 96
      %v6264 = vpop.permute.xlu0 %6263
      %6265 = vrot.lane.b32.xlu0 %v5758, 96
      %v6266 = vpop.permute.xlu0 %6265
      %6267 = vrot.lane.b32.xlu0 %v5759, 96
      %v6268 = vpop.permute.xlu0 %6267
      %6269 = vrot.lane.b32.xlu0 %v5760, 96
      %v6270 = vpop.permute.xlu0 %6269
      %6271 = vrot.lane.b32.xlu0 %v5761, 96
      %v6272 = vpop.permute.xlu0 %6271
      %6273 = vrot.lane.b32.xlu0 %v5762, 96
      %v6274 = vpop.permute.xlu0 %6273
      %6275 = vrot.lane.b32.xlu0 %v5763, 96
      %v6276 = vpop.permute.xlu0 %6275
      %vm6309 = vcmask 261120
      %6310 = vst.msk [vmem:[%s257] sm:$0xff] %vm6309, %v6214
      %6311 = vst.msk [vmem:[%s257 + $0x8] sm:$0xff] %vm6309, %v6216
      %6312 = vst.msk [vmem:[%s257 + $0x10] sm:$0xff] %vm6309, %v6218
      %6313 = vst.msk [vmem:[%s257 + $0x18] sm:$0xff] %vm6309, %v6220
      %6314 = vst.msk [vmem:[%s257 + $0x20] sm:$0xff] %vm6309, %v6222
      %6315 = vst.msk [vmem:[%s257 + $0x28] sm:$0xff] %vm6309, %v6224
      %6316 = vst.msk [vmem:[%s257 + $0x30] sm:$0xff] %vm6309, %v6226
      %6317 = vst.msk [vmem:[%s257 + $0x38] sm:$0xff] %vm6309, %v6228
      %6318 = vst.msk [vmem:[%s257 + $0x40] sm:$0xff] %vm6309, %v6230
      %6319 = vst.msk [vmem:[%s257 + $0x48] sm:$0xff] %vm6309, %v6232
      %6320 = vst.msk [vmem:[%s257 + $0x50] sm:$0xff] %vm6309, %v6234
      %6321 = vst.msk [vmem:[%s257 + $0x58] sm:$0xff] %vm6309, %v6236
      %6322 = vst.msk [vmem:[%s257 + $0x60] sm:$0xff] %vm6309, %v6238
      %6323 = vst.msk [vmem:[%s257 + $0x68] sm:$0xff] %vm6309, %v6240
      %6324 = vst.msk [vmem:[%s257 + $0x70] sm:$0xff] %vm6309, %v6242
      %6325 = vst.msk [vmem:[%s257 + $0x78] sm:$0xff] %vm6309, %v6244
      %6326 = vst.msk [vmem:[%s257 + $0x80] sm:$0xff] %vm6309, %v6246
      %6327 = vst.msk [vmem:[%s257 + $0x88] sm:$0xff] %vm6309, %v6248
      %6328 = vst.msk [vmem:[%s257 + $0x90] sm:$0xff] %vm6309, %v6250
      %6329 = vst.msk [vmem:[%s257 + $0x98] sm:$0xff] %vm6309, %v6252
      %6330 = vst.msk [vmem:[%s257 + $0xa0] sm:$0xff] %vm6309, %v6254
      %6331 = vst.msk [vmem:[%s257 + $0xa8] sm:$0xff] %vm6309, %v6256
      %6332 = vst.msk [vmem:[%s257 + $0xb0] sm:$0xff] %vm6309, %v6258
      %6333 = vst.msk [vmem:[%s257 + $0xb8] sm:$0xff] %vm6309, %v6260
      %6334 = vst.msk [vmem:[%s257 + $0xc0] sm:$0xff] %vm6309, %v6262
      %6335 = vst.msk [vmem:[%s257 + $0xc8] sm:$0xff] %vm6309, %v6264
      %6336 = vst.msk [vmem:[%s257 + $0xd0] sm:$0xff] %vm6309, %v6266
      %6337 = vst.msk [vmem:[%s257 + $0xd8] sm:$0xff] %vm6309, %v6268
      %6338 = vst.msk [vmem:[%s257 + $0xe0] sm:$0xff] %vm6309, %v6270
      %6339 = vst.msk [vmem:[%s257 + $0xe8] sm:$0xff] %vm6309, %v6272
      %6340 = vst.msk [vmem:[%s257 + $0xf0] sm:$0xff] %vm6309, %v6274
      %6341 = vst.msk [vmem:[%s257 + $0xf8] sm:$0xff] %vm6309, %v6276
      %p6342 = scmp.lt.s32.totalorder %s17, 1
      %s6343 = scalar_select %p6342, %s17, 1
      %s6344 = smul.addr %s6343, 32
      %s6345 = smul.addr %s6344, 4
      %s6346 = scalar_lea.vmem %s4, %s6345
      %p6347 = scmp.lt.s32.totalorder %s17, 1
      %s6348 = scalar_select %p6347, %s17, 1
      %s6349 = smul.addr %s6348, 32
      %s6350 = smul.addr %s6349, 8
      %s6351 = scalar_lea.vmem %s5, %s6350
      // Predicated region
      $region37: #{conv_lstm_cell.1} parent=35 // pred_check
        %p6352 = pneg %p129
      $region38: #{conv_lstm_cell.1} parent=35 // pred_check_branch
        %6354 = sbr.rel (%p6352) target = $region40
      $region39: #{conv_lstm_cell.1} parent=35 // pred_region
        _
      $region40: #{conv_lstm_cell.1} parent=35 // pred_fallthru
        _
      // Predicated region
      $region41: #{conv_lstm_cell.1} parent=35 // pred_check
        %p6355 = pneg %p155
      $region42: #{conv_lstm_cell.1} parent=35 // pred_check_branch
        %6357 = sbr.rel (%p6355) target = $region44
      $region43: #{conv_lstm_cell.1} parent=35 // pred_region
        _
      $region44: #{conv_lstm_cell.1} parent=35 // pred_fallthru
        _
    $region36: #{conv_lstm_cell.1} parent=5 // pred_fallthru
      _
    %p6358 = scmp.le.s32.totalorder 2, %s12
    // Predicated region
    $region45: #{conv_lstm_cell.1} parent=5 // pred_check
      %p6359 = pneg %p6358
    $region46: #{conv_lstm_cell.1} parent=5 // pred_check_branch
      %6361 = sbr.rel (%p6359) target = $region48
    $region47: #{conv_lstm_cell.1} parent=5 // pred_region
      %s6362 = ssub.s32 %s12, 2
      // Predicated region
      $region49: #{conv_lstm_cell.1} parent=47 // pred_check
        %p6363 = pneg %p135
      $region50: #{conv_lstm_cell.1} parent=47 // pred_check_branch
        %6365 = sbr.rel (%p6363) target = $region52
      $region51: #{conv_lstm_cell.1} parent=47 // pred_region
        %p6366 = scmp.lt.s32.totalorder %s18, 1
        %s6367 = scalar_select %p6366, %s18, 1
        %s6368 = smul.addr %s6367, 32
        %s6369 = smul.addr %s6368, 4
        %s6370 = scalar_lea.vmem %s4, %s6369
      $region52: #{conv_lstm_cell.1} parent=47 // pred_fallthru
        _
      // Predicated region
      $region53: #{conv_lstm_cell.1} parent=47 // pred_check
        %p6371 = pneg %p161
      $region54: #{conv_lstm_cell.1} parent=47 // pred_check_branch
        %6373 = sbr.rel (%p6371) target = $region56
      $region55: #{conv_lstm_cell.1} parent=47 // pred_region
        %p6374 = scmp.lt.s32.totalorder %s18, 1
        %s6375 = scalar_select %p6374, %s18, 1
        %s6376 = smul.addr %s6375, 32
        %s6377 = smul.addr %s6376, 8
        %s6378 = scalar_lea.vmem %s5, %s6377
      $region56: #{conv_lstm_cell.1} parent=47 // pred_fallthru
        _
    $region48: #{conv_lstm_cell.1} parent=5 // pred_fallthru
      _
  $region6: #{conv_lstm_cell.1} parent=0 // loop_footer
    %s16 = sadd.s32 1, %s12
  $region7: #{conv_lstm_cell.1} parent=0 // loop_footer_branch
    %11 = sbr.rel target = $region3
  $region8: #{conv_lstm_cell.1} parent=0 // loop_exit
    _

</llo_original>
